<compile_context>
chip_gen: v7x
topology: tpu7x:2x2x1
jax: 0.10.0
libtpu: 0.0.40
codegen_flags: <defaults>
</compile_context>

<pallas_src>
import functools

import numpy as np
import jax
import jax.numpy as jnp
from jax.experimental import pallas as pl
from jax.experimental.pallas import tpu as pltpu

SHIFT = 1  # deterministic choice of the module's random +/-1 shift

# Static geometry implied by the module's reshapes.
_H = 14
_W = 14
_HW = _H * _W          # 196 spatial positions
_COUT = 256
_K = 3 * 3 * 64        # 576 contraction size (kh2, kh1, cin)
_PAD = 128             # lane-aligned left margin inside padded scratches
_XP_W = 384            # >= _PAD + _HW + 14
_EP_W = 384            # >= _PAD + _HW + 14


def _fused_kernel(x_ref, w_ref, wid_ref, y_ref, xp_ref, ep_ref, g_ref, *, shift):
    """Builds the (576, 196) im2col slab in VMEM and runs one MXU GEMM.

    x_ref  : (128, 196) f32  -- x[0, c, h, w] flattened as (c, h*14+w)
    w_ref  : (256, 576) f32  -- w[i, kh2, kh1, k] with (kh2,kh1,k) flattened
    wid_ref: (64, 196)  i32  -- w coordinate of every lane (lane % 14)
    y_ref  : (256, 196) f32  -- y[0, i, h, w] flattened (NCHW order)
    xp_ref : (128, 384) f32  -- zero-padded copy of x (circular W-rolls -> slices)
    ep_ref : (192, 384) f32  -- zero-padded E(kh1) rows (H-unfold -> slices)
    g_ref  : (576, 196) f32  -- im2col slab, rows ordered (kh2, kh1, k)
    """
    w_ids = wid_ref[...]                       # (64, 196) int32, value = w = lane % 14

    # Zero-init padded scratches, then drop x into the lane-aligned window.
    xp_ref[...] = jnp.zeros_like(xp_ref)
    ep_ref[...] = jnp.zeros_like(ep_ref)
    xp_ref[:, _PAD:_PAD + _HW] = x_ref[...]

    def pg_roll(row0, t):
        # Circular roll by `t` along w, independently per h-group of 14 lanes of
        # the flattened (h*14+w) axis:  out[c, h*14+w] = x[c, h*14 + (w - t) % 14]
        t = t % 14
        if t == 0:
            return xp_ref[row0:row0 + 64, _PAD:_PAD + _HW]
        a = xp_ref[row0:row0 + 64, _PAD - t:_PAD + _HW - t]            # x[r - t]
        b = xp_ref[row0:row0 + 64, _PAD + 14 - t:_PAD + _HW + 14 - t]  # x[r - t + 14]
        return jnp.where(w_ids >= t, a, b)

    # Closed form of: roll(W) -> unfold(3,1) over W -> pair roll -> pair sum.
    # E(kh1)[k, h*14+w] combines the low (0:64) and high (64:128) channel halves.
    for kh1 in range(3):
        if shift == 1:
            term1 = pg_roll(0, 2 - kh1)        # pair p=0  -> channels [0, 64)
            term2 = pg_roll(64, 3 - kh1)       # pair p=1  -> channels [64, 128)
            m2 = {0: w_ids != 1, 1: None, 2: w_ids != 0}[kh1]
        else:  # shift == -1
            term1 = pg_roll(64, -kh1)          # pair p=1
            term2 = pg_roll(0, -(kh1 + 1))     # pair p=0
            m2 = {0: w_ids != 13, 1: None, 2: w_ids != 12}[kh1]
        m1 = {0: w_ids >= 1, 1: None, 2: w_ids <= 12}[kh1]

        if m1 is not None:
            term1 = jnp.where(m1, term1, 0.0)
        if m2 is not None:
            term2 = jnp.where(m2, term2, 0.0)

        # Park E(kh1) in the aligned window so the kh2 shift is a plain slice read.
        ep_ref[kh1 * 64:(kh1 + 1) * 64, _PAD:_PAD + _HW] = term1 + term2

    # Second unfold (over h):  G[(kh2,kh1,k), r] = E(kh1)[k, r + 14*(kh2-1)],
    # zero-padded at the h boundaries (supplied by the zeroed scratch margins).
    for kh2 in range(3):
        off = _PAD + 14 * (kh2 - 1)
        for kh1 in range(3):
            base = (kh2 * 3 + kh1) * 64
            g_ref[base:base + 64, :] = ep_ref[kh1 * 64:(kh1 + 1) * 64, off:off + _HW]

    # One MXU GEMM: (256, 576) @ (576, 196) -> (256, 196) == NCHW-flattened y.
    # Kept in f32 (f32 MXU accumulate) for exactness; the GEMM is ~58 MFLOPs so
    # a bf16 cast would save only ~hundreds of ns.
    y_ref[...] = jnp.dot(w_ref[...], g_ref[...],
                         preferred_element_type=jnp.float32)


@functools.partial(jax.jit, static_argnames=("shift",))
def kernel_generated_3_forward(x, w, shift=SHIFT):
    """x: (1,128,14,14) f32 NCHW; w: (256,3,3,64) f32 -> (1,256,14,14) f32."""
    assert shift in (1, -1)
    x2d = x.reshape(128, _HW)          # free contiguous reshape
    w2d = w.reshape(_COUT, _K)         # free contiguous reshape (no transpose)
    w_ids = jnp.asarray(
        np.ascontiguousarray(
            np.broadcast_to((np.arange(_HW, dtype=np.int32) % _W)[None, :],
                            (64, _HW))),
        dtype=jnp.int32)               # compile-time constant lane->w map

    flops = 2 * _COUT * _K * _HW
    bytes_accessed = 4 * (x2d.size + w2d.size + w_ids.size + _COUT * _HW)

    y2d = pl.pallas_call(
        functools.partial(_fused_kernel, shift=shift),
        out_shape=jax.ShapeDtypeStruct((_COUT, _HW), jnp.float32),
        in_specs=[
            pl.BlockSpec(memory_space=pltpu.MemorySpace.VMEM),
            pl.BlockSpec(memory_space=pltpu.MemorySpace.VMEM),
            pl.BlockSpec(memory_space=pltpu.MemorySpace.VMEM),
        ],
        out_specs=pl.BlockSpec(memory_space=pltpu.MemorySpace.VMEM),
        scratch_shapes=[
            pltpu.VMEM((128, _XP_W), jnp.float32),   # padded x copy
            pltpu.VMEM((192, _EP_W), jnp.float32),   # padded E(kh1) rows
            pltpu.VMEM((_K, _HW), jnp.float32),      # im2col slab G
        ],
        cost_estimate=pl.CostEstimate(
            flops=flops, transcendentals=0, bytes_accessed=bytes_accessed),
    )(x2d, w2d, w_ids)

    return y2d.reshape(1, _COUT, _H, _W)   # free reshape, already NCHW order


# ---------------------------------------------------------------------------
# Pure-JAX reference: literal transcription of the torch op chain.
# ---------------------------------------------------------------------------
def _build_patches_ref(x, shift):
    a = jnp.transpose(x, (0, 2, 3, 1))                    # einsum 'ilkj -> ikjl'
    a = jnp.roll(a, shift, axis=2)                        # roll along W
    a = a.reshape(1, 14, 14, 128)
    a_pad = jnp.pad(a, ((0, 0), (0, 0), (1, 1), (0, 0)))  # unfold (3,1), pad (1,0)
    B = jnp.stack([a_pad[0, :, k:k + 14, :] for k in range(3)], axis=1)  # (14,3,14,128)
    C = B.reshape(14, 3, 14, 2, 64).reshape(14, 3, 28, 64)
    C = jnp.roll(C, shift, axis=2)                        # roll along merged (w,pair)
    E = C.reshape(14, 3, 14, 2, 64).sum(axis=3)           # pair sum -> (14,3,14,64)
    E_pad = jnp.pad(E, ((1, 1), (0, 0), (0, 0), (0, 0)))  # unfold (3,1) over h
    F = jnp.stack([E_pad[k:k + 14] for k in range(3)], axis=0)  # (3,14,3,14,64)
    return F


@functools.partial(jax.jit, static_argnames=("shift",))
def _reference_forward(x, w, shift=SHIFT):
    F = _build_patches_ref(x, shift)
    y = jnp.einsum("jnlok,ijlk->ino", F, w,
                   precision=jax.lax.Precision.HIGHEST)
    return y[None]


if __name__ == "__main__":
    key = jax.random.PRNGKey(0)
    kx, kw = jax.random.split(key)
    x = jax.random.normal(kx, (1, 128, 14, 14), dtype=jnp.float32)
    w = jax.random.normal(kw, (256, 3, 3, 64), dtype=jnp.float32)

    for s in (1, -1):
        y = jax.block_until_ready(kernel_generated_3_forward(x, w, shift=s))
        assert y.shape == (1, 256, 14, 14), y.shape

        y_ref = jax.block_until_ready(_reference_forward(x, w, shift=s))
        if not bool(jnp.allclose(y, y_ref, rtol=2e-3, atol=2e-2)):
            max_err = float(jnp.max(jnp.abs(y - y_ref)))
            raise AssertionError(
                f"mismatch vs reference (shift={s}), max_abs_err={max_err}")

    print("KERNEL_OK")
</pallas_src>

<mosaic_0001>
module attributes {stable_mosaic.version = 11 : i64} {
  func.func @_fused_kernel(%arg0: memref<128x196xf32, #tpu.memory_space<vmem>>, %arg1: memref<256x576xf32, #tpu.memory_space<vmem>>, %arg2: memref<64x196xi32, #tpu.memory_space<vmem>>, %arg3: memref<256x196xf32, #tpu.memory_space<vmem>>, %arg4: memref<128x384xf32, #tpu.memory_space<vmem>>, %arg5: memref<192x384xf32, #tpu.memory_space<vmem>>, %arg6: memref<576x196xf32, #tpu.memory_space<vmem>>) attributes {dimension_semantics = [], scalar_prefetch = 0 : i64, scratch_operands = 3 : i64, tpu.core_type = #tpu.core_type<tc>} {
    %c0 = arith.constant 0 : index
    %c0_0 = arith.constant 0 : index
    %0 = vector.load %arg2[%c0, %c0_0] : memref<64x196xi32, #tpu.memory_space<vmem>>, vector<64x196xi32>
    %cst = arith.constant 0.000000e+00 : f32
    %1 = vector.broadcast %cst : f32 to vector<128x384xf32>
    %c0_1 = arith.constant 0 : index
    %c0_2 = arith.constant 0 : index
    %2 = vector.load %arg4[%c0_1, %c0_2] : memref<128x384xf32, #tpu.memory_space<vmem>>, vector<128x384xf32>
    tpu.vector_store %arg4[%c0_1, %c0_2], %1 {strides = array<i32>} : memref<128x384xf32, #tpu.memory_space<vmem>>, vector<128x384xf32>,
    %cst_3 = arith.constant 0.000000e+00 : f32
    %3 = vector.broadcast %cst_3 : f32 to vector<192x384xf32>
    %c0_4 = arith.constant 0 : index
    %c0_5 = arith.constant 0 : index
    %4 = vector.load %arg5[%c0_4, %c0_5] : memref<192x384xf32, #tpu.memory_space<vmem>>, vector<192x384xf32>
    tpu.vector_store %arg5[%c0_4, %c0_5], %3 {strides = array<i32>} : memref<192x384xf32, #tpu.memory_space<vmem>>, vector<192x384xf32>,
    %c0_6 = arith.constant 0 : index
    %c0_7 = arith.constant 0 : index
    %5 = vector.load %arg0[%c0_6, %c0_7] : memref<128x196xf32, #tpu.memory_space<vmem>>, vector<128x196xf32>
    %c0_8 = arith.constant 0 : index
    %c128 = arith.constant 128 : index
    %6 = vector.load %arg4[%c0_8, %c128] : memref<128x384xf32, #tpu.memory_space<vmem>>, vector<128x196xf32>
    tpu.vector_store %arg4[%c0_8, %c128], %5 {strides = array<i32>} : memref<128x384xf32, #tpu.memory_space<vmem>>, vector<128x196xf32>,
    %c0_9 = arith.constant 0 : index
    %c126 = arith.constant 126 : index
    %7 = vector.load %arg4[%c0_9, %c126] : memref<128x384xf32, #tpu.memory_space<vmem>>, vector<64x196xf32>
    %c0_10 = arith.constant 0 : index
    %c140 = arith.constant 140 : index
    %8 = vector.load %arg4[%c0_10, %c140] : memref<128x384xf32, #tpu.memory_space<vmem>>, vector<64x196xf32>
    %c2_i32 = arith.constant 2 : i32
    %9 = vector.broadcast %c2_i32 : i32 to vector<64x196xi32>
    %10 = arith.cmpi sge, %0, %9 : vector<64x196xi32>
    %11 = arith.select %10, %7, %8 : vector<64x196xi1>, vector<64x196xf32>
    %c64 = arith.constant 64 : index
    %c125 = arith.constant 125 : index
    %12 = vector.load %arg4[%c64, %c125] : memref<128x384xf32, #tpu.memory_space<vmem>>, vector<64x196xf32>
    %c64_11 = arith.constant 64 : index
    %c139 = arith.constant 139 : index
    %13 = vector.load %arg4[%c64_11, %c139] : memref<128x384xf32, #tpu.memory_space<vmem>>, vector<64x196xf32>
    %c3_i32 = arith.constant 3 : i32
    %14 = vector.broadcast %c3_i32 : i32 to vector<64x196xi32>
    %15 = arith.cmpi sge, %0, %14 : vector<64x196xi32>
    %16 = arith.select %15, %12, %13 : vector<64x196xi1>, vector<64x196xf32>
    %c1_i32 = arith.constant 1 : i32
    %17 = vector.broadcast %c1_i32 : i32 to vector<64x196xi32>
    %18 = arith.cmpi ne, %0, %17 : vector<64x196xi32>
    %c1_i32_12 = arith.constant 1 : i32
    %19 = vector.broadcast %c1_i32_12 : i32 to vector<64x196xi32>
    %20 = arith.cmpi sge, %0, %19 : vector<64x196xi32>
    %cst_13 = arith.constant 0.000000e+00 : f32
    %21 = vector.broadcast %cst_13 : f32 to vector<64x196xf32>
    %22 = arith.select %20, %11, %21 : vector<64x196xi1>, vector<64x196xf32>
    %cst_14 = arith.constant 0.000000e+00 : f32
    %23 = vector.broadcast %cst_14 : f32 to vector<64x196xf32>
    %24 = arith.select %18, %16, %23 : vector<64x196xi1>, vector<64x196xf32>
    %25 = arith.addf %22, %24 : vector<64x196xf32>
    %c0_15 = arith.constant 0 : index
    %c128_16 = arith.constant 128 : index
    %26 = vector.load %arg5[%c0_15, %c128_16] : memref<192x384xf32, #tpu.memory_space<vmem>>, vector<64x196xf32>
    tpu.vector_store %arg5[%c0_15, %c128_16], %25 {strides = array<i32>} : memref<192x384xf32, #tpu.memory_space<vmem>>, vector<64x196xf32>,
    %c0_17 = arith.constant 0 : index
    %c127 = arith.constant 127 : index
    %27 = vector.load %arg4[%c0_17, %c127] : memref<128x384xf32, #tpu.memory_space<vmem>>, vector<64x196xf32>
    %c0_18 = arith.constant 0 : index
    %c141 = arith.constant 141 : index
    %28 = vector.load %arg4[%c0_18, %c141] : memref<128x384xf32, #tpu.memory_space<vmem>>, vector<64x196xf32>
    %c1_i32_19 = arith.constant 1 : i32
    %29 = vector.broadcast %c1_i32_19 : i32 to vector<64x196xi32>
    %30 = arith.cmpi sge, %0, %29 : vector<64x196xi32>
    %31 = arith.select %30, %27, %28 : vector<64x196xi1>, vector<64x196xf32>
    %c64_20 = arith.constant 64 : index
    %c126_21 = arith.constant 126 : index
    %32 = vector.load %arg4[%c64_20, %c126_21] : memref<128x384xf32, #tpu.memory_space<vmem>>, vector<64x196xf32>
    %c64_22 = arith.constant 64 : index
    %c140_23 = arith.constant 140 : index
    %33 = vector.load %arg4[%c64_22, %c140_23] : memref<128x384xf32, #tpu.memory_space<vmem>>, vector<64x196xf32>
    %c2_i32_24 = arith.constant 2 : i32
    %34 = vector.broadcast %c2_i32_24 : i32 to vector<64x196xi32>
    %35 = arith.cmpi sge, %0, %34 : vector<64x196xi32>
    %36 = arith.select %35, %32, %33 : vector<64x196xi1>, vector<64x196xf32>
    %37 = arith.addf %31, %36 : vector<64x196xf32>
    %c64_25 = arith.constant 64 : index
    %c128_26 = arith.constant 128 : index
    %38 = vector.load %arg5[%c64_25, %c128_26] : memref<192x384xf32, #tpu.memory_space<vmem>>, vector<64x196xf32>
    tpu.vector_store %arg5[%c64_25, %c128_26], %37 {strides = array<i32>} : memref<192x384xf32, #tpu.memory_space<vmem>>, vector<64x196xf32>,
    %c0_27 = arith.constant 0 : index
    %c128_28 = arith.constant 128 : index
    %39 = vector.load %arg4[%c0_27, %c128_28] : memref<128x384xf32, #tpu.memory_space<vmem>>, vector<64x196xf32>
    %c64_29 = arith.constant 64 : index
    %c127_30 = arith.constant 127 : index
    %40 = vector.load %arg4[%c64_29, %c127_30] : memref<128x384xf32, #tpu.memory_space<vmem>>, vector<64x196xf32>
    %c64_31 = arith.constant 64 : index
    %c141_32 = arith.constant 141 : index
    %41 = vector.load %arg4[%c64_31, %c141_32] : memref<128x384xf32, #tpu.memory_space<vmem>>, vector<64x196xf32>
    %c1_i32_33 = arith.constant 1 : i32
    %42 = vector.broadcast %c1_i32_33 : i32 to vector<64x196xi32>
    %43 = arith.cmpi sge, %0, %42 : vector<64x196xi32>
    %44 = arith.select %43, %40, %41 : vector<64x196xi1>, vector<64x196xf32>
    %c0_i32 = arith.constant 0 : i32
    %45 = vector.broadcast %c0_i32 : i32 to vector<64x196xi32>
    %46 = arith.cmpi ne, %0, %45 : vector<64x196xi32>
    %c12_i32 = arith.constant 12 : i32
    %47 = vector.broadcast %c12_i32 : i32 to vector<64x196xi32>
    %48 = arith.cmpi sle, %0, %47 : vector<64x196xi32>
    %cst_34 = arith.constant 0.000000e+00 : f32
    %49 = vector.broadcast %cst_34 : f32 to vector<64x196xf32>
    %50 = arith.select %48, %39, %49 : vector<64x196xi1>, vector<64x196xf32>
    %cst_35 = arith.constant 0.000000e+00 : f32
    %51 = vector.broadcast %cst_35 : f32 to vector<64x196xf32>
    %52 = arith.select %46, %44, %51 : vector<64x196xi1>, vector<64x196xf32>
    %53 = arith.addf %50, %52 : vector<64x196xf32>
    %c128_36 = arith.constant 128 : index
    %c128_37 = arith.constant 128 : index
    %54 = vector.load %arg5[%c128_36, %c128_37] : memref<192x384xf32, #tpu.memory_space<vmem>>, vector<64x196xf32>
    tpu.vector_store %arg5[%c128_36, %c128_37], %53 {strides = array<i32>} : memref<192x384xf32, #tpu.memory_space<vmem>>, vector<64x196xf32>,
    %c0_38 = arith.constant 0 : index
    %c114 = arith.constant 114 : index
    %55 = vector.load %arg5[%c0_38, %c114] : memref<192x384xf32, #tpu.memory_space<vmem>>, vector<64x196xf32>
    %c0_39 = arith.constant 0 : index
    %c0_40 = arith.constant 0 : index
    %56 = vector.load %arg6[%c0_39, %c0_40] : memref<576x196xf32, #tpu.memory_space<vmem>>, vector<64x196xf32>
    tpu.vector_store %arg6[%c0_39, %c0_40], %55 {strides = array<i32>} : memref<576x196xf32, #tpu.memory_space<vmem>>, vector<64x196xf32>,
    %c64_41 = arith.constant 64 : index
    %c114_42 = arith.constant 114 : index
    %57 = vector.load %arg5[%c64_41, %c114_42] : memref<192x384xf32, #tpu.memory_space<vmem>>, vector<64x196xf32>
    %c64_43 = arith.constant 64 : index
    %c0_44 = arith.constant 0 : index
    %58 = vector.load %arg6[%c64_43, %c0_44] : memref<576x196xf32, #tpu.memory_space<vmem>>, vector<64x196xf32>
    tpu.vector_store %arg6[%c64_43, %c0_44], %57 {strides = array<i32>} : memref<576x196xf32, #tpu.memory_space<vmem>>, vector<64x196xf32>,
    %c128_45 = arith.constant 128 : index
    %c114_46 = arith.constant 114 : index
    %59 = vector.load %arg5[%c128_45, %c114_46] : memref<192x384xf32, #tpu.memory_space<vmem>>, vector<64x196xf32>
    %c128_47 = arith.constant 128 : index
    %c0_48 = arith.constant 0 : index
    %60 = vector.load %arg6[%c128_47, %c0_48] : memref<576x196xf32, #tpu.memory_space<vmem>>, vector<64x196xf32>
    tpu.vector_store %arg6[%c128_47, %c0_48], %59 {strides = array<i32>} : memref<576x196xf32, #tpu.memory_space<vmem>>, vector<64x196xf32>,
    %c0_49 = arith.constant 0 : index
    %c128_50 = arith.constant 128 : index
    %61 = vector.load %arg5[%c0_49, %c128_50] : memref<192x384xf32, #tpu.memory_space<vmem>>, vector<64x196xf32>
    %c192 = arith.constant 192 : index
    %c0_51 = arith.constant 0 : index
    %62 = vector.load %arg6[%c192, %c0_51] : memref<576x196xf32, #tpu.memory_space<vmem>>, vector<64x196xf32>
    tpu.vector_store %arg6[%c192, %c0_51], %61 {strides = array<i32>} : memref<576x196xf32, #tpu.memory_space<vmem>>, vector<64x196xf32>,
    %c64_52 = arith.constant 64 : index
    %c128_53 = arith.constant 128 : index
    %63 = vector.load %arg5[%c64_52, %c128_53] : memref<192x384xf32, #tpu.memory_space<vmem>>, vector<64x196xf32>
    %c256 = arith.constant 256 : index
    %c0_54 = arith.constant 0 : index
    %64 = vector.load %arg6[%c256, %c0_54] : memref<576x196xf32, #tpu.memory_space<vmem>>, vector<64x196xf32>
    tpu.vector_store %arg6[%c256, %c0_54], %63 {strides = array<i32>} : memref<576x196xf32, #tpu.memory_space<vmem>>, vector<64x196xf32>,
    %c128_55 = arith.constant 128 : index
    %c128_56 = arith.constant 128 : index
    %65 = vector.load %arg5[%c128_55, %c128_56] : memref<192x384xf32, #tpu.memory_space<vmem>>, vector<64x196xf32>
    %c320 = arith.constant 320 : index
    %c0_57 = arith.constant 0 : index
    %66 = vector.load %arg6[%c320, %c0_57] : memref<576x196xf32, #tpu.memory_space<vmem>>, vector<64x196xf32>
    tpu.vector_store %arg6[%c320, %c0_57], %65 {strides = array<i32>} : memref<576x196xf32, #tpu.memory_space<vmem>>, vector<64x196xf32>,
    %c0_58 = arith.constant 0 : index
    %c142 = arith.constant 142 : index
    %67 = vector.load %arg5[%c0_58, %c142] : memref<192x384xf32, #tpu.memory_space<vmem>>, vector<64x196xf32>
    %c384 = arith.constant 384 : index
    %c0_59 = arith.constant 0 : index
    %68 = vector.load %arg6[%c384, %c0_59] : memref<576x196xf32, #tpu.memory_space<vmem>>, vector<64x196xf32>
    tpu.vector_store %arg6[%c384, %c0_59], %67 {strides = array<i32>} : memref<576x196xf32, #tpu.memory_space<vmem>>, vector<64x196xf32>,
    %c64_60 = arith.constant 64 : index
    %c142_61 = arith.constant 142 : index
    %69 = vector.load %arg5[%c64_60, %c142_61] : memref<192x384xf32, #tpu.memory_space<vmem>>, vector<64x196xf32>
    %c448 = arith.constant 448 : index
    %c0_62 = arith.constant 0 : index
    %70 = vector.load %arg6[%c448, %c0_62] : memref<576x196xf32, #tpu.memory_space<vmem>>, vector<64x196xf32>
    tpu.vector_store %arg6[%c448, %c0_62], %69 {strides = array<i32>} : memref<576x196xf32, #tpu.memory_space<vmem>>, vector<64x196xf32>,
    %c128_63 = arith.constant 128 : index
    %c142_64 = arith.constant 142 : index
    %71 = vector.load %arg5[%c128_63, %c142_64] : memref<192x384xf32, #tpu.memory_space<vmem>>, vector<64x196xf32>
    %c512 = arith.constant 512 : index
    %c0_65 = arith.constant 0 : index
    %72 = vector.load %arg6[%c512, %c0_65] : memref<576x196xf32, #tpu.memory_space<vmem>>, vector<64x196xf32>
    tpu.vector_store %arg6[%c512, %c0_65], %71 {strides = array<i32>} : memref<576x196xf32, #tpu.memory_space<vmem>>, vector<64x196xf32>,
    %c0_66 = arith.constant 0 : index
    %c0_67 = arith.constant 0 : index
    %73 = vector.load %arg1[%c0_66, %c0_67] : memref<256x576xf32, #tpu.memory_space<vmem>>, vector<256x576xf32>
    %c0_68 = arith.constant 0 : index
    %c0_69 = arith.constant 0 : index
    %74 = vector.load %arg6[%c0_68, %c0_69] : memref<576x196xf32, #tpu.memory_space<vmem>>, vector<576x196xf32>
    %cst_70 = arith.constant dense<0.000000e+00> : vector<256x196xf32>
    %75 = tpu.matmul %73, %74, %cst_70 {dimension_numbers = #tpu.dot_dimension_numbers<[1], [0], [0], [1], [0, 0, 1, 1], [], []>} : vector<256x576xf32>, vector<576x196xf32>, vector<256x196xf32> -> vector<256x196xf32>
    %c0_71 = arith.constant 0 : index
    %c0_72 = arith.constant 0 : index
    %76 = vector.load %arg3[%c0_71, %c0_72] : memref<256x196xf32, #tpu.memory_space<vmem>>, vector<256x196xf32>
    tpu.vector_store %arg3[%c0_71, %c0_72], %75 {strides = array<i32>} : memref<256x196xf32, #tpu.memory_space<vmem>>, vector<256x196xf32>,
    return
  }
}

</mosaic_0001>

<llo_original>
// kernel: kernel_generated_3_forward.1
$region0: #{kernel_generated_3_forward.1}
  #allocation0 [shape = 'u32[]', space=smem, size = 0x4, offset = 0x4, fixed_abs, tag = 'smem constant byte address 0x4 - core index']
  #allocation1 [shape = 'u32[144,128]{1,0:T(1,128)}', space=vmem, size = 0x12000, scoped, tag = 'internal scratch']
  #allocation2 [shape = 'f32[128,384]{1,0:T(8,128)}', space=vmem, size = 0x30000, scoped, tag = 'scratch operand']
  #allocation3 [shape = 'f32[192,384]{1,0:T(8,128)}', space=vmem, size = 0x48000, scoped, tag = 'scratch operand']
  #allocation4 [shape = 'f32[576,196]{1,0:T(8,128)}', space=vmem, size = 0x90000, scoped, tag = 'scratch operand']
  %s0 = inlined_call_operand.vmem [shape: f32[128,196], index: 0, kind: input, shape index: {}]
  %s1 = inlined_call_operand.vmem [shape: f32[256,576], index: 1, kind: input, shape index: {}]
  %s2 = inlined_call_operand.vmem [shape: s32[64,196], index: 2, kind: input, shape index: {}]
  %s3 = inlined_call_operand.vmem [shape: f32[256,196], index: 3, kind: output, shape index: {}]
  %s4 = sld [smem:[#allocation0]]
  $region22: #{kernel_generated_3_forward.1} parent=0
    _
  %s6 = ssub.s32 1, %s4
  %s7 = scalar_select 0, %s6, %s4
  // Predicated region
  $region2: #{kernel_generated_3_forward.1} parent=0 // pred_check
    _
  $region3: #{kernel_generated_3_forward.1} parent=0 // pred_check_branch
    %9 = sbr.rel (0) target = $region5
  $region4: #{kernel_generated_3_forward.1} parent=0 // pred_region
    _
  $region5: #{kernel_generated_3_forward.1} parent=0 // pred_fallthru
    _
  // Predicated region
  $region6: #{kernel_generated_3_forward.1} parent=0 // pred_check
    _
  $region7: #{kernel_generated_3_forward.1} parent=0 // pred_check_branch
    %11 = sbr.rel (0) target = $region9
  $region8: #{kernel_generated_3_forward.1} parent=0 // pred_region
    _
  $region9: #{kernel_generated_3_forward.1} parent=0 // pred_fallthru
    _
  // Predicated region
  $region10: #{kernel_generated_3_forward.1} parent=0 // pred_check
    _
  $region11: #{kernel_generated_3_forward.1} parent=0 // pred_check_branch
    %13 = sbr.rel (0) target = $region13
  $region12: #{kernel_generated_3_forward.1} parent=0 // pred_region
    _
  $region13: #{kernel_generated_3_forward.1} parent=0 // pred_fallthru
    _
  %v14 = vld [vmem:[%s2] sm:$0xff]
  %v15 = vld [vmem:[%s2 + $0x8] sm:$0xff]
  %v16 = vld [vmem:[%s2 + $0x10] sm:$0xff]
  %v17 = vld [vmem:[%s2 + $0x18] sm:$0xff]
  %v18 = vld [vmem:[%s2 + $0x20] sm:$0xff]
  %v19 = vld [vmem:[%s2 + $0x28] sm:$0xff]
  %v20 = vld [vmem:[%s2 + $0x30] sm:$0xff]
  %v21 = vld [vmem:[%s2 + $0x38] sm:$0xff]
  %v22 = vld [vmem:[%s2 + $0x40] sm:$0xff]
  %v23 = vld [vmem:[%s2 + $0x48] sm:$0xff]
  %v24 = vld [vmem:[%s2 + $0x50] sm:$0xff]
  %v25 = vld [vmem:[%s2 + $0x58] sm:$0xff]
  %v26 = vld [vmem:[%s2 + $0x60] sm:$0xff]
  %v27 = vld [vmem:[%s2 + $0x68] sm:$0xff]
  %v28 = vld [vmem:[%s2 + $0x70] sm:$0xff]
  %v29 = vld [vmem:[%s2 + $0x78] sm:$0xff]
  %30 = vst [vmem:[#allocation2] sm:$0xff] 0.0
  %31 = vst [vmem:[#allocation2 + $0x8] sm:$0xff] 0.0
  %32 = vst [vmem:[#allocation2 + $0x10] sm:$0xff] 0.0
  %33 = vst [vmem:[#allocation2 + $0x18] sm:$0xff] 0.0
  %34 = vst [vmem:[#allocation2 + $0x20] sm:$0xff] 0.0
  %35 = vst [vmem:[#allocation2 + $0x28] sm:$0xff] 0.0
  %36 = vst [vmem:[#allocation2 + $0x30] sm:$0xff] 0.0
  %37 = vst [vmem:[#allocation2 + $0x38] sm:$0xff] 0.0
  %38 = vst [vmem:[#allocation2 + $0x40] sm:$0xff] 0.0
  %39 = vst [vmem:[#allocation2 + $0x48] sm:$0xff] 0.0
  %40 = vst [vmem:[#allocation2 + $0x50] sm:$0xff] 0.0
  %41 = vst [vmem:[#allocation2 + $0x58] sm:$0xff] 0.0
  %42 = vst [vmem:[#allocation2 + $0x60] sm:$0xff] 0.0
  %43 = vst [vmem:[#allocation2 + $0x68] sm:$0xff] 0.0
  %44 = vst [vmem:[#allocation2 + $0x70] sm:$0xff] 0.0
  %45 = vst [vmem:[#allocation2 + $0x78] sm:$0xff] 0.0
  %46 = vst [vmem:[#allocation2 + $0x80] sm:$0xff] 0.0
  %47 = vst [vmem:[#allocation2 + $0x88] sm:$0xff] 0.0
  %48 = vst [vmem:[#allocation2 + $0x90] sm:$0xff] 0.0
  %49 = vst [vmem:[#allocation2 + $0x98] sm:$0xff] 0.0
  %50 = vst [vmem:[#allocation2 + $0xa0] sm:$0xff] 0.0
  %51 = vst [vmem:[#allocation2 + $0xa8] sm:$0xff] 0.0
  %52 = vst [vmem:[#allocation2 + $0xb0] sm:$0xff] 0.0
  %53 = vst [vmem:[#allocation2 + $0xb8] sm:$0xff] 0.0
  %54 = vst [vmem:[#allocation2 + $0xc0] sm:$0xff] 0.0
  %55 = vst [vmem:[#allocation2 + $0xc8] sm:$0xff] 0.0
  %56 = vst [vmem:[#allocation2 + $0xd0] sm:$0xff] 0.0
  %57 = vst [vmem:[#allocation2 + $0xd8] sm:$0xff] 0.0
  %58 = vst [vmem:[#allocation2 + $0xe0] sm:$0xff] 0.0
  %59 = vst [vmem:[#allocation2 + $0xe8] sm:$0xff] 0.0
  %60 = vst [vmem:[#allocation2 + $0xf0] sm:$0xff] 0.0
  %61 = vst [vmem:[#allocation2 + $0xf8] sm:$0xff] 0.0
  %62 = vst [vmem:[#allocation2 + $0x100] sm:$0xff] 0.0
  %63 = vst [vmem:[#allocation2 + $0x108] sm:$0xff] 0.0
  %64 = vst [vmem:[#allocation2 + $0x110] sm:$0xff] 0.0
  %65 = vst [vmem:[#allocation2 + $0x118] sm:$0xff] 0.0
  %66 = vst [vmem:[#allocation2 + $0x120] sm:$0xff] 0.0
  %67 = vst [vmem:[#allocation2 + $0x128] sm:$0xff] 0.0
  %68 = vst [vmem:[#allocation2 + $0x130] sm:$0xff] 0.0
  %69 = vst [vmem:[#allocation2 + $0x138] sm:$0xff] 0.0
  %70 = vst [vmem:[#allocation2 + $0x140] sm:$0xff] 0.0
  %71 = vst [vmem:[#allocation2 + $0x148] sm:$0xff] 0.0
  %72 = vst [vmem:[#allocation2 + $0x150] sm:$0xff] 0.0
  %73 = vst [vmem:[#allocation2 + $0x158] sm:$0xff] 0.0
  %74 = vst [vmem:[#allocation2 + $0x160] sm:$0xff] 0.0
  %75 = vst [vmem:[#allocation2 + $0x168] sm:$0xff] 0.0
  %76 = vst [vmem:[#allocation2 + $0x170] sm:$0xff] 0.0
  %77 = vst [vmem:[#allocation2 + $0x178] sm:$0xff] 0.0
  %78 = vst [vmem:[#allocation3] sm:$0xff] 0.0
  %79 = vst [vmem:[#allocation3 + $0x8] sm:$0xff] 0.0
  %80 = vst [vmem:[#allocation3 + $0x10] sm:$0xff] 0.0
  %81 = vst [vmem:[#allocation3 + $0x18] sm:$0xff] 0.0
  %82 = vst [vmem:[#allocation3 + $0x20] sm:$0xff] 0.0
  %83 = vst [vmem:[#allocation3 + $0x28] sm:$0xff] 0.0
  %84 = vst [vmem:[#allocation3 + $0x30] sm:$0xff] 0.0
  %85 = vst [vmem:[#allocation3 + $0x38] sm:$0xff] 0.0
  %86 = vst [vmem:[#allocation3 + $0x40] sm:$0xff] 0.0
  %87 = vst [vmem:[#allocation3 + $0x48] sm:$0xff] 0.0
  %88 = vst [vmem:[#allocation3 + $0x50] sm:$0xff] 0.0
  %89 = vst [vmem:[#allocation3 + $0x58] sm:$0xff] 0.0
  %90 = vst [vmem:[#allocation3 + $0x60] sm:$0xff] 0.0
  %91 = vst [vmem:[#allocation3 + $0x68] sm:$0xff] 0.0
  %92 = vst [vmem:[#allocation3 + $0x70] sm:$0xff] 0.0
  %93 = vst [vmem:[#allocation3 + $0x78] sm:$0xff] 0.0
  %94 = vst [vmem:[#allocation3 + $0x80] sm:$0xff] 0.0
  %95 = vst [vmem:[#allocation3 + $0x88] sm:$0xff] 0.0
  %96 = vst [vmem:[#allocation3 + $0x90] sm:$0xff] 0.0
  %97 = vst [vmem:[#allocation3 + $0x98] sm:$0xff] 0.0
  %98 = vst [vmem:[#allocation3 + $0xa0] sm:$0xff] 0.0
  %99 = vst [vmem:[#allocation3 + $0xa8] sm:$0xff] 0.0
  %100 = vst [vmem:[#allocation3 + $0xb0] sm:$0xff] 0.0
  %101 = vst [vmem:[#allocation3 + $0xb8] sm:$0xff] 0.0
  %102 = vst [vmem:[#allocation3 + $0xc0] sm:$0xff] 0.0
  %103 = vst [vmem:[#allocation3 + $0xc8] sm:$0xff] 0.0
  %104 = vst [vmem:[#allocation3 + $0xd0] sm:$0xff] 0.0
  %105 = vst [vmem:[#allocation3 + $0xd8] sm:$0xff] 0.0
  %106 = vst [vmem:[#allocation3 + $0xe0] sm:$0xff] 0.0
  %107 = vst [vmem:[#allocation3 + $0xe8] sm:$0xff] 0.0
  %108 = vst [vmem:[#allocation3 + $0xf0] sm:$0xff] 0.0
  %109 = vst [vmem:[#allocation3 + $0xf8] sm:$0xff] 0.0
  %110 = vst [vmem:[#allocation3 + $0x100] sm:$0xff] 0.0
  %111 = vst [vmem:[#allocation3 + $0x108] sm:$0xff] 0.0
  %112 = vst [vmem:[#allocation3 + $0x110] sm:$0xff] 0.0
  %113 = vst [vmem:[#allocation3 + $0x118] sm:$0xff] 0.0
  %114 = vst [vmem:[#allocation3 + $0x120] sm:$0xff] 0.0
  %115 = vst [vmem:[#allocation3 + $0x128] sm:$0xff] 0.0
  %116 = vst [vmem:[#allocation3 + $0x130] sm:$0xff] 0.0
  %117 = vst [vmem:[#allocation3 + $0x138] sm:$0xff] 0.0
  %118 = vst [vmem:[#allocation3 + $0x140] sm:$0xff] 0.0
  %119 = vst [vmem:[#allocation3 + $0x148] sm:$0xff] 0.0
  %120 = vst [vmem:[#allocation3 + $0x150] sm:$0xff] 0.0
  %121 = vst [vmem:[#allocation3 + $0x158] sm:$0xff] 0.0
  %122 = vst [vmem:[#allocation3 + $0x160] sm:$0xff] 0.0
  %123 = vst [vmem:[#allocation3 + $0x168] sm:$0xff] 0.0
  %124 = vst [vmem:[#allocation3 + $0x170] sm:$0xff] 0.0
  %125 = vst [vmem:[#allocation3 + $0x178] sm:$0xff] 0.0
  %126 = vst [vmem:[#allocation3 + $0x180] sm:$0xff] 0.0
  %127 = vst [vmem:[#allocation3 + $0x188] sm:$0xff] 0.0
  %128 = vst [vmem:[#allocation3 + $0x190] sm:$0xff] 0.0
  %129 = vst [vmem:[#allocation3 + $0x198] sm:$0xff] 0.0
  %130 = vst [vmem:[#allocation3 + $0x1a0] sm:$0xff] 0.0
  %131 = vst [vmem:[#allocation3 + $0x1a8] sm:$0xff] 0.0
  %132 = vst [vmem:[#allocation3 + $0x1b0] sm:$0xff] 0.0
  %133 = vst [vmem:[#allocation3 + $0x1b8] sm:$0xff] 0.0
  %134 = vst [vmem:[#allocation3 + $0x1c0] sm:$0xff] 0.0
  %135 = vst [vmem:[#allocation3 + $0x1c8] sm:$0xff] 0.0
  %136 = vst [vmem:[#allocation3 + $0x1d0] sm:$0xff] 0.0
  %137 = vst [vmem:[#allocation3 + $0x1d8] sm:$0xff] 0.0
  %138 = vst [vmem:[#allocation3 + $0x1e0] sm:$0xff] 0.0
  %139 = vst [vmem:[#allocation3 + $0x1e8] sm:$0xff] 0.0
  %140 = vst [vmem:[#allocation3 + $0x1f0] sm:$0xff] 0.0
  %141 = vst [vmem:[#allocation3 + $0x1f8] sm:$0xff] 0.0
  %142 = vst [vmem:[#allocation3 + $0x200] sm:$0xff] 0.0
  %143 = vst [vmem:[#allocation3 + $0x208] sm:$0xff] 0.0
  %144 = vst [vmem:[#allocation3 + $0x210] sm:$0xff] 0.0
  %145 = vst [vmem:[#allocation3 + $0x218] sm:$0xff] 0.0
  %146 = vst [vmem:[#allocation3 + $0x220] sm:$0xff] 0.0
  %147 = vst [vmem:[#allocation3 + $0x228] sm:$0xff] 0.0
  %148 = vst [vmem:[#allocation3 + $0x230] sm:$0xff] 0.0
  %149 = vst [vmem:[#allocation3 + $0x238] sm:$0xff] 0.0
  %v150 = vld [vmem:[%s0] sm:$0xff]
  %v151 = vld [vmem:[%s0 + $0x8] sm:$0xff]
  %v152 = vld [vmem:[%s0 + $0x10] sm:$0xff]
  %v153 = vld [vmem:[%s0 + $0x18] sm:$0xff]
  %v154 = vld [vmem:[%s0 + $0x20] sm:$0xff]
  %v155 = vld [vmem:[%s0 + $0x28] sm:$0xff]
  %v156 = vld [vmem:[%s0 + $0x30] sm:$0xff]
  %v157 = vld [vmem:[%s0 + $0x38] sm:$0xff]
  %v158 = vld [vmem:[%s0 + $0x40] sm:$0xff]
  %v159 = vld [vmem:[%s0 + $0x48] sm:$0xff]
  %v160 = vld [vmem:[%s0 + $0x50] sm:$0xff]
  %v161 = vld [vmem:[%s0 + $0x58] sm:$0xff]
  %v162 = vld [vmem:[%s0 + $0x60] sm:$0xff]
  %v163 = vld [vmem:[%s0 + $0x68] sm:$0xff]
  %v164 = vld [vmem:[%s0 + $0x70] sm:$0xff]
  %v165 = vld [vmem:[%s0 + $0x78] sm:$0xff]
  %v166 = vld [vmem:[%s0 + $0x80] sm:$0xff]
  %v167 = vld [vmem:[%s0 + $0x88] sm:$0xff]
  %v168 = vld [vmem:[%s0 + $0x90] sm:$0xff]
  %v169 = vld [vmem:[%s0 + $0x98] sm:$0xff]
  %v170 = vld [vmem:[%s0 + $0xa0] sm:$0xff]
  %v171 = vld [vmem:[%s0 + $0xa8] sm:$0xff]
  %v172 = vld [vmem:[%s0 + $0xb0] sm:$0xff]
  %v173 = vld [vmem:[%s0 + $0xb8] sm:$0xff]
  %v174 = vld [vmem:[%s0 + $0xc0] sm:$0xff]
  %v175 = vld [vmem:[%s0 + $0xc8] sm:$0xff]
  %v176 = vld [vmem:[%s0 + $0xd0] sm:$0xff]
  %v177 = vld [vmem:[%s0 + $0xd8] sm:$0xff]
  %v178 = vld [vmem:[%s0 + $0xe0] sm:$0xff]
  %v179 = vld [vmem:[%s0 + $0xe8] sm:$0xff]
  %v180 = vld [vmem:[%s0 + $0xf0] sm:$0xff]
  %v181 = vld [vmem:[%s0 + $0xf8] sm:$0xff]
  %182 = vst [vmem:[#allocation2 + $0x8] sm:$0xff] %v150
  %vm183 = vcmask 556032
  %184 = vst.msk [vmem:[#allocation2 + $0x10] sm:$0xff] %vm183, %v151
  %185 = vst [vmem:[#allocation2 + $0x20] sm:$0xff] %v152
  %186 = vst.msk [vmem:[#allocation2 + $0x28] sm:$0xff] %vm183, %v153
  %187 = vst [vmem:[#allocation2 + $0x38] sm:$0xff] %v154
  %188 = vst.msk [vmem:[#allocation2 + $0x40] sm:$0xff] %vm183, %v155
  %189 = vst [vmem:[#allocation2 + $0x50] sm:$0xff] %v156
  %190 = vst.msk [vmem:[#allocation2 + $0x58] sm:$0xff] %vm183, %v157
  %191 = vst [vmem:[#allocation2 + $0x68] sm:$0xff] %v158
  %192 = vst.msk [vmem:[#allocation2 + $0x70] sm:$0xff] %vm183, %v159
  %193 = vst [vmem:[#allocation2 + $0x80] sm:$0xff] %v160
  %194 = vst.msk [vmem:[#allocation2 + $0x88] sm:$0xff] %vm183, %v161
  %195 = vst [vmem:[#allocation2 + $0x98] sm:$0xff] %v162
  %196 = vst.msk [vmem:[#allocation2 + $0xa0] sm:$0xff] %vm183, %v163
  %197 = vst [vmem:[#allocation2 + $0xb0] sm:$0xff] %v164
  %198 = vst.msk [vmem:[#allocation2 + $0xb8] sm:$0xff] %vm183, %v165
  %199 = vst [vmem:[#allocation2 + $0xc8] sm:$0xff] %v166
  %200 = vst.msk [vmem:[#allocation2 + $0xd0] sm:$0xff] %vm183, %v167
  %201 = vst [vmem:[#allocation2 + $0xe0] sm:$0xff] %v168
  %202 = vst.msk [vmem:[#allocation2 + $0xe8] sm:$0xff] %vm183, %v169
  %203 = vst [vmem:[#allocation2 + $0xf8] sm:$0xff] %v170
  %204 = vst.msk [vmem:[#allocation2 + $0x100] sm:$0xff] %vm183, %v171
  %205 = vst [vmem:[#allocation2 + $0x110] sm:$0xff] %v172
  %206 = vst.msk [vmem:[#allocation2 + $0x118] sm:$0xff] %vm183, %v173
  %207 = vst [vmem:[#allocation2 + $0x128] sm:$0xff] %v174
  %208 = vst.msk [vmem:[#allocation2 + $0x130] sm:$0xff] %vm183, %v175
  %209 = vst [vmem:[#allocation2 + $0x140] sm:$0xff] %v176
  %210 = vst.msk [vmem:[#allocation2 + $0x148] sm:$0xff] %vm183, %v177
  %211 = vst [vmem:[#allocation2 + $0x158] sm:$0xff] %v178
  %212 = vst.msk [vmem:[#allocation2 + $0x160] sm:$0xff] %vm183, %v179
  %213 = vst [vmem:[#allocation2 + $0x170] sm:$0xff] %v180
  %214 = vst.msk [vmem:[#allocation2 + $0x178] sm:$0xff] %vm183, %v181
  %v215 = vld [vmem:[#allocation2] sm:$0xff]
  %v216 = vld [vmem:[#allocation2 + $0x8] sm:$0xff]
  %v217 = vld [vmem:[#allocation2 + $0x10] sm:$0xff]
  %v218 = vld [vmem:[#allocation2 + $0x18] sm:$0xff]
  %v219 = vld [vmem:[#allocation2 + $0x20] sm:$0xff]
  %v220 = vld [vmem:[#allocation2 + $0x28] sm:$0xff]
  %v221 = vld [vmem:[#allocation2 + $0x30] sm:$0xff]
  %v222 = vld [vmem:[#allocation2 + $0x38] sm:$0xff]
  %v223 = vld [vmem:[#allocation2 + $0x40] sm:$0xff]
  %v224 = vld [vmem:[#allocation2 + $0x48] sm:$0xff]
  %v225 = vld [vmem:[#allocation2 + $0x50] sm:$0xff]
  %v226 = vld [vmem:[#allocation2 + $0x58] sm:$0xff]
  %v227 = vld [vmem:[#allocation2 + $0x60] sm:$0xff]
  %v228 = vld [vmem:[#allocation2 + $0x68] sm:$0xff]
  %v229 = vld [vmem:[#allocation2 + $0x70] sm:$0xff]
  %v230 = vld [vmem:[#allocation2 + $0x78] sm:$0xff]
  %v231 = vld [vmem:[#allocation2 + $0x80] sm:$0xff]
  %v232 = vld [vmem:[#allocation2 + $0x88] sm:$0xff]
  %v233 = vld [vmem:[#allocation2 + $0x90] sm:$0xff]
  %v234 = vld [vmem:[#allocation2 + $0x98] sm:$0xff]
  %v235 = vld [vmem:[#allocation2 + $0xa0] sm:$0xff]
  %v236 = vld [vmem:[#allocation2 + $0xa8] sm:$0xff]
  %v237 = vld [vmem:[#allocation2 + $0xb0] sm:$0xff]
  %v238 = vld [vmem:[#allocation2 + $0xb8] sm:$0xff]
  %vm239 = vcmp.ge.s32.totalorder %v14, 2
  %vm240 = vcmp.ge.s32.totalorder %v15, 2
  %vm241 = vcmp.ge.s32.totalorder %v16, 2
  %vm242 = vcmp.ge.s32.totalorder %v17, 2
  %vm243 = vcmp.ge.s32.totalorder %v18, 2
  %vm244 = vcmp.ge.s32.totalorder %v19, 2
  %vm245 = vcmp.ge.s32.totalorder %v20, 2
  %vm246 = vcmp.ge.s32.totalorder %v21, 2
  %vm247 = vcmp.ge.s32.totalorder %v22, 2
  %vm248 = vcmp.ge.s32.totalorder %v23, 2
  %vm249 = vcmp.ge.s32.totalorder %v24, 2
  %vm250 = vcmp.ge.s32.totalorder %v25, 2
  %vm251 = vcmp.ge.s32.totalorder %v26, 2
  %vm252 = vcmp.ge.s32.totalorder %v27, 2
  %vm253 = vcmp.ge.s32.totalorder %v28, 2
  %vm254 = vcmp.ge.s32.totalorder %v29, 2
  %279 = vrot.lane.b32.xlu0 %v215, 2
  %v280 = vpop.permute.xlu0 %279
  %281 = vrot.lane.b32.xlu0 %v216, 2
  %v282 = vpop.permute.xlu0 %281
  %283 = vrot.lane.b32.xlu0 %v217, 2
  %v284 = vpop.permute.xlu0 %283
  %285 = vrot.lane.b32.xlu0 %v218, 2
  %v286 = vpop.permute.xlu0 %285
  %287 = vrot.lane.b32.xlu0 %v219, 2
  %v288 = vpop.permute.xlu0 %287
  %289 = vrot.lane.b32.xlu0 %v220, 2
  %v290 = vpop.permute.xlu0 %289
  %291 = vrot.lane.b32.xlu0 %v221, 2
  %v292 = vpop.permute.xlu0 %291
  %293 = vrot.lane.b32.xlu0 %v222, 2
  %v294 = vpop.permute.xlu0 %293
  %295 = vrot.lane.b32.xlu0 %v223, 2
  %v296 = vpop.permute.xlu0 %295
  %297 = vrot.lane.b32.xlu0 %v224, 2
  %v298 = vpop.permute.xlu0 %297
  %299 = vrot.lane.b32.xlu0 %v225, 2
  %v300 = vpop.permute.xlu0 %299
  %301 = vrot.lane.b32.xlu0 %v226, 2
  %v302 = vpop.permute.xlu0 %301
  %303 = vrot.lane.b32.xlu0 %v227, 2
  %v304 = vpop.permute.xlu0 %303
  %305 = vrot.lane.b32.xlu0 %v228, 2
  %v306 = vpop.permute.xlu0 %305
  %307 = vrot.lane.b32.xlu0 %v229, 2
  %v308 = vpop.permute.xlu0 %307
  %309 = vrot.lane.b32.xlu0 %v230, 2
  %v310 = vpop.permute.xlu0 %309
  %311 = vrot.lane.b32.xlu0 %v231, 2
  %v312 = vpop.permute.xlu0 %311
  %313 = vrot.lane.b32.xlu0 %v232, 2
  %v314 = vpop.permute.xlu0 %313
  %315 = vrot.lane.b32.xlu0 %v233, 2
  %v316 = vpop.permute.xlu0 %315
  %317 = vrot.lane.b32.xlu0 %v234, 2
  %v318 = vpop.permute.xlu0 %317
  %319 = vrot.lane.b32.xlu0 %v235, 2
  %v320 = vpop.permute.xlu0 %319
  %321 = vrot.lane.b32.xlu0 %v236, 2
  %v322 = vpop.permute.xlu0 %321
  %323 = vrot.lane.b32.xlu0 %v237, 2
  %v324 = vpop.permute.xlu0 %323
  %325 = vrot.lane.b32.xlu0 %v238, 2
  %v326 = vpop.permute.xlu0 %325
  %vm327 = vcmask 15360
  %v328 = vsel %vm327, %v280, %v282
  %v329 = vsel %vm327, %v282, %v284
  %v330 = vsel %vm327, %v286, %v288
  %v331 = vsel %vm327, %v288, %v290
  %v332 = vsel %vm327, %v292, %v294
  %v333 = vsel %vm327, %v294, %v296
  %v334 = vsel %vm327, %v298, %v300
  %v335 = vsel %vm327, %v300, %v302
  %v336 = vsel %vm327, %v304, %v306
  %v337 = vsel %vm327, %v306, %v308
  %v338 = vsel %vm327, %v310, %v312
  %v339 = vsel %vm327, %v312, %v314
  %v340 = vsel %vm327, %v316, %v318
  %v341 = vsel %vm327, %v318, %v320
  %v342 = vsel %vm327, %v322, %v324
  %v343 = vsel %vm327, %v324, %v326
  %360 = vrot.lane.b32.xlu0 %v216, 116
  %v361 = vpop.permute.xlu0 %360
  %362 = vrot.lane.b32.xlu0 %v217, 116
  %v363 = vpop.permute.xlu0 %362
  %364 = vrot.lane.b32.xlu0 %v219, 116
  %v365 = vpop.permute.xlu0 %364
  %366 = vrot.lane.b32.xlu0 %v220, 116
  %v367 = vpop.permute.xlu0 %366
  %368 = vrot.lane.b32.xlu0 %v222, 116
  %v369 = vpop.permute.xlu0 %368
  %370 = vrot.lane.b32.xlu0 %v223, 116
  %v371 = vpop.permute.xlu0 %370
  %372 = vrot.lane.b32.xlu0 %v225, 116
  %v373 = vpop.permute.xlu0 %372
  %374 = vrot.lane.b32.xlu0 %v226, 116
  %v375 = vpop.permute.xlu0 %374
  %376 = vrot.lane.b32.xlu0 %v228, 116
  %v377 = vpop.permute.xlu0 %376
  %378 = vrot.lane.b32.xlu0 %v229, 116
  %v379 = vpop.permute.xlu0 %378
  %380 = vrot.lane.b32.xlu0 %v231, 116
  %v381 = vpop.permute.xlu0 %380
  %382 = vrot.lane.b32.xlu0 %v232, 116
  %v383 = vpop.permute.xlu0 %382
  %384 = vrot.lane.b32.xlu0 %v234, 116
  %v385 = vpop.permute.xlu0 %384
  %386 = vrot.lane.b32.xlu0 %v235, 116
  %v387 = vpop.permute.xlu0 %386
  %388 = vrot.lane.b32.xlu0 %v237, 116
  %v389 = vpop.permute.xlu0 %388
  %390 = vrot.lane.b32.xlu0 %v238, 116
  %v391 = vpop.permute.xlu0 %390
  %vm392 = vcmask 949248
  %v393 = vsel %vm392, %v361, %v363
  %v394 = vsel %vm392, %v365, %v367
  %v395 = vsel %vm392, %v369, %v371
  %v396 = vsel %vm392, %v373, %v375
  %v397 = vsel %vm392, %v377, %v379
  %v398 = vsel %vm392, %v381, %v383
  %v399 = vsel %vm392, %v385, %v387
  %v400 = vsel %vm392, %v389, %v391
  %v417 = vsel %vm239, %v328, %v393
  %v418 = vsel %vm240, %v329, %v363
  %v419 = vsel %vm241, %v330, %v394
  %v420 = vsel %vm242, %v331, %v367
  %v421 = vsel %vm243, %v332, %v395
  %v422 = vsel %vm244, %v333, %v371
  %v423 = vsel %vm245, %v334, %v396
  %v424 = vsel %vm246, %v335, %v375
  %v425 = vsel %vm247, %v336, %v397
  %v426 = vsel %vm248, %v337, %v379
  %v427 = vsel %vm249, %v338, %v398
  %v428 = vsel %vm250, %v339, %v383
  %v429 = vsel %vm251, %v340, %v399
  %v430 = vsel %vm252, %v341, %v387
  %v431 = vsel %vm253, %v342, %v400
  %v432 = vsel %vm254, %v343, %v391
  %v433 = vld [vmem:[#allocation2 + $0xc0] sm:$0xff]
  %v434 = vld [vmem:[#allocation2 + $0xc8] sm:$0xff]
  %v435 = vld [vmem:[#allocation2 + $0xd0] sm:$0xff]
  %v436 = vld [vmem:[#allocation2 + $0xd8] sm:$0xff]
  %v437 = vld [vmem:[#allocation2 + $0xe0] sm:$0xff]
  %v438 = vld [vmem:[#allocation2 + $0xe8] sm:$0xff]
  %v439 = vld [vmem:[#allocation2 + $0xf0] sm:$0xff]
  %v440 = vld [vmem:[#allocation2 + $0xf8] sm:$0xff]
  %v441 = vld [vmem:[#allocation2 + $0x100] sm:$0xff]
  %v442 = vld [vmem:[#allocation2 + $0x108] sm:$0xff]
  %v443 = vld [vmem:[#allocation2 + $0x110] sm:$0xff]
  %v444 = vld [vmem:[#allocation2 + $0x118] sm:$0xff]
  %v445 = vld [vmem:[#allocation2 + $0x120] sm:$0xff]
  %v446 = vld [vmem:[#allocation2 + $0x128] sm:$0xff]
  %v447 = vld [vmem:[#allocation2 + $0x130] sm:$0xff]
  %v448 = vld [vmem:[#allocation2 + $0x138] sm:$0xff]
  %v449 = vld [vmem:[#allocation2 + $0x140] sm:$0xff]
  %v450 = vld [vmem:[#allocation2 + $0x148] sm:$0xff]
  %v451 = vld [vmem:[#allocation2 + $0x150] sm:$0xff]
  %v452 = vld [vmem:[#allocation2 + $0x158] sm:$0xff]
  %v453 = vld [vmem:[#allocation2 + $0x160] sm:$0xff]
  %v454 = vld [vmem:[#allocation2 + $0x168] sm:$0xff]
  %v455 = vld [vmem:[#allocation2 + $0x170] sm:$0xff]
  %v456 = vld [vmem:[#allocation2 + $0x178] sm:$0xff]
  %vm457 = vcmp.ge.s32.totalorder %v14, 3
  %vm458 = vcmp.ge.s32.totalorder %v15, 3
  %vm459 = vcmp.ge.s32.totalorder %v16, 3
  %vm460 = vcmp.ge.s32.totalorder %v17, 3
  %vm461 = vcmp.ge.s32.totalorder %v18, 3
  %vm462 = vcmp.ge.s32.totalorder %v19, 3
  %vm463 = vcmp.ge.s32.totalorder %v20, 3
  %vm464 = vcmp.ge.s32.totalorder %v21, 3
  %vm465 = vcmp.ge.s32.totalorder %v22, 3
  %vm466 = vcmp.ge.s32.totalorder %v23, 3
  %vm467 = vcmp.ge.s32.totalorder %v24, 3
  %vm468 = vcmp.ge.s32.totalorder %v25, 3
  %vm469 = vcmp.ge.s32.totalorder %v26, 3
  %vm470 = vcmp.ge.s32.totalorder %v27, 3
  %vm471 = vcmp.ge.s32.totalorder %v28, 3
  %vm472 = vcmp.ge.s32.totalorder %v29, 3
  %497 = vrot.lane.b32.xlu0 %v433, 3
  %v498 = vpop.permute.xlu0 %497
  %499 = vrot.lane.b32.xlu0 %v434, 3
  %v500 = vpop.permute.xlu0 %499
  %501 = vrot.lane.b32.xlu0 %v435, 3
  %v502 = vpop.permute.xlu0 %501
  %503 = vrot.lane.b32.xlu0 %v436, 3
  %v504 = vpop.permute.xlu0 %503
  %505 = vrot.lane.b32.xlu0 %v437, 3
  %v506 = vpop.permute.xlu0 %505
  %507 = vrot.lane.b32.xlu0 %v438, 3
  %v508 = vpop.permute.xlu0 %507
  %509 = vrot.lane.b32.xlu0 %v439, 3
  %v510 = vpop.permute.xlu0 %509
  %511 = vrot.lane.b32.xlu0 %v440, 3
  %v512 = vpop.permute.xlu0 %511
  %513 = vrot.lane.b32.xlu0 %v441, 3
  %v514 = vpop.permute.xlu0 %513
  %515 = vrot.lane.b32.xlu0 %v442, 3
  %v516 = vpop.permute.xlu0 %515
  %517 = vrot.lane.b32.xlu0 %v443, 3
  %v518 = vpop.permute.xlu0 %517
  %519 = vrot.lane.b32.xlu0 %v444, 3
  %v520 = vpop.permute.xlu0 %519
  %521 = vrot.lane.b32.xlu0 %v445, 3
  %v522 = vpop.permute.xlu0 %521
  %523 = vrot.lane.b32.xlu0 %v446, 3
  %v524 = vpop.permute.xlu0 %523
  %525 = vrot.lane.b32.xlu0 %v447, 3
  %v526 = vpop.permute.xlu0 %525
  %527 = vrot.lane.b32.xlu0 %v448, 3
  %v528 = vpop.permute.xlu0 %527
  %529 = vrot.lane.b32.xlu0 %v449, 3
  %v530 = vpop.permute.xlu0 %529
  %531 = vrot.lane.b32.xlu0 %v450, 3
  %v532 = vpop.permute.xlu0 %531
  %533 = vrot.lane.b32.xlu0 %v451, 3
  %v534 = vpop.permute.xlu0 %533
  %535 = vrot.lane.b32.xlu0 %v452, 3
  %v536 = vpop.permute.xlu0 %535
  %537 = vrot.lane.b32.xlu0 %v453, 3
  %v538 = vpop.permute.xlu0 %537
  %539 = vrot.lane.b32.xlu0 %v454, 3
  %v540 = vpop.permute.xlu0 %539
  %541 = vrot.lane.b32.xlu0 %v455, 3
  %v542 = vpop.permute.xlu0 %541
  %543 = vrot.lane.b32.xlu0 %v456, 3
  %v544 = vpop.permute.xlu0 %543
  %vm545 = vcmask 23552
  %v546 = vsel %vm545, %v498, %v500
  %v547 = vsel %vm545, %v500, %v502
  %v548 = vsel %vm545, %v504, %v506
  %v549 = vsel %vm545, %v506, %v508
  %v550 = vsel %vm545, %v510, %v512
  %v551 = vsel %vm545, %v512, %v514
  %v552 = vsel %vm545, %v516, %v518
  %v553 = vsel %vm545, %v518, %v520
  %v554 = vsel %vm545, %v522, %v524
  %v555 = vsel %vm545, %v524, %v526
  %v556 = vsel %vm545, %v528, %v530
  %v557 = vsel %vm545, %v530, %v532
  %v558 = vsel %vm545, %v534, %v536
  %v559 = vsel %vm545, %v536, %v538
  %v560 = vsel %vm545, %v540, %v542
  %v561 = vsel %vm545, %v542, %v544
  %578 = vrot.lane.b32.xlu0 %v434, 117
  %v579 = vpop.permute.xlu0 %578
  %580 = vrot.lane.b32.xlu0 %v435, 117
  %v581 = vpop.permute.xlu0 %580
  %582 = vrot.lane.b32.xlu0 %v437, 117
  %v583 = vpop.permute.xlu0 %582
  %584 = vrot.lane.b32.xlu0 %v438, 117
  %v585 = vpop.permute.xlu0 %584
  %586 = vrot.lane.b32.xlu0 %v440, 117
  %v587 = vpop.permute.xlu0 %586
  %588 = vrot.lane.b32.xlu0 %v441, 117
  %v589 = vpop.permute.xlu0 %588
  %590 = vrot.lane.b32.xlu0 %v443, 117
  %v591 = vpop.permute.xlu0 %590
  %592 = vrot.lane.b32.xlu0 %v444, 117
  %v593 = vpop.permute.xlu0 %592
  %594 = vrot.lane.b32.xlu0 %v446, 117
  %v595 = vpop.permute.xlu0 %594
  %596 = vrot.lane.b32.xlu0 %v447, 117
  %v597 = vpop.permute.xlu0 %596
  %598 = vrot.lane.b32.xlu0 %v449, 117
  %v599 = vpop.permute.xlu0 %598
  %600 = vrot.lane.b32.xlu0 %v450, 117
  %v601 = vpop.permute.xlu0 %600
  %602 = vrot.lane.b32.xlu0 %v452, 117
  %v603 = vpop.permute.xlu0 %602
  %604 = vrot.lane.b32.xlu0 %v453, 117
  %v605 = vpop.permute.xlu0 %604
  %606 = vrot.lane.b32.xlu0 %v455, 117
  %v607 = vpop.permute.xlu0 %606
  %608 = vrot.lane.b32.xlu0 %v456, 117
  %v609 = vpop.permute.xlu0 %608
  %vm610 = vcmask 957440
  %v611 = vsel %vm610, %v579, %v581
  %v612 = vsel %vm610, %v583, %v585
  %v613 = vsel %vm610, %v587, %v589
  %v614 = vsel %vm610, %v591, %v593
  %v615 = vsel %vm610, %v595, %v597
  %v616 = vsel %vm610, %v599, %v601
  %v617 = vsel %vm610, %v603, %v605
  %v618 = vsel %vm610, %v607, %v609
  %v635 = vsel %vm457, %v546, %v611
  %v636 = vsel %vm458, %v547, %v581
  %v637 = vsel %vm459, %v548, %v612
  %v638 = vsel %vm460, %v549, %v585
  %v639 = vsel %vm461, %v550, %v613
  %v640 = vsel %vm462, %v551, %v589
  %v641 = vsel %vm463, %v552, %v614
  %v642 = vsel %vm464, %v553, %v593
  %v643 = vsel %vm465, %v554, %v615
  %v644 = vsel %vm466, %v555, %v597
  %v645 = vsel %vm467, %v556, %v616
  %v646 = vsel %vm468, %v557, %v601
  %v647 = vsel %vm469, %v558, %v617
  %v648 = vsel %vm470, %v559, %v605
  %v649 = vsel %vm471, %v560, %v618
  %v650 = vsel %vm472, %v561, %v609
  %vm651 = vcmp.ne.s32.totalorder %v14, 1
  %vm652 = vcmp.ne.s32.totalorder %v15, 1
  %vm653 = vcmp.ne.s32.totalorder %v16, 1
  %vm654 = vcmp.ne.s32.totalorder %v17, 1
  %vm655 = vcmp.ne.s32.totalorder %v18, 1
  %vm656 = vcmp.ne.s32.totalorder %v19, 1
  %vm657 = vcmp.ne.s32.totalorder %v20, 1
  %vm658 = vcmp.ne.s32.totalorder %v21, 1
  %vm659 = vcmp.ne.s32.totalorder %v22, 1
  %vm660 = vcmp.ne.s32.totalorder %v23, 1
  %vm661 = vcmp.ne.s32.totalorder %v24, 1
  %vm662 = vcmp.ne.s32.totalorder %v25, 1
  %vm663 = vcmp.ne.s32.totalorder %v26, 1
  %vm664 = vcmp.ne.s32.totalorder %v27, 1
  %vm665 = vcmp.ne.s32.totalorder %v28, 1
  %vm666 = vcmp.ne.s32.totalorder %v29, 1
  %vm667 = vcmp.ge.s32.totalorder %v14, 1
  %vm668 = vcmp.ge.s32.totalorder %v15, 1
  %vm669 = vcmp.ge.s32.totalorder %v16, 1
  %vm670 = vcmp.ge.s32.totalorder %v17, 1
  %vm671 = vcmp.ge.s32.totalorder %v18, 1
  %vm672 = vcmp.ge.s32.totalorder %v19, 1
  %vm673 = vcmp.ge.s32.totalorder %v20, 1
  %vm674 = vcmp.ge.s32.totalorder %v21, 1
  %vm675 = vcmp.ge.s32.totalorder %v22, 1
  %vm676 = vcmp.ge.s32.totalorder %v23, 1
  %vm677 = vcmp.ge.s32.totalorder %v24, 1
  %vm678 = vcmp.ge.s32.totalorder %v25, 1
  %vm679 = vcmp.ge.s32.totalorder %v26, 1
  %vm680 = vcmp.ge.s32.totalorder %v27, 1
  %vm681 = vcmp.ge.s32.totalorder %v28, 1
  %vm682 = vcmp.ge.s32.totalorder %v29, 1
  %v683 = vsel %vm667, %v417, 0.0
  %v684 = vsel %vm668, %v418, 0.0
  %v685 = vsel %vm669, %v419, 0.0
  %v686 = vsel %vm670, %v420, 0.0
  %v687 = vsel %vm671, %v421, 0.0
  %v688 = vsel %vm672, %v422, 0.0
  %v689 = vsel %vm673, %v423, 0.0
  %v690 = vsel %vm674, %v424, 0.0
  %v691 = vsel %vm675, %v425, 0.0
  %v692 = vsel %vm676, %v426, 0.0
  %v693 = vsel %vm677, %v427, 0.0
  %v694 = vsel %vm678, %v428, 0.0
  %v695 = vsel %vm679, %v429, 0.0
  %v696 = vsel %vm680, %v430, 0.0
  %v697 = vsel %vm681, %v431, 0.0
  %v698 = vsel %vm682, %v432, 0.0
  %v699 = vsel %vm651, %v635, 0.0
  %v700 = vsel %vm652, %v636, 0.0
  %v701 = vsel %vm653, %v637, 0.0
  %v702 = vsel %vm654, %v638, 0.0
  %v703 = vsel %vm655, %v639, 0.0
  %v704 = vsel %vm656, %v640, 0.0
  %v705 = vsel %vm657, %v641, 0.0
  %v706 = vsel %vm658, %v642, 0.0
  %v707 = vsel %vm659, %v643, 0.0
  %v708 = vsel %vm660, %v644, 0.0
  %v709 = vsel %vm661, %v645, 0.0
  %v710 = vsel %vm662, %v646, 0.0
  %v711 = vsel %vm663, %v647, 0.0
  %v712 = vsel %vm664, %v648, 0.0
  %v713 = vsel %vm665, %v649, 0.0
  %v714 = vsel %vm666, %v650, 0.0
  %v715 = vadd.f32 %v683, %v699
  %v716 = vadd.f32 %v684, %v700
  %v717 = vadd.f32 %v685, %v701
  %v718 = vadd.f32 %v686, %v702
  %v719 = vadd.f32 %v687, %v703
  %v720 = vadd.f32 %v688, %v704
  %v721 = vadd.f32 %v689, %v705
  %v722 = vadd.f32 %v690, %v706
  %v723 = vadd.f32 %v691, %v707
  %v724 = vadd.f32 %v692, %v708
  %v725 = vadd.f32 %v693, %v709
  %v726 = vadd.f32 %v694, %v710
  %v727 = vadd.f32 %v695, %v711
  %v728 = vadd.f32 %v696, %v712
  %v729 = vadd.f32 %v697, %v713
  %v730 = vadd.f32 %v698, %v714
  %731 = vst [vmem:[#allocation3 + $0x8] sm:$0xff] %v715
  %732 = vst.msk [vmem:[#allocation3 + $0x10] sm:$0xff] %vm183, %v716
  %733 = vst [vmem:[#allocation3 + $0x20] sm:$0xff] %v717
  %734 = vst.msk [vmem:[#allocation3 + $0x28] sm:$0xff] %vm183, %v718
  %735 = vst [vmem:[#allocation3 + $0x38] sm:$0xff] %v719
  %736 = vst.msk [vmem:[#allocation3 + $0x40] sm:$0xff] %vm183, %v720
  %737 = vst [vmem:[#allocation3 + $0x50] sm:$0xff] %v721
  %738 = vst.msk [vmem:[#allocation3 + $0x58] sm:$0xff] %vm183, %v722
  %739 = vst [vmem:[#allocation3 + $0x68] sm:$0xff] %v723
  %740 = vst.msk [vmem:[#allocation3 + $0x70] sm:$0xff] %vm183, %v724
  %741 = vst [vmem:[#allocation3 + $0x80] sm:$0xff] %v725
  %742 = vst.msk [vmem:[#allocation3 + $0x88] sm:$0xff] %vm183, %v726
  %743 = vst [vmem:[#allocation3 + $0x98] sm:$0xff] %v727
  %744 = vst.msk [vmem:[#allocation3 + $0xa0] sm:$0xff] %vm183, %v728
  %745 = vst [vmem:[#allocation3 + $0xb0] sm:$0xff] %v729
  %746 = vst.msk [vmem:[#allocation3 + $0xb8] sm:$0xff] %vm183, %v730
  %v747 = vld [vmem:[#allocation2] sm:$0xff]
  %v748 = vld [vmem:[#allocation2 + $0x8] sm:$0xff]
  %v749 = vld [vmem:[#allocation2 + $0x10] sm:$0xff]
  %v750 = vld [vmem:[#allocation2 + $0x18] sm:$0xff]
  %v751 = vld [vmem:[#allocation2 + $0x20] sm:$0xff]
  %v752 = vld [vmem:[#allocation2 + $0x28] sm:$0xff]
  %v753 = vld [vmem:[#allocation2 + $0x30] sm:$0xff]
  %v754 = vld [vmem:[#allocation2 + $0x38] sm:$0xff]
  %v755 = vld [vmem:[#allocation2 + $0x40] sm:$0xff]
  %v756 = vld [vmem:[#allocation2 + $0x48] sm:$0xff]
  %v757 = vld [vmem:[#allocation2 + $0x50] sm:$0xff]
  %v758 = vld [vmem:[#allocation2 + $0x58] sm:$0xff]
  %v759 = vld [vmem:[#allocation2 + $0x60] sm:$0xff]
  %v760 = vld [vmem:[#allocation2 + $0x68] sm:$0xff]
  %v761 = vld [vmem:[#allocation2 + $0x70] sm:$0xff]
  %v762 = vld [vmem:[#allocation2 + $0x78] sm:$0xff]
  %v763 = vld [vmem:[#allocation2 + $0x80] sm:$0xff]
  %v764 = vld [vmem:[#allocation2 + $0x88] sm:$0xff]
  %v765 = vld [vmem:[#allocation2 + $0x90] sm:$0xff]
  %v766 = vld [vmem:[#allocation2 + $0x98] sm:$0xff]
  %v767 = vld [vmem:[#allocation2 + $0xa0] sm:$0xff]
  %v768 = vld [vmem:[#allocation2 + $0xa8] sm:$0xff]
  %v769 = vld [vmem:[#allocation2 + $0xb0] sm:$0xff]
  %v770 = vld [vmem:[#allocation2 + $0xb8] sm:$0xff]
  %795 = vrot.lane.b32.xlu0 %v747, 1
  %v796 = vpop.permute.xlu0 %795
  %797 = vrot.lane.b32.xlu0 %v748, 1
  %v798 = vpop.permute.xlu0 %797
  %799 = vrot.lane.b32.xlu0 %v749, 1
  %v800 = vpop.permute.xlu0 %799
  %801 = vrot.lane.b32.xlu0 %v750, 1
  %v802 = vpop.permute.xlu0 %801
  %803 = vrot.lane.b32.xlu0 %v751, 1
  %v804 = vpop.permute.xlu0 %803
  %805 = vrot.lane.b32.xlu0 %v752, 1
  %v806 = vpop.permute.xlu0 %805
  %807 = vrot.lane.b32.xlu0 %v753, 1
  %v808 = vpop.permute.xlu0 %807
  %809 = vrot.lane.b32.xlu0 %v754, 1
  %v810 = vpop.permute.xlu0 %809
  %811 = vrot.lane.b32.xlu0 %v755, 1
  %v812 = vpop.permute.xlu0 %811
  %813 = vrot.lane.b32.xlu0 %v756, 1
  %v814 = vpop.permute.xlu0 %813
  %815 = vrot.lane.b32.xlu0 %v757, 1
  %v816 = vpop.permute.xlu0 %815
  %817 = vrot.lane.b32.xlu0 %v758, 1
  %v818 = vpop.permute.xlu0 %817
  %819 = vrot.lane.b32.xlu0 %v759, 1
  %v820 = vpop.permute.xlu0 %819
  %821 = vrot.lane.b32.xlu0 %v760, 1
  %v822 = vpop.permute.xlu0 %821
  %823 = vrot.lane.b32.xlu0 %v761, 1
  %v824 = vpop.permute.xlu0 %823
  %825 = vrot.lane.b32.xlu0 %v762, 1
  %v826 = vpop.permute.xlu0 %825
  %827 = vrot.lane.b32.xlu0 %v763, 1
  %v828 = vpop.permute.xlu0 %827
  %829 = vrot.lane.b32.xlu0 %v764, 1
  %v830 = vpop.permute.xlu0 %829
  %831 = vrot.lane.b32.xlu0 %v765, 1
  %v832 = vpop.permute.xlu0 %831
  %833 = vrot.lane.b32.xlu0 %v766, 1
  %v834 = vpop.permute.xlu0 %833
  %835 = vrot.lane.b32.xlu0 %v767, 1
  %v836 = vpop.permute.xlu0 %835
  %837 = vrot.lane.b32.xlu0 %v768, 1
  %v838 = vpop.permute.xlu0 %837
  %839 = vrot.lane.b32.xlu0 %v769, 1
  %v840 = vpop.permute.xlu0 %839
  %841 = vrot.lane.b32.xlu0 %v770, 1
  %v842 = vpop.permute.xlu0 %841
  %vm843 = vcmask 7168
  %v844 = vsel %vm843, %v796, %v798
  %v845 = vsel %vm843, %v798, %v800
  %v846 = vsel %vm843, %v802, %v804
  %v847 = vsel %vm843, %v804, %v806
  %v848 = vsel %vm843, %v808, %v810
  %v849 = vsel %vm843, %v810, %v812
  %v850 = vsel %vm843, %v814, %v816
  %v851 = vsel %vm843, %v816, %v818
  %v852 = vsel %vm843, %v820, %v822
  %v853 = vsel %vm843, %v822, %v824
  %v854 = vsel %vm843, %v826, %v828
  %v855 = vsel %vm843, %v828, %v830
  %v856 = vsel %vm843, %v832, %v834
  %v857 = vsel %vm843, %v834, %v836
  %v858 = vsel %vm843, %v838, %v840
  %v859 = vsel %vm843, %v840, %v842
  %876 = vrot.lane.b32.xlu0 %v748, 115
  %v877 = vpop.permute.xlu0 %876
  %878 = vrot.lane.b32.xlu0 %v749, 115
  %v879 = vpop.permute.xlu0 %878
  %880 = vrot.lane.b32.xlu0 %v751, 115
  %v881 = vpop.permute.xlu0 %880
  %882 = vrot.lane.b32.xlu0 %v752, 115
  %v883 = vpop.permute.xlu0 %882
  %884 = vrot.lane.b32.xlu0 %v754, 115
  %v885 = vpop.permute.xlu0 %884
  %886 = vrot.lane.b32.xlu0 %v755, 115
  %v887 = vpop.permute.xlu0 %886
  %888 = vrot.lane.b32.xlu0 %v757, 115
  %v889 = vpop.permute.xlu0 %888
  %890 = vrot.lane.b32.xlu0 %v758, 115
  %v891 = vpop.permute.xlu0 %890
  %892 = vrot.lane.b32.xlu0 %v760, 115
  %v893 = vpop.permute.xlu0 %892
  %894 = vrot.lane.b32.xlu0 %v761, 115
  %v895 = vpop.permute.xlu0 %894
  %896 = vrot.lane.b32.xlu0 %v763, 115
  %v897 = vpop.permute.xlu0 %896
  %898 = vrot.lane.b32.xlu0 %v764, 115
  %v899 = vpop.permute.xlu0 %898
  %900 = vrot.lane.b32.xlu0 %v766, 115
  %v901 = vpop.permute.xlu0 %900
  %902 = vrot.lane.b32.xlu0 %v767, 115
  %v903 = vpop.permute.xlu0 %902
  %904 = vrot.lane.b32.xlu0 %v769, 115
  %v905 = vpop.permute.xlu0 %904
  %906 = vrot.lane.b32.xlu0 %v770, 115
  %v907 = vpop.permute.xlu0 %906
  %vm908 = vcmask 941056
  %v909 = vsel %vm908, %v877, %v879
  %v910 = vsel %vm908, %v881, %v883
  %v911 = vsel %vm908, %v885, %v887
  %v912 = vsel %vm908, %v889, %v891
  %v913 = vsel %vm908, %v893, %v895
  %v914 = vsel %vm908, %v897, %v899
  %v915 = vsel %vm908, %v901, %v903
  %v916 = vsel %vm908, %v905, %v907
  %v933 = vsel %vm667, %v844, %v909
  %v934 = vsel %vm668, %v845, %v879
  %v935 = vsel %vm669, %v846, %v910
  %v936 = vsel %vm670, %v847, %v883
  %v937 = vsel %vm671, %v848, %v911
  %v938 = vsel %vm672, %v849, %v887
  %v939 = vsel %vm673, %v850, %v912
  %v940 = vsel %vm674, %v851, %v891
  %v941 = vsel %vm675, %v852, %v913
  %v942 = vsel %vm676, %v853, %v895
  %v943 = vsel %vm677, %v854, %v914
  %v944 = vsel %vm678, %v855, %v899
  %v945 = vsel %vm679, %v856, %v915
  %v946 = vsel %vm680, %v857, %v903
  %v947 = vsel %vm681, %v858, %v916
  %v948 = vsel %vm682, %v859, %v907
  %v949 = vld [vmem:[#allocation2 + $0xc0] sm:$0xff]
  %v950 = vld [vmem:[#allocation2 + $0xc8] sm:$0xff]
  %v951 = vld [vmem:[#allocation2 + $0xd0] sm:$0xff]
  %v952 = vld [vmem:[#allocation2 + $0xd8] sm:$0xff]
  %v953 = vld [vmem:[#allocation2 + $0xe0] sm:$0xff]
  %v954 = vld [vmem:[#allocation2 + $0xe8] sm:$0xff]
  %v955 = vld [vmem:[#allocation2 + $0xf0] sm:$0xff]
  %v956 = vld [vmem:[#allocation2 + $0xf8] sm:$0xff]
  %v957 = vld [vmem:[#allocation2 + $0x100] sm:$0xff]
  %v958 = vld [vmem:[#allocation2 + $0x108] sm:$0xff]
  %v959 = vld [vmem:[#allocation2 + $0x110] sm:$0xff]
  %v960 = vld [vmem:[#allocation2 + $0x118] sm:$0xff]
  %v961 = vld [vmem:[#allocation2 + $0x120] sm:$0xff]
  %v962 = vld [vmem:[#allocation2 + $0x128] sm:$0xff]
  %v963 = vld [vmem:[#allocation2 + $0x130] sm:$0xff]
  %v964 = vld [vmem:[#allocation2 + $0x138] sm:$0xff]
  %v965 = vld [vmem:[#allocation2 + $0x140] sm:$0xff]
  %v966 = vld [vmem:[#allocation2 + $0x148] sm:$0xff]
  %v967 = vld [vmem:[#allocation2 + $0x150] sm:$0xff]
  %v968 = vld [vmem:[#allocation2 + $0x158] sm:$0xff]
  %v969 = vld [vmem:[#allocation2 + $0x160] sm:$0xff]
  %v970 = vld [vmem:[#allocation2 + $0x168] sm:$0xff]
  %v971 = vld [vmem:[#allocation2 + $0x170] sm:$0xff]
  %v972 = vld [vmem:[#allocation2 + $0x178] sm:$0xff]
  %997 = vrot.lane.b32.xlu0 %v949, 2
  %v998 = vpop.permute.xlu0 %997
  %999 = vrot.lane.b32.xlu0 %v950, 2
  %v1000 = vpop.permute.xlu0 %999
  %1001 = vrot.lane.b32.xlu0 %v951, 2
  %v1002 = vpop.permute.xlu0 %1001
  %1003 = vrot.lane.b32.xlu0 %v952, 2
  %v1004 = vpop.permute.xlu0 %1003
  %1005 = vrot.lane.b32.xlu0 %v953, 2
  %v1006 = vpop.permute.xlu0 %1005
  %1007 = vrot.lane.b32.xlu0 %v954, 2
  %v1008 = vpop.permute.xlu0 %1007
  %1009 = vrot.lane.b32.xlu0 %v955, 2
  %v1010 = vpop.permute.xlu0 %1009
  %1011 = vrot.lane.b32.xlu0 %v956, 2
  %v1012 = vpop.permute.xlu0 %1011
  %1013 = vrot.lane.b32.xlu0 %v957, 2
  %v1014 = vpop.permute.xlu0 %1013
  %1015 = vrot.lane.b32.xlu0 %v958, 2
  %v1016 = vpop.permute.xlu0 %1015
  %1017 = vrot.lane.b32.xlu0 %v959, 2
  %v1018 = vpop.permute.xlu0 %1017
  %1019 = vrot.lane.b32.xlu0 %v960, 2
  %v1020 = vpop.permute.xlu0 %1019
  %1021 = vrot.lane.b32.xlu0 %v961, 2
  %v1022 = vpop.permute.xlu0 %1021
  %1023 = vrot.lane.b32.xlu0 %v962, 2
  %v1024 = vpop.permute.xlu0 %1023
  %1025 = vrot.lane.b32.xlu0 %v963, 2
  %v1026 = vpop.permute.xlu0 %1025
  %1027 = vrot.lane.b32.xlu0 %v964, 2
  %v1028 = vpop.permute.xlu0 %1027
  %1029 = vrot.lane.b32.xlu0 %v965, 2
  %v1030 = vpop.permute.xlu0 %1029
  %1031 = vrot.lane.b32.xlu0 %v966, 2
  %v1032 = vpop.permute.xlu0 %1031
  %1033 = vrot.lane.b32.xlu0 %v967, 2
  %v1034 = vpop.permute.xlu0 %1033
  %1035 = vrot.lane.b32.xlu0 %v968, 2
  %v1036 = vpop.permute.xlu0 %1035
  %1037 = vrot.lane.b32.xlu0 %v969, 2
  %v1038 = vpop.permute.xlu0 %1037
  %1039 = vrot.lane.b32.xlu0 %v970, 2
  %v1040 = vpop.permute.xlu0 %1039
  %1041 = vrot.lane.b32.xlu0 %v971, 2
  %v1042 = vpop.permute.xlu0 %1041
  %1043 = vrot.lane.b32.xlu0 %v972, 2
  %v1044 = vpop.permute.xlu0 %1043
  %v1045 = vsel %vm327, %v998, %v1000
  %v1046 = vsel %vm327, %v1000, %v1002
  %v1047 = vsel %vm327, %v1004, %v1006
  %v1048 = vsel %vm327, %v1006, %v1008
  %v1049 = vsel %vm327, %v1010, %v1012
  %v1050 = vsel %vm327, %v1012, %v1014
  %v1051 = vsel %vm327, %v1016, %v1018
  %v1052 = vsel %vm327, %v1018, %v1020
  %v1053 = vsel %vm327, %v1022, %v1024
  %v1054 = vsel %vm327, %v1024, %v1026
  %v1055 = vsel %vm327, %v1028, %v1030
  %v1056 = vsel %vm327, %v1030, %v1032
  %v1057 = vsel %vm327, %v1034, %v1036
  %v1058 = vsel %vm327, %v1036, %v1038
  %v1059 = vsel %vm327, %v1040, %v1042
  %v1060 = vsel %vm327, %v1042, %v1044
  %1077 = vrot.lane.b32.xlu0 %v950, 116
  %v1078 = vpop.permute.xlu0 %1077
  %1079 = vrot.lane.b32.xlu0 %v951, 116
  %v1080 = vpop.permute.xlu0 %1079
  %1081 = vrot.lane.b32.xlu0 %v953, 116
  %v1082 = vpop.permute.xlu0 %1081
  %1083 = vrot.lane.b32.xlu0 %v954, 116
  %v1084 = vpop.permute.xlu0 %1083
  %1085 = vrot.lane.b32.xlu0 %v956, 116
  %v1086 = vpop.permute.xlu0 %1085
  %1087 = vrot.lane.b32.xlu0 %v957, 116
  %v1088 = vpop.permute.xlu0 %1087
  %1089 = vrot.lane.b32.xlu0 %v959, 116
  %v1090 = vpop.permute.xlu0 %1089
  %1091 = vrot.lane.b32.xlu0 %v960, 116
  %v1092 = vpop.permute.xlu0 %1091
  %1093 = vrot.lane.b32.xlu0 %v962, 116
  %v1094 = vpop.permute.xlu0 %1093
  %1095 = vrot.lane.b32.xlu0 %v963, 116
  %v1096 = vpop.permute.xlu0 %1095
  %1097 = vrot.lane.b32.xlu0 %v965, 116
  %v1098 = vpop.permute.xlu0 %1097
  %1099 = vrot.lane.b32.xlu0 %v966, 116
  %v1100 = vpop.permute.xlu0 %1099
  %1101 = vrot.lane.b32.xlu0 %v968, 116
  %v1102 = vpop.permute.xlu0 %1101
  %1103 = vrot.lane.b32.xlu0 %v969, 116
  %v1104 = vpop.permute.xlu0 %1103
  %1105 = vrot.lane.b32.xlu0 %v971, 116
  %v1106 = vpop.permute.xlu0 %1105
  %1107 = vrot.lane.b32.xlu0 %v972, 116
  %v1108 = vpop.permute.xlu0 %1107
  %v1109 = vsel %vm392, %v1078, %v1080
  %v1110 = vsel %vm392, %v1082, %v1084
  %v1111 = vsel %vm392, %v1086, %v1088
  %v1112 = vsel %vm392, %v1090, %v1092
  %v1113 = vsel %vm392, %v1094, %v1096
  %v1114 = vsel %vm392, %v1098, %v1100
  %v1115 = vsel %vm392, %v1102, %v1104
  %v1116 = vsel %vm392, %v1106, %v1108
  %v1133 = vsel %vm239, %v1045, %v1109
  %v1134 = vsel %vm240, %v1046, %v1080
  %v1135 = vsel %vm241, %v1047, %v1110
  %v1136 = vsel %vm242, %v1048, %v1084
  %v1137 = vsel %vm243, %v1049, %v1111
  %v1138 = vsel %vm244, %v1050, %v1088
  %v1139 = vsel %vm245, %v1051, %v1112
  %v1140 = vsel %vm246, %v1052, %v1092
  %v1141 = vsel %vm247, %v1053, %v1113
  %v1142 = vsel %vm248, %v1054, %v1096
  %v1143 = vsel %vm249, %v1055, %v1114
  %v1144 = vsel %vm250, %v1056, %v1100
  %v1145 = vsel %vm251, %v1057, %v1115
  %v1146 = vsel %vm252, %v1058, %v1104
  %v1147 = vsel %vm253, %v1059, %v1116
  %v1148 = vsel %vm254, %v1060, %v1108
  %v1149 = vadd.f32 %v933, %v1133
  %v1150 = vadd.f32 %v934, %v1134
  %v1151 = vadd.f32 %v935, %v1135
  %v1152 = vadd.f32 %v936, %v1136
  %v1153 = vadd.f32 %v937, %v1137
  %v1154 = vadd.f32 %v938, %v1138
  %v1155 = vadd.f32 %v939, %v1139
  %v1156 = vadd.f32 %v940, %v1140
  %v1157 = vadd.f32 %v941, %v1141
  %v1158 = vadd.f32 %v942, %v1142
  %v1159 = vadd.f32 %v943, %v1143
  %v1160 = vadd.f32 %v944, %v1144
  %v1161 = vadd.f32 %v945, %v1145
  %v1162 = vadd.f32 %v946, %v1146
  %v1163 = vadd.f32 %v947, %v1147
  %v1164 = vadd.f32 %v948, %v1148
  %1165 = vst [vmem:[#allocation3 + $0xc8] sm:$0xff] %v1149
  %1166 = vst.msk [vmem:[#allocation3 + $0xd0] sm:$0xff] %vm183, %v1150
  %1167 = vst [vmem:[#allocation3 + $0xe0] sm:$0xff] %v1151
  %1168 = vst.msk [vmem:[#allocation3 + $0xe8] sm:$0xff] %vm183, %v1152
  %1169 = vst [vmem:[#allocation3 + $0xf8] sm:$0xff] %v1153
  %1170 = vst.msk [vmem:[#allocation3 + $0x100] sm:$0xff] %vm183, %v1154
  %1171 = vst [vmem:[#allocation3 + $0x110] sm:$0xff] %v1155
  %1172 = vst.msk [vmem:[#allocation3 + $0x118] sm:$0xff] %vm183, %v1156
  %1173 = vst [vmem:[#allocation3 + $0x128] sm:$0xff] %v1157
  %1174 = vst.msk [vmem:[#allocation3 + $0x130] sm:$0xff] %vm183, %v1158
  %1175 = vst [vmem:[#allocation3 + $0x140] sm:$0xff] %v1159
  %1176 = vst.msk [vmem:[#allocation3 + $0x148] sm:$0xff] %vm183, %v1160
  %1177 = vst [vmem:[#allocation3 + $0x158] sm:$0xff] %v1161
  %1178 = vst.msk [vmem:[#allocation3 + $0x160] sm:$0xff] %vm183, %v1162
  %1179 = vst [vmem:[#allocation3 + $0x170] sm:$0xff] %v1163
  %1180 = vst.msk [vmem:[#allocation3 + $0x178] sm:$0xff] %vm183, %v1164
  %v1181 = vld [vmem:[#allocation2 + $0x8] sm:$0xff]
  %v1182 = vld [vmem:[#allocation2 + $0x10] sm:$0xff]
  %v1183 = vld [vmem:[#allocation2 + $0x20] sm:$0xff]
  %v1184 = vld [vmem:[#allocation2 + $0x28] sm:$0xff]
  %v1185 = vld [vmem:[#allocation2 + $0x38] sm:$0xff]
  %v1186 = vld [vmem:[#allocation2 + $0x40] sm:$0xff]
  %v1187 = vld [vmem:[#allocation2 + $0x50] sm:$0xff]
  %v1188 = vld [vmem:[#allocation2 + $0x58] sm:$0xff]
  %v1189 = vld [vmem:[#allocation2 + $0x68] sm:$0xff]
  %v1190 = vld [vmem:[#allocation2 + $0x70] sm:$0xff]
  %v1191 = vld [vmem:[#allocation2 + $0x80] sm:$0xff]
  %v1192 = vld [vmem:[#allocation2 + $0x88] sm:$0xff]
  %v1193 = vld [vmem:[#allocation2 + $0x98] sm:$0xff]
  %v1194 = vld [vmem:[#allocation2 + $0xa0] sm:$0xff]
  %v1195 = vld [vmem:[#allocation2 + $0xb0] sm:$0xff]
  %v1196 = vld [vmem:[#allocation2 + $0xb8] sm:$0xff]
  %v1197 = vld [vmem:[#allocation2 + $0xc0] sm:$0xff]
  %v1198 = vld [vmem:[#allocation2 + $0xc8] sm:$0xff]
  %v1199 = vld [vmem:[#allocation2 + $0xd0] sm:$0xff]
  %v1200 = vld [vmem:[#allocation2 + $0xd8] sm:$0xff]
  %v1201 = vld [vmem:[#allocation2 + $0xe0] sm:$0xff]
  %v1202 = vld [vmem:[#allocation2 + $0xe8] sm:$0xff]
  %v1203 = vld [vmem:[#allocation2 + $0xf0] sm:$0xff]
  %v1204 = vld [vmem:[#allocation2 + $0xf8] sm:$0xff]
  %v1205 = vld [vmem:[#allocation2 + $0x100] sm:$0xff]
  %v1206 = vld [vmem:[#allocation2 + $0x108] sm:$0xff]
  %v1207 = vld [vmem:[#allocation2 + $0x110] sm:$0xff]
  %v1208 = vld [vmem:[#allocation2 + $0x118] sm:$0xff]
  %v1209 = vld [vmem:[#allocation2 + $0x120] sm:$0xff]
  %v1210 = vld [vmem:[#allocation2 + $0x128] sm:$0xff]
  %v1211 = vld [vmem:[#allocation2 + $0x130] sm:$0xff]
  %v1212 = vld [vmem:[#allocation2 + $0x138] sm:$0xff]
  %v1213 = vld [vmem:[#allocation2 + $0x140] sm:$0xff]
  %v1214 = vld [vmem:[#allocation2 + $0x148] sm:$0xff]
  %v1215 = vld [vmem:[#allocation2 + $0x150] sm:$0xff]
  %v1216 = vld [vmem:[#allocation2 + $0x158] sm:$0xff]
  %v1217 = vld [vmem:[#allocation2 + $0x160] sm:$0xff]
  %v1218 = vld [vmem:[#allocation2 + $0x168] sm:$0xff]
  %v1219 = vld [vmem:[#allocation2 + $0x170] sm:$0xff]
  %v1220 = vld [vmem:[#allocation2 + $0x178] sm:$0xff]
  %1245 = vrot.lane.b32.xlu0 %v1197, 1
  %v1246 = vpop.permute.xlu0 %1245
  %1247 = vrot.lane.b32.xlu0 %v1198, 1
  %v1248 = vpop.permute.xlu0 %1247
  %1249 = vrot.lane.b32.xlu0 %v1199, 1
  %v1250 = vpop.permute.xlu0 %1249
  %1251 = vrot.lane.b32.xlu0 %v1200, 1
  %v1252 = vpop.permute.xlu0 %1251
  %1253 = vrot.lane.b32.xlu0 %v1201, 1
  %v1254 = vpop.permute.xlu0 %1253
  %1255 = vrot.lane.b32.xlu0 %v1202, 1
  %v1256 = vpop.permute.xlu0 %1255
  %1257 = vrot.lane.b32.xlu0 %v1203, 1
  %v1258 = vpop.permute.xlu0 %1257
  %1259 = vrot.lane.b32.xlu0 %v1204, 1
  %v1260 = vpop.permute.xlu0 %1259
  %1261 = vrot.lane.b32.xlu0 %v1205, 1
  %v1262 = vpop.permute.xlu0 %1261
  %1263 = vrot.lane.b32.xlu0 %v1206, 1
  %v1264 = vpop.permute.xlu0 %1263
  %1265 = vrot.lane.b32.xlu0 %v1207, 1
  %v1266 = vpop.permute.xlu0 %1265
  %1267 = vrot.lane.b32.xlu0 %v1208, 1
  %v1268 = vpop.permute.xlu0 %1267
  %1269 = vrot.lane.b32.xlu0 %v1209, 1
  %v1270 = vpop.permute.xlu0 %1269
  %1271 = vrot.lane.b32.xlu0 %v1210, 1
  %v1272 = vpop.permute.xlu0 %1271
  %1273 = vrot.lane.b32.xlu0 %v1211, 1
  %v1274 = vpop.permute.xlu0 %1273
  %1275 = vrot.lane.b32.xlu0 %v1212, 1
  %v1276 = vpop.permute.xlu0 %1275
  %1277 = vrot.lane.b32.xlu0 %v1213, 1
  %v1278 = vpop.permute.xlu0 %1277
  %1279 = vrot.lane.b32.xlu0 %v1214, 1
  %v1280 = vpop.permute.xlu0 %1279
  %1281 = vrot.lane.b32.xlu0 %v1215, 1
  %v1282 = vpop.permute.xlu0 %1281
  %1283 = vrot.lane.b32.xlu0 %v1216, 1
  %v1284 = vpop.permute.xlu0 %1283
  %1285 = vrot.lane.b32.xlu0 %v1217, 1
  %v1286 = vpop.permute.xlu0 %1285
  %1287 = vrot.lane.b32.xlu0 %v1218, 1
  %v1288 = vpop.permute.xlu0 %1287
  %1289 = vrot.lane.b32.xlu0 %v1219, 1
  %v1290 = vpop.permute.xlu0 %1289
  %1291 = vrot.lane.b32.xlu0 %v1220, 1
  %v1292 = vpop.permute.xlu0 %1291
  %v1293 = vsel %vm843, %v1246, %v1248
  %v1294 = vsel %vm843, %v1248, %v1250
  %v1295 = vsel %vm843, %v1252, %v1254
  %v1296 = vsel %vm843, %v1254, %v1256
  %v1297 = vsel %vm843, %v1258, %v1260
  %v1298 = vsel %vm843, %v1260, %v1262
  %v1299 = vsel %vm843, %v1264, %v1266
  %v1300 = vsel %vm843, %v1266, %v1268
  %v1301 = vsel %vm843, %v1270, %v1272
  %v1302 = vsel %vm843, %v1272, %v1274
  %v1303 = vsel %vm843, %v1276, %v1278
  %v1304 = vsel %vm843, %v1278, %v1280
  %v1305 = vsel %vm843, %v1282, %v1284
  %v1306 = vsel %vm843, %v1284, %v1286
  %v1307 = vsel %vm843, %v1288, %v1290
  %v1308 = vsel %vm843, %v1290, %v1292
  %1325 = vrot.lane.b32.xlu0 %v1198, 115
  %v1326 = vpop.permute.xlu0 %1325
  %1327 = vrot.lane.b32.xlu0 %v1199, 115
  %v1328 = vpop.permute.xlu0 %1327
  %1329 = vrot.lane.b32.xlu0 %v1201, 115
  %v1330 = vpop.permute.xlu0 %1329
  %1331 = vrot.lane.b32.xlu0 %v1202, 115
  %v1332 = vpop.permute.xlu0 %1331
  %1333 = vrot.lane.b32.xlu0 %v1204, 115
  %v1334 = vpop.permute.xlu0 %1333
  %1335 = vrot.lane.b32.xlu0 %v1205, 115
  %v1336 = vpop.permute.xlu0 %1335
  %1337 = vrot.lane.b32.xlu0 %v1207, 115
  %v1338 = vpop.permute.xlu0 %1337
  %1339 = vrot.lane.b32.xlu0 %v1208, 115
  %v1340 = vpop.permute.xlu0 %1339
  %1341 = vrot.lane.b32.xlu0 %v1210, 115
  %v1342 = vpop.permute.xlu0 %1341
  %1343 = vrot.lane.b32.xlu0 %v1211, 115
  %v1344 = vpop.permute.xlu0 %1343
  %1345 = vrot.lane.b32.xlu0 %v1213, 115
  %v1346 = vpop.permute.xlu0 %1345
  %1347 = vrot.lane.b32.xlu0 %v1214, 115
  %v1348 = vpop.permute.xlu0 %1347
  %1349 = vrot.lane.b32.xlu0 %v1216, 115
  %v1350 = vpop.permute.xlu0 %1349
  %1351 = vrot.lane.b32.xlu0 %v1217, 115
  %v1352 = vpop.permute.xlu0 %1351
  %1353 = vrot.lane.b32.xlu0 %v1219, 115
  %v1354 = vpop.permute.xlu0 %1353
  %1355 = vrot.lane.b32.xlu0 %v1220, 115
  %v1356 = vpop.permute.xlu0 %1355
  %v1357 = vsel %vm908, %v1326, %v1328
  %v1358 = vsel %vm908, %v1330, %v1332
  %v1359 = vsel %vm908, %v1334, %v1336
  %v1360 = vsel %vm908, %v1338, %v1340
  %v1361 = vsel %vm908, %v1342, %v1344
  %v1362 = vsel %vm908, %v1346, %v1348
  %v1363 = vsel %vm908, %v1350, %v1352
  %v1364 = vsel %vm908, %v1354, %v1356
  %v1381 = vsel %vm667, %v1293, %v1357
  %v1382 = vsel %vm668, %v1294, %v1328
  %v1383 = vsel %vm669, %v1295, %v1358
  %v1384 = vsel %vm670, %v1296, %v1332
  %v1385 = vsel %vm671, %v1297, %v1359
  %v1386 = vsel %vm672, %v1298, %v1336
  %v1387 = vsel %vm673, %v1299, %v1360
  %v1388 = vsel %vm674, %v1300, %v1340
  %v1389 = vsel %vm675, %v1301, %v1361
  %v1390 = vsel %vm676, %v1302, %v1344
  %v1391 = vsel %vm677, %v1303, %v1362
  %v1392 = vsel %vm678, %v1304, %v1348
  %v1393 = vsel %vm679, %v1305, %v1363
  %v1394 = vsel %vm680, %v1306, %v1352
  %v1395 = vsel %vm681, %v1307, %v1364
  %v1396 = vsel %vm682, %v1308, %v1356
  %vm1397 = vcmp.ne.s32.totalorder %v14, 0
  %vm1398 = vcmp.ne.s32.totalorder %v15, 0
  %vm1399 = vcmp.ne.s32.totalorder %v16, 0
  %vm1400 = vcmp.ne.s32.totalorder %v17, 0
  %vm1401 = vcmp.ne.s32.totalorder %v18, 0
  %vm1402 = vcmp.ne.s32.totalorder %v19, 0
  %vm1403 = vcmp.ne.s32.totalorder %v20, 0
  %vm1404 = vcmp.ne.s32.totalorder %v21, 0
  %vm1405 = vcmp.ne.s32.totalorder %v22, 0
  %vm1406 = vcmp.ne.s32.totalorder %v23, 0
  %vm1407 = vcmp.ne.s32.totalorder %v24, 0
  %vm1408 = vcmp.ne.s32.totalorder %v25, 0
  %vm1409 = vcmp.ne.s32.totalorder %v26, 0
  %vm1410 = vcmp.ne.s32.totalorder %v27, 0
  %vm1411 = vcmp.ne.s32.totalorder %v28, 0
  %vm1412 = vcmp.ne.s32.totalorder %v29, 0
  %vm1413 = vcmp.le.s32.totalorder %v14, 12
  %vm1414 = vcmp.le.s32.totalorder %v15, 12
  %vm1415 = vcmp.le.s32.totalorder %v16, 12
  %vm1416 = vcmp.le.s32.totalorder %v17, 12
  %vm1417 = vcmp.le.s32.totalorder %v18, 12
  %vm1418 = vcmp.le.s32.totalorder %v19, 12
  %vm1419 = vcmp.le.s32.totalorder %v20, 12
  %vm1420 = vcmp.le.s32.totalorder %v21, 12
  %vm1421 = vcmp.le.s32.totalorder %v22, 12
  %vm1422 = vcmp.le.s32.totalorder %v23, 12
  %vm1423 = vcmp.le.s32.totalorder %v24, 12
  %vm1424 = vcmp.le.s32.totalorder %v25, 12
  %vm1425 = vcmp.le.s32.totalorder %v26, 12
  %vm1426 = vcmp.le.s32.totalorder %v27, 12
  %vm1427 = vcmp.le.s32.totalorder %v28, 12
  %vm1428 = vcmp.le.s32.totalorder %v29, 12
  %v1429 = vsel %vm1413, %v1181, 0.0
  %v1430 = vsel %vm1414, %v1182, 0.0
  %v1431 = vsel %vm1415, %v1183, 0.0
  %v1432 = vsel %vm1416, %v1184, 0.0
  %v1433 = vsel %vm1417, %v1185, 0.0
  %v1434 = vsel %vm1418, %v1186, 0.0
  %v1435 = vsel %vm1419, %v1187, 0.0
  %v1436 = vsel %vm1420, %v1188, 0.0
  %v1437 = vsel %vm1421, %v1189, 0.0
  %v1438 = vsel %vm1422, %v1190, 0.0
  %v1439 = vsel %vm1423, %v1191, 0.0
  %v1440 = vsel %vm1424, %v1192, 0.0
  %v1441 = vsel %vm1425, %v1193, 0.0
  %v1442 = vsel %vm1426, %v1194, 0.0
  %v1443 = vsel %vm1427, %v1195, 0.0
  %v1444 = vsel %vm1428, %v1196, 0.0
  %v1445 = vsel %vm1397, %v1381, 0.0
  %v1446 = vsel %vm1398, %v1382, 0.0
  %v1447 = vsel %vm1399, %v1383, 0.0
  %v1448 = vsel %vm1400, %v1384, 0.0
  %v1449 = vsel %vm1401, %v1385, 0.0
  %v1450 = vsel %vm1402, %v1386, 0.0
  %v1451 = vsel %vm1403, %v1387, 0.0
  %v1452 = vsel %vm1404, %v1388, 0.0
  %v1453 = vsel %vm1405, %v1389, 0.0
  %v1454 = vsel %vm1406, %v1390, 0.0
  %v1455 = vsel %vm1407, %v1391, 0.0
  %v1456 = vsel %vm1408, %v1392, 0.0
  %v1457 = vsel %vm1409, %v1393, 0.0
  %v1458 = vsel %vm1410, %v1394, 0.0
  %v1459 = vsel %vm1411, %v1395, 0.0
  %v1460 = vsel %vm1412, %v1396, 0.0
  %v1461 = vadd.f32 %v1429, %v1445
  %v1462 = vadd.f32 %v1430, %v1446
  %v1463 = vadd.f32 %v1431, %v1447
  %v1464 = vadd.f32 %v1432, %v1448
  %v1465 = vadd.f32 %v1433, %v1449
  %v1466 = vadd.f32 %v1434, %v1450
  %v1467 = vadd.f32 %v1435, %v1451
  %v1468 = vadd.f32 %v1436, %v1452
  %v1469 = vadd.f32 %v1437, %v1453
  %v1470 = vadd.f32 %v1438, %v1454
  %v1471 = vadd.f32 %v1439, %v1455
  %v1472 = vadd.f32 %v1440, %v1456
  %v1473 = vadd.f32 %v1441, %v1457
  %v1474 = vadd.f32 %v1442, %v1458
  %v1475 = vadd.f32 %v1443, %v1459
  %v1476 = vadd.f32 %v1444, %v1460
  %1477 = vst [vmem:[#allocation3 + $0x188] sm:$0xff] %v1461
  %1478 = vst.msk [vmem:[#allocation3 + $0x190] sm:$0xff] %vm183, %v1462
  %1479 = vst [vmem:[#allocation3 + $0x1a0] sm:$0xff] %v1463
  %1480 = vst.msk [vmem:[#allocation3 + $0x1a8] sm:$0xff] %vm183, %v1464
  %1481 = vst [vmem:[#allocation3 + $0x1b8] sm:$0xff] %v1465
  %1482 = vst.msk [vmem:[#allocation3 + $0x1c0] sm:$0xff] %vm183, %v1466
  %1483 = vst [vmem:[#allocation3 + $0x1d0] sm:$0xff] %v1467
  %1484 = vst.msk [vmem:[#allocation3 + $0x1d8] sm:$0xff] %vm183, %v1468
  %1485 = vst [vmem:[#allocation3 + $0x1e8] sm:$0xff] %v1469
  %1486 = vst.msk [vmem:[#allocation3 + $0x1f0] sm:$0xff] %vm183, %v1470
  %1487 = vst [vmem:[#allocation3 + $0x200] sm:$0xff] %v1471
  %1488 = vst.msk [vmem:[#allocation3 + $0x208] sm:$0xff] %vm183, %v1472
  %1489 = vst [vmem:[#allocation3 + $0x218] sm:$0xff] %v1473
  %1490 = vst.msk [vmem:[#allocation3 + $0x220] sm:$0xff] %vm183, %v1474
  %1491 = vst [vmem:[#allocation3 + $0x230] sm:$0xff] %v1475
  %1492 = vst.msk [vmem:[#allocation3 + $0x238] sm:$0xff] %vm183, %v1476
  %v1493 = vld [vmem:[#allocation3] sm:$0xff]
  %v1494 = vld [vmem:[#allocation3 + $0x8] sm:$0xff]
  %v1495 = vld [vmem:[#allocation3 + $0x10] sm:$0xff]
  %v1496 = vld [vmem:[#allocation3 + $0x18] sm:$0xff]
  %v1497 = vld [vmem:[#allocation3 + $0x20] sm:$0xff]
  %v1498 = vld [vmem:[#allocation3 + $0x28] sm:$0xff]
  %v1499 = vld [vmem:[#allocation3 + $0x30] sm:$0xff]
  %v1500 = vld [vmem:[#allocation3 + $0x38] sm:$0xff]
  %v1501 = vld [vmem:[#allocation3 + $0x40] sm:$0xff]
  %v1502 = vld [vmem:[#allocation3 + $0x48] sm:$0xff]
  %v1503 = vld [vmem:[#allocation3 + $0x50] sm:$0xff]
  %v1504 = vld [vmem:[#allocation3 + $0x58] sm:$0xff]
  %v1505 = vld [vmem:[#allocation3 + $0x60] sm:$0xff]
  %v1506 = vld [vmem:[#allocation3 + $0x68] sm:$0xff]
  %v1507 = vld [vmem:[#allocation3 + $0x70] sm:$0xff]
  %v1508 = vld [vmem:[#allocation3 + $0x78] sm:$0xff]
  %v1509 = vld [vmem:[#allocation3 + $0x80] sm:$0xff]
  %v1510 = vld [vmem:[#allocation3 + $0x88] sm:$0xff]
  %v1511 = vld [vmem:[#allocation3 + $0x90] sm:$0xff]
  %v1512 = vld [vmem:[#allocation3 + $0x98] sm:$0xff]
  %v1513 = vld [vmem:[#allocation3 + $0xa0] sm:$0xff]
  %v1514 = vld [vmem:[#allocation3 + $0xa8] sm:$0xff]
  %v1515 = vld [vmem:[#allocation3 + $0xb0] sm:$0xff]
  %v1516 = vld [vmem:[#allocation3 + $0xb8] sm:$0xff]
  %1541 = vrot.lane.b32.xlu0 %v1493, 14
  %v1542 = vpop.permute.xlu0 %1541
  %1543 = vrot.lane.b32.xlu0 %v1494, 14
  %v1544 = vpop.permute.xlu0 %1543
  %1545 = vrot.lane.b32.xlu0 %v1495, 14
  %v1546 = vpop.permute.xlu0 %1545
  %1547 = vrot.lane.b32.xlu0 %v1496, 14
  %v1548 = vpop.permute.xlu0 %1547
  %1549 = vrot.lane.b32.xlu0 %v1497, 14
  %v1550 = vpop.permute.xlu0 %1549
  %1551 = vrot.lane.b32.xlu0 %v1498, 14
  %v1552 = vpop.permute.xlu0 %1551
  %1553 = vrot.lane.b32.xlu0 %v1499, 14
  %v1554 = vpop.permute.xlu0 %1553
  %1555 = vrot.lane.b32.xlu0 %v1500, 14
  %v1556 = vpop.permute.xlu0 %1555
  %1557 = vrot.lane.b32.xlu0 %v1501, 14
  %v1558 = vpop.permute.xlu0 %1557
  %1559 = vrot.lane.b32.xlu0 %v1502, 14
  %v1560 = vpop.permute.xlu0 %1559
  %1561 = vrot.lane.b32.xlu0 %v1503, 14
  %v1562 = vpop.permute.xlu0 %1561
  %1563 = vrot.lane.b32.xlu0 %v1504, 14
  %v1564 = vpop.permute.xlu0 %1563
  %1565 = vrot.lane.b32.xlu0 %v1505, 14
  %v1566 = vpop.permute.xlu0 %1565
  %1567 = vrot.lane.b32.xlu0 %v1506, 14
  %v1568 = vpop.permute.xlu0 %1567
  %1569 = vrot.lane.b32.xlu0 %v1507, 14
  %v1570 = vpop.permute.xlu0 %1569
  %1571 = vrot.lane.b32.xlu0 %v1508, 14
  %v1572 = vpop.permute.xlu0 %1571
  %1573 = vrot.lane.b32.xlu0 %v1509, 14
  %v1574 = vpop.permute.xlu0 %1573
  %1575 = vrot.lane.b32.xlu0 %v1510, 14
  %v1576 = vpop.permute.xlu0 %1575
  %1577 = vrot.lane.b32.xlu0 %v1511, 14
  %v1578 = vpop.permute.xlu0 %1577
  %1579 = vrot.lane.b32.xlu0 %v1512, 14
  %v1580 = vpop.permute.xlu0 %1579
  %1581 = vrot.lane.b32.xlu0 %v1513, 14
  %v1582 = vpop.permute.xlu0 %1581
  %1583 = vrot.lane.b32.xlu0 %v1514, 14
  %v1584 = vpop.permute.xlu0 %1583
  %1585 = vrot.lane.b32.xlu0 %v1515, 14
  %v1586 = vpop.permute.xlu0 %1585
  %1587 = vrot.lane.b32.xlu0 %v1516, 14
  %v1588 = vpop.permute.xlu0 %1587
  %vm1589 = vcmask 113664
  %v1590 = vsel %vm1589, %v1542, %v1544
  %v1591 = vsel %vm1589, %v1544, %v1546
  %v1592 = vsel %vm1589, %v1548, %v1550
  %v1593 = vsel %vm1589, %v1550, %v1552
  %v1594 = vsel %vm1589, %v1554, %v1556
  %v1595 = vsel %vm1589, %v1556, %v1558
  %v1596 = vsel %vm1589, %v1560, %v1562
  %v1597 = vsel %vm1589, %v1562, %v1564
  %v1598 = vsel %vm1589, %v1566, %v1568
  %v1599 = vsel %vm1589, %v1568, %v1570
  %v1600 = vsel %vm1589, %v1572, %v1574
  %v1601 = vsel %vm1589, %v1574, %v1576
  %v1602 = vsel %vm1589, %v1578, %v1580
  %v1603 = vsel %vm1589, %v1580, %v1582
  %v1604 = vsel %vm1589, %v1584, %v1586
  %v1605 = vsel %vm1589, %v1586, %v1588
  %1622 = vst [vmem:[#allocation4] sm:$0xff] %v1590
  %1623 = vst.msk [vmem:[#allocation4 + $0x8] sm:$0xff] %vm183, %v1591
  %1624 = vst [vmem:[#allocation4 + $0x10] sm:$0xff] %v1592
  %1625 = vst.msk [vmem:[#allocation4 + $0x18] sm:$0xff] %vm183, %v1593
  %1626 = vst [vmem:[#allocation4 + $0x20] sm:$0xff] %v1594
  %1627 = vst.msk [vmem:[#allocation4 + $0x28] sm:$0xff] %vm183, %v1595
  %1628 = vst [vmem:[#allocation4 + $0x30] sm:$0xff] %v1596
  %1629 = vst.msk [vmem:[#allocation4 + $0x38] sm:$0xff] %vm183, %v1597
  %1630 = vst [vmem:[#allocation4 + $0x40] sm:$0xff] %v1598
  %1631 = vst.msk [vmem:[#allocation4 + $0x48] sm:$0xff] %vm183, %v1599
  %1632 = vst [vmem:[#allocation4 + $0x50] sm:$0xff] %v1600
  %1633 = vst.msk [vmem:[#allocation4 + $0x58] sm:$0xff] %vm183, %v1601
  %1634 = vst [vmem:[#allocation4 + $0x60] sm:$0xff] %v1602
  %1635 = vst.msk [vmem:[#allocation4 + $0x68] sm:$0xff] %vm183, %v1603
  %1636 = vst [vmem:[#allocation4 + $0x70] sm:$0xff] %v1604
  %1637 = vst.msk [vmem:[#allocation4 + $0x78] sm:$0xff] %vm183, %v1605
  %v1638 = vld [vmem:[#allocation3 + $0xc0] sm:$0xff]
  %v1639 = vld [vmem:[#allocation3 + $0xc8] sm:$0xff]
  %v1640 = vld [vmem:[#allocation3 + $0xd0] sm:$0xff]
  %v1641 = vld [vmem:[#allocation3 + $0xd8] sm:$0xff]
  %v1642 = vld [vmem:[#allocation3 + $0xe0] sm:$0xff]
  %v1643 = vld [vmem:[#allocation3 + $0xe8] sm:$0xff]
  %v1644 = vld [vmem:[#allocation3 + $0xf0] sm:$0xff]
  %v1645 = vld [vmem:[#allocation3 + $0xf8] sm:$0xff]
  %v1646 = vld [vmem:[#allocation3 + $0x100] sm:$0xff]
  %v1647 = vld [vmem:[#allocation3 + $0x108] sm:$0xff]
  %v1648 = vld [vmem:[#allocation3 + $0x110] sm:$0xff]
  %v1649 = vld [vmem:[#allocation3 + $0x118] sm:$0xff]
  %v1650 = vld [vmem:[#allocation3 + $0x120] sm:$0xff]
  %v1651 = vld [vmem:[#allocation3 + $0x128] sm:$0xff]
  %v1652 = vld [vmem:[#allocation3 + $0x130] sm:$0xff]
  %v1653 = vld [vmem:[#allocation3 + $0x138] sm:$0xff]
  %v1654 = vld [vmem:[#allocation3 + $0x140] sm:$0xff]
  %v1655 = vld [vmem:[#allocation3 + $0x148] sm:$0xff]
  %v1656 = vld [vmem:[#allocation3 + $0x150] sm:$0xff]
  %v1657 = vld [vmem:[#allocation3 + $0x158] sm:$0xff]
  %v1658 = vld [vmem:[#allocation3 + $0x160] sm:$0xff]
  %v1659 = vld [vmem:[#allocation3 + $0x168] sm:$0xff]
  %v1660 = vld [vmem:[#allocation3 + $0x170] sm:$0xff]
  %v1661 = vld [vmem:[#allocation3 + $0x178] sm:$0xff]
  %1686 = vrot.lane.b32.xlu0 %v1638, 14
  %v1687 = vpop.permute.xlu0 %1686
  %1688 = vrot.lane.b32.xlu0 %v1639, 14
  %v1689 = vpop.permute.xlu0 %1688
  %1690 = vrot.lane.b32.xlu0 %v1640, 14
  %v1691 = vpop.permute.xlu0 %1690
  %1692 = vrot.lane.b32.xlu0 %v1641, 14
  %v1693 = vpop.permute.xlu0 %1692
  %1694 = vrot.lane.b32.xlu0 %v1642, 14
  %v1695 = vpop.permute.xlu0 %1694
  %1696 = vrot.lane.b32.xlu0 %v1643, 14
  %v1697 = vpop.permute.xlu0 %1696
  %1698 = vrot.lane.b32.xlu0 %v1644, 14
  %v1699 = vpop.permute.xlu0 %1698
  %1700 = vrot.lane.b32.xlu0 %v1645, 14
  %v1701 = vpop.permute.xlu0 %1700
  %1702 = vrot.lane.b32.xlu0 %v1646, 14
  %v1703 = vpop.permute.xlu0 %1702
  %1704 = vrot.lane.b32.xlu0 %v1647, 14
  %v1705 = vpop.permute.xlu0 %1704
  %1706 = vrot.lane.b32.xlu0 %v1648, 14
  %v1707 = vpop.permute.xlu0 %1706
  %1708 = vrot.lane.b32.xlu0 %v1649, 14
  %v1709 = vpop.permute.xlu0 %1708
  %1710 = vrot.lane.b32.xlu0 %v1650, 14
  %v1711 = vpop.permute.xlu0 %1710
  %1712 = vrot.lane.b32.xlu0 %v1651, 14
  %v1713 = vpop.permute.xlu0 %1712
  %1714 = vrot.lane.b32.xlu0 %v1652, 14
  %v1715 = vpop.permute.xlu0 %1714
  %1716 = vrot.lane.b32.xlu0 %v1653, 14
  %v1717 = vpop.permute.xlu0 %1716
  %1718 = vrot.lane.b32.xlu0 %v1654, 14
  %v1719 = vpop.permute.xlu0 %1718
  %1720 = vrot.lane.b32.xlu0 %v1655, 14
  %v1721 = vpop.permute.xlu0 %1720
  %1722 = vrot.lane.b32.xlu0 %v1656, 14
  %v1723 = vpop.permute.xlu0 %1722
  %1724 = vrot.lane.b32.xlu0 %v1657, 14
  %v1725 = vpop.permute.xlu0 %1724
  %1726 = vrot.lane.b32.xlu0 %v1658, 14
  %v1727 = vpop.permute.xlu0 %1726
  %1728 = vrot.lane.b32.xlu0 %v1659, 14
  %v1729 = vpop.permute.xlu0 %1728
  %1730 = vrot.lane.b32.xlu0 %v1660, 14
  %v1731 = vpop.permute.xlu0 %1730
  %1732 = vrot.lane.b32.xlu0 %v1661, 14
  %v1733 = vpop.permute.xlu0 %1732
  %v1734 = vsel %vm1589, %v1687, %v1689
  %v1735 = vsel %vm1589, %v1689, %v1691
  %v1736 = vsel %vm1589, %v1693, %v1695
  %v1737 = vsel %vm1589, %v1695, %v1697
  %v1738 = vsel %vm1589, %v1699, %v1701
  %v1739 = vsel %vm1589, %v1701, %v1703
  %v1740 = vsel %vm1589, %v1705, %v1707
  %v1741 = vsel %vm1589, %v1707, %v1709
  %v1742 = vsel %vm1589, %v1711, %v1713
  %v1743 = vsel %vm1589, %v1713, %v1715
  %v1744 = vsel %vm1589, %v1717, %v1719
  %v1745 = vsel %vm1589, %v1719, %v1721
  %v1746 = vsel %vm1589, %v1723, %v1725
  %v1747 = vsel %vm1589, %v1725, %v1727
  %v1748 = vsel %vm1589, %v1729, %v1731
  %v1749 = vsel %vm1589, %v1731, %v1733
  %1766 = vst [vmem:[#allocation4 + $0x80] sm:$0xff] %v1734
  %1767 = vst.msk [vmem:[#allocation4 + $0x88] sm:$0xff] %vm183, %v1735
  %1768 = vst [vmem:[#allocation4 + $0x90] sm:$0xff] %v1736
  %1769 = vst.msk [vmem:[#allocation4 + $0x98] sm:$0xff] %vm183, %v1737
  %1770 = vst [vmem:[#allocation4 + $0xa0] sm:$0xff] %v1738
  %1771 = vst.msk [vmem:[#allocation4 + $0xa8] sm:$0xff] %vm183, %v1739
  %1772 = vst [vmem:[#allocation4 + $0xb0] sm:$0xff] %v1740
  %1773 = vst.msk [vmem:[#allocation4 + $0xb8] sm:$0xff] %vm183, %v1741
  %1774 = vst [vmem:[#allocation4 + $0xc0] sm:$0xff] %v1742
  %1775 = vst.msk [vmem:[#allocation4 + $0xc8] sm:$0xff] %vm183, %v1743
  %1776 = vst [vmem:[#allocation4 + $0xd0] sm:$0xff] %v1744
  %1777 = vst.msk [vmem:[#allocation4 + $0xd8] sm:$0xff] %vm183, %v1745
  %1778 = vst [vmem:[#allocation4 + $0xe0] sm:$0xff] %v1746
  %1779 = vst.msk [vmem:[#allocation4 + $0xe8] sm:$0xff] %vm183, %v1747
  %1780 = vst [vmem:[#allocation4 + $0xf0] sm:$0xff] %v1748
  %1781 = vst.msk [vmem:[#allocation4 + $0xf8] sm:$0xff] %vm183, %v1749
  %v1782 = vld [vmem:[#allocation3 + $0x180] sm:$0xff]
  %v1783 = vld [vmem:[#allocation3 + $0x188] sm:$0xff]
  %v1784 = vld [vmem:[#allocation3 + $0x190] sm:$0xff]
  %v1785 = vld [vmem:[#allocation3 + $0x198] sm:$0xff]
  %v1786 = vld [vmem:[#allocation3 + $0x1a0] sm:$0xff]
  %v1787 = vld [vmem:[#allocation3 + $0x1a8] sm:$0xff]
  %v1788 = vld [vmem:[#allocation3 + $0x1b0] sm:$0xff]
  %v1789 = vld [vmem:[#allocation3 + $0x1b8] sm:$0xff]
  %v1790 = vld [vmem:[#allocation3 + $0x1c0] sm:$0xff]
  %v1791 = vld [vmem:[#allocation3 + $0x1c8] sm:$0xff]
  %v1792 = vld [vmem:[#allocation3 + $0x1d0] sm:$0xff]
  %v1793 = vld [vmem:[#allocation3 + $0x1d8] sm:$0xff]
  %v1794 = vld [vmem:[#allocation3 + $0x1e0] sm:$0xff]
  %v1795 = vld [vmem:[#allocation3 + $0x1e8] sm:$0xff]
  %v1796 = vld [vmem:[#allocation3 + $0x1f0] sm:$0xff]
  %v1797 = vld [vmem:[#allocation3 + $0x1f8] sm:$0xff]
  %v1798 = vld [vmem:[#allocation3 + $0x200] sm:$0xff]
  %v1799 = vld [vmem:[#allocation3 + $0x208] sm:$0xff]
  %v1800 = vld [vmem:[#allocation3 + $0x210] sm:$0xff]
  %v1801 = vld [vmem:[#allocation3 + $0x218] sm:$0xff]
  %v1802 = vld [vmem:[#allocation3 + $0x220] sm:$0xff]
  %v1803 = vld [vmem:[#allocation3 + $0x228] sm:$0xff]
  %v1804 = vld [vmem:[#allocation3 + $0x230] sm:$0xff]
  %v1805 = vld [vmem:[#allocation3 + $0x238] sm:$0xff]
  %1830 = vrot.lane.b32.xlu0 %v1782, 14
  %v1831 = vpop.permute.xlu0 %1830
  %1832 = vrot.lane.b32.xlu0 %v1783, 14
  %v1833 = vpop.permute.xlu0 %1832
  %1834 = vrot.lane.b32.xlu0 %v1784, 14
  %v1835 = vpop.permute.xlu0 %1834
  %1836 = vrot.lane.b32.xlu0 %v1785, 14
  %v1837 = vpop.permute.xlu0 %1836
  %1838 = vrot.lane.b32.xlu0 %v1786, 14
  %v1839 = vpop.permute.xlu0 %1838
  %1840 = vrot.lane.b32.xlu0 %v1787, 14
  %v1841 = vpop.permute.xlu0 %1840
  %1842 = vrot.lane.b32.xlu0 %v1788, 14
  %v1843 = vpop.permute.xlu0 %1842
  %1844 = vrot.lane.b32.xlu0 %v1789, 14
  %v1845 = vpop.permute.xlu0 %1844
  %1846 = vrot.lane.b32.xlu0 %v1790, 14
  %v1847 = vpop.permute.xlu0 %1846
  %1848 = vrot.lane.b32.xlu0 %v1791, 14
  %v1849 = vpop.permute.xlu0 %1848
  %1850 = vrot.lane.b32.xlu0 %v1792, 14
  %v1851 = vpop.permute.xlu0 %1850
  %1852 = vrot.lane.b32.xlu0 %v1793, 14
  %v1853 = vpop.permute.xlu0 %1852
  %1854 = vrot.lane.b32.xlu0 %v1794, 14
  %v1855 = vpop.permute.xlu0 %1854
  %1856 = vrot.lane.b32.xlu0 %v1795, 14
  %v1857 = vpop.permute.xlu0 %1856
  %1858 = vrot.lane.b32.xlu0 %v1796, 14
  %v1859 = vpop.permute.xlu0 %1858
  %1860 = vrot.lane.b32.xlu0 %v1797, 14
  %v1861 = vpop.permute.xlu0 %1860
  %1862 = vrot.lane.b32.xlu0 %v1798, 14
  %v1863 = vpop.permute.xlu0 %1862
  %1864 = vrot.lane.b32.xlu0 %v1799, 14
  %v1865 = vpop.permute.xlu0 %1864
  %1866 = vrot.lane.b32.xlu0 %v1800, 14
  %v1867 = vpop.permute.xlu0 %1866
  %1868 = vrot.lane.b32.xlu0 %v1801, 14
  %v1869 = vpop.permute.xlu0 %1868
  %1870 = vrot.lane.b32.xlu0 %v1802, 14
  %v1871 = vpop.permute.xlu0 %1870
  %1872 = vrot.lane.b32.xlu0 %v1803, 14
  %v1873 = vpop.permute.xlu0 %1872
  %1874 = vrot.lane.b32.xlu0 %v1804, 14
  %v1875 = vpop.permute.xlu0 %1874
  %1876 = vrot.lane.b32.xlu0 %v1805, 14
  %v1877 = vpop.permute.xlu0 %1876
  %v1878 = vsel %vm1589, %v1831, %v1833
  %v1879 = vsel %vm1589, %v1833, %v1835
  %v1880 = vsel %vm1589, %v1837, %v1839
  %v1881 = vsel %vm1589, %v1839, %v1841
  %v1882 = vsel %vm1589, %v1843, %v1845
  %v1883 = vsel %vm1589, %v1845, %v1847
  %v1884 = vsel %vm1589, %v1849, %v1851
  %v1885 = vsel %vm1589, %v1851, %v1853
  %v1886 = vsel %vm1589, %v1855, %v1857
  %v1887 = vsel %vm1589, %v1857, %v1859
  %v1888 = vsel %vm1589, %v1861, %v1863
  %v1889 = vsel %vm1589, %v1863, %v1865
  %v1890 = vsel %vm1589, %v1867, %v1869
  %v1891 = vsel %vm1589, %v1869, %v1871
  %v1892 = vsel %vm1589, %v1873, %v1875
  %v1893 = vsel %vm1589, %v1875, %v1877
  %1910 = vst [vmem:[#allocation4 + $0x100] sm:$0xff] %v1878
  %1911 = vst.msk [vmem:[#allocation4 + $0x108] sm:$0xff] %vm183, %v1879
  %1912 = vst [vmem:[#allocation4 + $0x110] sm:$0xff] %v1880
  %1913 = vst.msk [vmem:[#allocation4 + $0x118] sm:$0xff] %vm183, %v1881
  %1914 = vst [vmem:[#allocation4 + $0x120] sm:$0xff] %v1882
  %1915 = vst.msk [vmem:[#allocation4 + $0x128] sm:$0xff] %vm183, %v1883
  %1916 = vst [vmem:[#allocation4 + $0x130] sm:$0xff] %v1884
  %1917 = vst.msk [vmem:[#allocation4 + $0x138] sm:$0xff] %vm183, %v1885
  %1918 = vst [vmem:[#allocation4 + $0x140] sm:$0xff] %v1886
  %1919 = vst.msk [vmem:[#allocation4 + $0x148] sm:$0xff] %vm183, %v1887
  %1920 = vst [vmem:[#allocation4 + $0x150] sm:$0xff] %v1888
  %1921 = vst.msk [vmem:[#allocation4 + $0x158] sm:$0xff] %vm183, %v1889
  %1922 = vst [vmem:[#allocation4 + $0x160] sm:$0xff] %v1890
  %1923 = vst.msk [vmem:[#allocation4 + $0x168] sm:$0xff] %vm183, %v1891
  %1924 = vst [vmem:[#allocation4 + $0x170] sm:$0xff] %v1892
  %1925 = vst.msk [vmem:[#allocation4 + $0x178] sm:$0xff] %vm183, %v1893
  %v1926 = vld [vmem:[#allocation3 + $0x8] sm:$0xff]
  %v1927 = vld [vmem:[#allocation3 + $0x10] sm:$0xff]
  %v1928 = vld [vmem:[#allocation3 + $0x20] sm:$0xff]
  %v1929 = vld [vmem:[#allocation3 + $0x28] sm:$0xff]
  %v1930 = vld [vmem:[#allocation3 + $0x38] sm:$0xff]
  %v1931 = vld [vmem:[#allocation3 + $0x40] sm:$0xff]
  %v1932 = vld [vmem:[#allocation3 + $0x50] sm:$0xff]
  %v1933 = vld [vmem:[#allocation3 + $0x58] sm:$0xff]
  %v1934 = vld [vmem:[#allocation3 + $0x68] sm:$0xff]
  %v1935 = vld [vmem:[#allocation3 + $0x70] sm:$0xff]
  %v1936 = vld [vmem:[#allocation3 + $0x80] sm:$0xff]
  %v1937 = vld [vmem:[#allocation3 + $0x88] sm:$0xff]
  %v1938 = vld [vmem:[#allocation3 + $0x98] sm:$0xff]
  %v1939 = vld [vmem:[#allocation3 + $0xa0] sm:$0xff]
  %v1940 = vld [vmem:[#allocation3 + $0xb0] sm:$0xff]
  %v1941 = vld [vmem:[#allocation3 + $0xb8] sm:$0xff]
  %1942 = vst [vmem:[#allocation4 + $0x180] sm:$0xff] %v1926
  %1943 = vst.msk [vmem:[#allocation4 + $0x188] sm:$0xff] %vm183, %v1927
  %1944 = vst [vmem:[#allocation4 + $0x190] sm:$0xff] %v1928
  %1945 = vst.msk [vmem:[#allocation4 + $0x198] sm:$0xff] %vm183, %v1929
  %1946 = vst [vmem:[#allocation4 + $0x1a0] sm:$0xff] %v1930
  %1947 = vst.msk [vmem:[#allocation4 + $0x1a8] sm:$0xff] %vm183, %v1931
  %1948 = vst [vmem:[#allocation4 + $0x1b0] sm:$0xff] %v1932
  %1949 = vst.msk [vmem:[#allocation4 + $0x1b8] sm:$0xff] %vm183, %v1933
  %1950 = vst [vmem:[#allocation4 + $0x1c0] sm:$0xff] %v1934
  %1951 = vst.msk [vmem:[#allocation4 + $0x1c8] sm:$0xff] %vm183, %v1935
  %1952 = vst [vmem:[#allocation4 + $0x1d0] sm:$0xff] %v1936
  %1953 = vst.msk [vmem:[#allocation4 + $0x1d8] sm:$0xff] %vm183, %v1937
  %1954 = vst [vmem:[#allocation4 + $0x1e0] sm:$0xff] %v1938
  %1955 = vst.msk [vmem:[#allocation4 + $0x1e8] sm:$0xff] %vm183, %v1939
  %1956 = vst [vmem:[#allocation4 + $0x1f0] sm:$0xff] %v1940
  %1957 = vst.msk [vmem:[#allocation4 + $0x1f8] sm:$0xff] %vm183, %v1941
  %v1958 = vld [vmem:[#allocation3 + $0xc8] sm:$0xff]
  %v1959 = vld [vmem:[#allocation3 + $0xd0] sm:$0xff]
  %v1960 = vld [vmem:[#allocation3 + $0xe0] sm:$0xff]
  %v1961 = vld [vmem:[#allocation3 + $0xe8] sm:$0xff]
  %v1962 = vld [vmem:[#allocation3 + $0xf8] sm:$0xff]
  %v1963 = vld [vmem:[#allocation3 + $0x100] sm:$0xff]
  %v1964 = vld [vmem:[#allocation3 + $0x110] sm:$0xff]
  %v1965 = vld [vmem:[#allocation3 + $0x118] sm:$0xff]
  %v1966 = vld [vmem:[#allocation3 + $0x128] sm:$0xff]
  %v1967 = vld [vmem:[#allocation3 + $0x130] sm:$0xff]
  %v1968 = vld [vmem:[#allocation3 + $0x140] sm:$0xff]
  %v1969 = vld [vmem:[#allocation3 + $0x148] sm:$0xff]
  %v1970 = vld [vmem:[#allocation3 + $0x158] sm:$0xff]
  %v1971 = vld [vmem:[#allocation3 + $0x160] sm:$0xff]
  %v1972 = vld [vmem:[#allocation3 + $0x170] sm:$0xff]
  %v1973 = vld [vmem:[#allocation3 + $0x178] sm:$0xff]
  %1974 = vst [vmem:[#allocation4 + $0x200] sm:$0xff] %v1958
  %1975 = vst.msk [vmem:[#allocation4 + $0x208] sm:$0xff] %vm183, %v1959
  %1976 = vst [vmem:[#allocation4 + $0x210] sm:$0xff] %v1960
  %1977 = vst.msk [vmem:[#allocation4 + $0x218] sm:$0xff] %vm183, %v1961
  %1978 = vst [vmem:[#allocation4 + $0x220] sm:$0xff] %v1962
  %1979 = vst.msk [vmem:[#allocation4 + $0x228] sm:$0xff] %vm183, %v1963
  %1980 = vst [vmem:[#allocation4 + $0x230] sm:$0xff] %v1964
  %1981 = vst.msk [vmem:[#allocation4 + $0x238] sm:$0xff] %vm183, %v1965
  %1982 = vst [vmem:[#allocation4 + $0x240] sm:$0xff] %v1966
  %1983 = vst.msk [vmem:[#allocation4 + $0x248] sm:$0xff] %vm183, %v1967
  %1984 = vst [vmem:[#allocation4 + $0x250] sm:$0xff] %v1968
  %1985 = vst.msk [vmem:[#allocation4 + $0x258] sm:$0xff] %vm183, %v1969
  %1986 = vst [vmem:[#allocation4 + $0x260] sm:$0xff] %v1970
  %1987 = vst.msk [vmem:[#allocation4 + $0x268] sm:$0xff] %vm183, %v1971
  %1988 = vst [vmem:[#allocation4 + $0x270] sm:$0xff] %v1972
  %1989 = vst.msk [vmem:[#allocation4 + $0x278] sm:$0xff] %vm183, %v1973
  %v1990 = vld [vmem:[#allocation3 + $0x188] sm:$0xff]
  %v1991 = vld [vmem:[#allocation3 + $0x190] sm:$0xff]
  %v1992 = vld [vmem:[#allocation3 + $0x1a0] sm:$0xff]
  %v1993 = vld [vmem:[#allocation3 + $0x1a8] sm:$0xff]
  %v1994 = vld [vmem:[#allocation3 + $0x1b8] sm:$0xff]
  %v1995 = vld [vmem:[#allocation3 + $0x1c0] sm:$0xff]
  %v1996 = vld [vmem:[#allocation3 + $0x1d0] sm:$0xff]
  %v1997 = vld [vmem:[#allocation3 + $0x1d8] sm:$0xff]
  %v1998 = vld [vmem:[#allocation3 + $0x1e8] sm:$0xff]
  %v1999 = vld [vmem:[#allocation3 + $0x1f0] sm:$0xff]
  %v2000 = vld [vmem:[#allocation3 + $0x200] sm:$0xff]
  %v2001 = vld [vmem:[#allocation3 + $0x208] sm:$0xff]
  %v2002 = vld [vmem:[#allocation3 + $0x218] sm:$0xff]
  %v2003 = vld [vmem:[#allocation3 + $0x220] sm:$0xff]
  %v2004 = vld [vmem:[#allocation3 + $0x230] sm:$0xff]
  %v2005 = vld [vmem:[#allocation3 + $0x238] sm:$0xff]
  %2006 = vst [vmem:[#allocation4 + $0x280] sm:$0xff] %v1990
  %2007 = vst.msk [vmem:[#allocation4 + $0x288] sm:$0xff] %vm183, %v1991
  %2008 = vst [vmem:[#allocation4 + $0x290] sm:$0xff] %v1992
  %2009 = vst.msk [vmem:[#allocation4 + $0x298] sm:$0xff] %vm183, %v1993
  %2010 = vst [vmem:[#allocation4 + $0x2a0] sm:$0xff] %v1994
  %2011 = vst.msk [vmem:[#allocation4 + $0x2a8] sm:$0xff] %vm183, %v1995
  %2012 = vst [vmem:[#allocation4 + $0x2b0] sm:$0xff] %v1996
  %2013 = vst.msk [vmem:[#allocation4 + $0x2b8] sm:$0xff] %vm183, %v1997
  %2014 = vst [vmem:[#allocation4 + $0x2c0] sm:$0xff] %v1998
  %2015 = vst.msk [vmem:[#allocation4 + $0x2c8] sm:$0xff] %vm183, %v1999
  %2016 = vst [vmem:[#allocation4 + $0x2d0] sm:$0xff] %v2000
  %2017 = vst.msk [vmem:[#allocation4 + $0x2d8] sm:$0xff] %vm183, %v2001
  %2018 = vst [vmem:[#allocation4 + $0x2e0] sm:$0xff] %v2002
  %2019 = vst.msk [vmem:[#allocation4 + $0x2e8] sm:$0xff] %vm183, %v2003
  %2020 = vst [vmem:[#allocation4 + $0x2f0] sm:$0xff] %v2004
  %2021 = vst.msk [vmem:[#allocation4 + $0x2f8] sm:$0xff] %vm183, %v2005
  %v2022 = vld [vmem:[#allocation3 + $0x8] sm:$0xff]
  %v2023 = vld [vmem:[#allocation3 + $0x10] sm:$0xff]
  %v2024 = vld [vmem:[#allocation3 + $0x20] sm:$0xff]
  %v2025 = vld [vmem:[#allocation3 + $0x28] sm:$0xff]
  %v2026 = vld [vmem:[#allocation3 + $0x38] sm:$0xff]
  %v2027 = vld [vmem:[#allocation3 + $0x40] sm:$0xff]
  %v2028 = vld [vmem:[#allocation3 + $0x50] sm:$0xff]
  %v2029 = vld [vmem:[#allocation3 + $0x58] sm:$0xff]
  %v2030 = vld [vmem:[#allocation3 + $0x68] sm:$0xff]
  %v2031 = vld [vmem:[#allocation3 + $0x70] sm:$0xff]
  %v2032 = vld [vmem:[#allocation3 + $0x80] sm:$0xff]
  %v2033 = vld [vmem:[#allocation3 + $0x88] sm:$0xff]
  %v2034 = vld [vmem:[#allocation3 + $0x98] sm:$0xff]
  %v2035 = vld [vmem:[#allocation3 + $0xa0] sm:$0xff]
  %v2036 = vld [vmem:[#allocation3 + $0xb0] sm:$0xff]
  %v2037 = vld [vmem:[#allocation3 + $0xb8] sm:$0xff]
  %2054 = vrot.lane.b32.xlu0 %v2022, 114
  %v2055 = vpop.permute.xlu0 %2054
  %2056 = vrot.lane.b32.xlu0 %v2023, 114
  %v2057 = vpop.permute.xlu0 %2056
  %2058 = vrot.lane.b32.xlu0 %v2024, 114
  %v2059 = vpop.permute.xlu0 %2058
  %2060 = vrot.lane.b32.xlu0 %v2025, 114
  %v2061 = vpop.permute.xlu0 %2060
  %2062 = vrot.lane.b32.xlu0 %v2026, 114
  %v2063 = vpop.permute.xlu0 %2062
  %2064 = vrot.lane.b32.xlu0 %v2027, 114
  %v2065 = vpop.permute.xlu0 %2064
  %2066 = vrot.lane.b32.xlu0 %v2028, 114
  %v2067 = vpop.permute.xlu0 %2066
  %2068 = vrot.lane.b32.xlu0 %v2029, 114
  %v2069 = vpop.permute.xlu0 %2068
  %2070 = vrot.lane.b32.xlu0 %v2030, 114
  %v2071 = vpop.permute.xlu0 %2070
  %2072 = vrot.lane.b32.xlu0 %v2031, 114
  %v2073 = vpop.permute.xlu0 %2072
  %2074 = vrot.lane.b32.xlu0 %v2032, 114
  %v2075 = vpop.permute.xlu0 %2074
  %2076 = vrot.lane.b32.xlu0 %v2033, 114
  %v2077 = vpop.permute.xlu0 %2076
  %2078 = vrot.lane.b32.xlu0 %v2034, 114
  %v2079 = vpop.permute.xlu0 %2078
  %2080 = vrot.lane.b32.xlu0 %v2035, 114
  %v2081 = vpop.permute.xlu0 %2080
  %2082 = vrot.lane.b32.xlu0 %v2036, 114
  %v2083 = vpop.permute.xlu0 %2082
  %2084 = vrot.lane.b32.xlu0 %v2037, 114
  %v2085 = vpop.permute.xlu0 %2084
  %vm2086 = vcmask 932864
  %v2087 = vsel %vm2086, %v2055, %v2057
  %v2088 = vsel %vm2086, %v2059, %v2061
  %v2089 = vsel %vm2086, %v2063, %v2065
  %v2090 = vsel %vm2086, %v2067, %v2069
  %v2091 = vsel %vm2086, %v2071, %v2073
  %v2092 = vsel %vm2086, %v2075, %v2077
  %v2093 = vsel %vm2086, %v2079, %v2081
  %v2094 = vsel %vm2086, %v2083, %v2085
  %2111 = vst [vmem:[#allocation4 + $0x300] sm:$0xff] %v2087
  %2112 = vst.msk [vmem:[#allocation4 + $0x308] sm:$0xff] %vm183, %v2057
  %2113 = vst [vmem:[#allocation4 + $0x310] sm:$0xff] %v2088
  %2114 = vst.msk [vmem:[#allocation4 + $0x318] sm:$0xff] %vm183, %v2061
  %2115 = vst [vmem:[#allocation4 + $0x320] sm:$0xff] %v2089
  %2116 = vst.msk [vmem:[#allocation4 + $0x328] sm:$0xff] %vm183, %v2065
  %2117 = vst [vmem:[#allocation4 + $0x330] sm:$0xff] %v2090
  %2118 = vst.msk [vmem:[#allocation4 + $0x338] sm:$0xff] %vm183, %v2069
  %2119 = vst [vmem:[#allocation4 + $0x340] sm:$0xff] %v2091
  %2120 = vst.msk [vmem:[#allocation4 + $0x348] sm:$0xff] %vm183, %v2073
  %2121 = vst [vmem:[#allocation4 + $0x350] sm:$0xff] %v2092
  %2122 = vst.msk [vmem:[#allocation4 + $0x358] sm:$0xff] %vm183, %v2077
  %2123 = vst [vmem:[#allocation4 + $0x360] sm:$0xff] %v2093
  %2124 = vst.msk [vmem:[#allocation4 + $0x368] sm:$0xff] %vm183, %v2081
  %2125 = vst [vmem:[#allocation4 + $0x370] sm:$0xff] %v2094
  %2126 = vst.msk [vmem:[#allocation4 + $0x378] sm:$0xff] %vm183, %v2085
  %v2127 = vld [vmem:[#allocation3 + $0xc8] sm:$0xff]
  %v2128 = vld [vmem:[#allocation3 + $0xd0] sm:$0xff]
  %v2129 = vld [vmem:[#allocation3 + $0xe0] sm:$0xff]
  %v2130 = vld [vmem:[#allocation3 + $0xe8] sm:$0xff]
  %v2131 = vld [vmem:[#allocation3 + $0xf8] sm:$0xff]
  %v2132 = vld [vmem:[#allocation3 + $0x100] sm:$0xff]
  %v2133 = vld [vmem:[#allocation3 + $0x110] sm:$0xff]
  %v2134 = vld [vmem:[#allocation3 + $0x118] sm:$0xff]
  %v2135 = vld [vmem:[#allocation3 + $0x128] sm:$0xff]
  %v2136 = vld [vmem:[#allocation3 + $0x130] sm:$0xff]
  %v2137 = vld [vmem:[#allocation3 + $0x140] sm:$0xff]
  %v2138 = vld [vmem:[#allocation3 + $0x148] sm:$0xff]
  %v2139 = vld [vmem:[#allocation3 + $0x158] sm:$0xff]
  %v2140 = vld [vmem:[#allocation3 + $0x160] sm:$0xff]
  %v2141 = vld [vmem:[#allocation3 + $0x170] sm:$0xff]
  %v2142 = vld [vmem:[#allocation3 + $0x178] sm:$0xff]
  %2159 = vrot.lane.b32.xlu0 %v2127, 114
  %v2160 = vpop.permute.xlu0 %2159
  %2161 = vrot.lane.b32.xlu0 %v2128, 114
  %v2162 = vpop.permute.xlu0 %2161
  %2163 = vrot.lane.b32.xlu0 %v2129, 114
  %v2164 = vpop.permute.xlu0 %2163
  %2165 = vrot.lane.b32.xlu0 %v2130, 114
  %v2166 = vpop.permute.xlu0 %2165
  %2167 = vrot.lane.b32.xlu0 %v2131, 114
  %v2168 = vpop.permute.xlu0 %2167
  %2169 = vrot.lane.b32.xlu0 %v2132, 114
  %v2170 = vpop.permute.xlu0 %2169
  %2171 = vrot.lane.b32.xlu0 %v2133, 114
  %v2172 = vpop.permute.xlu0 %2171
  %2173 = vrot.lane.b32.xlu0 %v2134, 114
  %v2174 = vpop.permute.xlu0 %2173
  %2175 = vrot.lane.b32.xlu0 %v2135, 114
  %v2176 = vpop.permute.xlu0 %2175
  %2177 = vrot.lane.b32.xlu0 %v2136, 114
  %v2178 = vpop.permute.xlu0 %2177
  %2179 = vrot.lane.b32.xlu0 %v2137, 114
  %v2180 = vpop.permute.xlu0 %2179
  %2181 = vrot.lane.b32.xlu0 %v2138, 114
  %v2182 = vpop.permute.xlu0 %2181
  %2183 = vrot.lane.b32.xlu0 %v2139, 114
  %v2184 = vpop.permute.xlu0 %2183
  %2185 = vrot.lane.b32.xlu0 %v2140, 114
  %v2186 = vpop.permute.xlu0 %2185
  %2187 = vrot.lane.b32.xlu0 %v2141, 114
  %v2188 = vpop.permute.xlu0 %2187
  %2189 = vrot.lane.b32.xlu0 %v2142, 114
  %v2190 = vpop.permute.xlu0 %2189
  %v2191 = vsel %vm2086, %v2160, %v2162
  %v2192 = vsel %vm2086, %v2164, %v2166
  %v2193 = vsel %vm2086, %v2168, %v2170
  %v2194 = vsel %vm2086, %v2172, %v2174
  %v2195 = vsel %vm2086, %v2176, %v2178
  %v2196 = vsel %vm2086, %v2180, %v2182
  %v2197 = vsel %vm2086, %v2184, %v2186
  %v2198 = vsel %vm2086, %v2188, %v2190
  %2215 = vst [vmem:[#allocation4 + $0x380] sm:$0xff] %v2191
  %2216 = vst.msk [vmem:[#allocation4 + $0x388] sm:$0xff] %vm183, %v2162
  %2217 = vst [vmem:[#allocation4 + $0x390] sm:$0xff] %v2192
  %2218 = vst.msk [vmem:[#allocation4 + $0x398] sm:$0xff] %vm183, %v2166
  %2219 = vst [vmem:[#allocation4 + $0x3a0] sm:$0xff] %v2193
  %2220 = vst.msk [vmem:[#allocation4 + $0x3a8] sm:$0xff] %vm183, %v2170
  %2221 = vst [vmem:[#allocation4 + $0x3b0] sm:$0xff] %v2194
  %2222 = vst.msk [vmem:[#allocation4 + $0x3b8] sm:$0xff] %vm183, %v2174
  %2223 = vst [vmem:[#allocation4 + $0x3c0] sm:$0xff] %v2195
  %2224 = vst.msk [vmem:[#allocation4 + $0x3c8] sm:$0xff] %vm183, %v2178
  %2225 = vst [vmem:[#allocation4 + $0x3d0] sm:$0xff] %v2196
  %2226 = vst.msk [vmem:[#allocation4 + $0x3d8] sm:$0xff] %vm183, %v2182
  %2227 = vst [vmem:[#allocation4 + $0x3e0] sm:$0xff] %v2197
  %2228 = vst.msk [vmem:[#allocation4 + $0x3e8] sm:$0xff] %vm183, %v2186
  %2229 = vst [vmem:[#allocation4 + $0x3f0] sm:$0xff] %v2198
  %2230 = vst.msk [vmem:[#allocation4 + $0x3f8] sm:$0xff] %vm183, %v2190
  %v2231 = vld [vmem:[#allocation3 + $0x188] sm:$0xff]
  %v2232 = vld [vmem:[#allocation3 + $0x190] sm:$0xff]
  %v2233 = vld [vmem:[#allocation3 + $0x1a0] sm:$0xff]
  %v2234 = vld [vmem:[#allocation3 + $0x1a8] sm:$0xff]
  %v2235 = vld [vmem:[#allocation3 + $0x1b8] sm:$0xff]
  %v2236 = vld [vmem:[#allocation3 + $0x1c0] sm:$0xff]
  %v2237 = vld [vmem:[#allocation3 + $0x1d0] sm:$0xff]
  %v2238 = vld [vmem:[#allocation3 + $0x1d8] sm:$0xff]
  %v2239 = vld [vmem:[#allocation3 + $0x1e8] sm:$0xff]
  %v2240 = vld [vmem:[#allocation3 + $0x1f0] sm:$0xff]
  %v2241 = vld [vmem:[#allocation3 + $0x200] sm:$0xff]
  %v2242 = vld [vmem:[#allocation3 + $0x208] sm:$0xff]
  %v2243 = vld [vmem:[#allocation3 + $0x218] sm:$0xff]
  %v2244 = vld [vmem:[#allocation3 + $0x220] sm:$0xff]
  %v2245 = vld [vmem:[#allocation3 + $0x230] sm:$0xff]
  %v2246 = vld [vmem:[#allocation3 + $0x238] sm:$0xff]
  %2263 = vrot.lane.b32.xlu0 %v2231, 114
  %v2264 = vpop.permute.xlu0 %2263
  %2265 = vrot.lane.b32.xlu0 %v2232, 114
  %v2266 = vpop.permute.xlu0 %2265
  %2267 = vrot.lane.b32.xlu0 %v2233, 114
  %v2268 = vpop.permute.xlu0 %2267
  %2269 = vrot.lane.b32.xlu0 %v2234, 114
  %v2270 = vpop.permute.xlu0 %2269
  %2271 = vrot.lane.b32.xlu0 %v2235, 114
  %v2272 = vpop.permute.xlu0 %2271
  %2273 = vrot.lane.b32.xlu0 %v2236, 114
  %v2274 = vpop.permute.xlu0 %2273
  %2275 = vrot.lane.b32.xlu0 %v2237, 114
  %v2276 = vpop.permute.xlu0 %2275
  %2277 = vrot.lane.b32.xlu0 %v2238, 114
  %v2278 = vpop.permute.xlu0 %2277
  %2279 = vrot.lane.b32.xlu0 %v2239, 114
  %v2280 = vpop.permute.xlu0 %2279
  %2281 = vrot.lane.b32.xlu0 %v2240, 114
  %v2282 = vpop.permute.xlu0 %2281
  %2283 = vrot.lane.b32.xlu0 %v2241, 114
  %v2284 = vpop.permute.xlu0 %2283
  %2285 = vrot.lane.b32.xlu0 %v2242, 114
  %v2286 = vpop.permute.xlu0 %2285
  %2287 = vrot.lane.b32.xlu0 %v2243, 114
  %v2288 = vpop.permute.xlu0 %2287
  %2289 = vrot.lane.b32.xlu0 %v2244, 114
  %v2290 = vpop.permute.xlu0 %2289
  %2291 = vrot.lane.b32.xlu0 %v2245, 114
  %v2292 = vpop.permute.xlu0 %2291
  %2293 = vrot.lane.b32.xlu0 %v2246, 114
  %v2294 = vpop.permute.xlu0 %2293
  %v2295 = vsel %vm2086, %v2264, %v2266
  %v2296 = vsel %vm2086, %v2268, %v2270
  %v2297 = vsel %vm2086, %v2272, %v2274
  %v2298 = vsel %vm2086, %v2276, %v2278
  %v2299 = vsel %vm2086, %v2280, %v2282
  %v2300 = vsel %vm2086, %v2284, %v2286
  %v2301 = vsel %vm2086, %v2288, %v2290
  %v2302 = vsel %vm2086, %v2292, %v2294
  %2319 = vst [vmem:[#allocation4 + $0x400] sm:$0xff] %v2295
  %2320 = vst.msk [vmem:[#allocation4 + $0x408] sm:$0xff] %vm183, %v2266
  %2321 = vst [vmem:[#allocation4 + $0x410] sm:$0xff] %v2296
  %2322 = vst.msk [vmem:[#allocation4 + $0x418] sm:$0xff] %vm183, %v2270
  %2323 = vst [vmem:[#allocation4 + $0x420] sm:$0xff] %v2297
  %2324 = vst.msk [vmem:[#allocation4 + $0x428] sm:$0xff] %vm183, %v2274
  %2325 = vst [vmem:[#allocation4 + $0x430] sm:$0xff] %v2298
  %2326 = vst.msk [vmem:[#allocation4 + $0x438] sm:$0xff] %vm183, %v2278
  %2327 = vst [vmem:[#allocation4 + $0x440] sm:$0xff] %v2299
  %2328 = vst.msk [vmem:[#allocation4 + $0x448] sm:$0xff] %vm183, %v2282
  %2329 = vst [vmem:[#allocation4 + $0x450] sm:$0xff] %v2300
  %2330 = vst.msk [vmem:[#allocation4 + $0x458] sm:$0xff] %vm183, %v2286
  %2331 = vst [vmem:[#allocation4 + $0x460] sm:$0xff] %v2301
  %2332 = vst.msk [vmem:[#allocation4 + $0x468] sm:$0xff] %vm183, %v2290
  %2333 = vst [vmem:[#allocation4 + $0x470] sm:$0xff] %v2302
  %2334 = vst.msk [vmem:[#allocation4 + $0x478] sm:$0xff] %vm183, %v2294
  %v2335 = vld [vmem:[%s1] sm:$0xff]
  %v2336 = vld [vmem:[%s1 + $0x8] sm:$0xff]
  %v2337 = vld [vmem:[%s1 + $0x10] sm:$0xff]
  %v2338 = vld [vmem:[%s1 + $0x18] sm:$0xff]
  %v2339 = vld [vmem:[%s1 + $0x20] sm:$0xff]
  %v2340 = vld [vmem:[%s1 + $0x28] sm:$0xff]
  %v2341 = vld [vmem:[%s1 + $0x30] sm:$0xff]
  %v2342 = vld [vmem:[%s1 + $0x38] sm:$0xff]
  %v2343 = vld [vmem:[%s1 + $0x40] sm:$0xff]
  %v2344 = vld [vmem:[%s1 + $0x48] sm:$0xff]
  %v2345 = vld [vmem:[%s1 + $0x50] sm:$0xff]
  %v2346 = vld [vmem:[%s1 + $0x58] sm:$0xff]
  %v2347 = vld [vmem:[%s1 + $0x60] sm:$0xff]
  %v2348 = vld [vmem:[%s1 + $0x68] sm:$0xff]
  %v2349 = vld [vmem:[%s1 + $0x70] sm:$0xff]
  %v2350 = vld [vmem:[%s1 + $0x78] sm:$0xff]
  %v2351 = vld [vmem:[%s1 + $0x80] sm:$0xff]
  %v2352 = vld [vmem:[%s1 + $0x88] sm:$0xff]
  %v2353 = vld [vmem:[%s1 + $0x90] sm:$0xff]
  %v2354 = vld [vmem:[%s1 + $0x98] sm:$0xff]
  %v2355 = vld [vmem:[%s1 + $0xa0] sm:$0xff]
  %v2356 = vld [vmem:[%s1 + $0xa8] sm:$0xff]
  %v2357 = vld [vmem:[%s1 + $0xb0] sm:$0xff]
  %v2358 = vld [vmem:[%s1 + $0xb8] sm:$0xff]
  %v2359 = vld [vmem:[%s1 + $0xc0] sm:$0xff]
  %v2360 = vld [vmem:[%s1 + $0xc8] sm:$0xff]
  %v2361 = vld [vmem:[%s1 + $0xd0] sm:$0xff]
  %v2362 = vld [vmem:[%s1 + $0xd8] sm:$0xff]
  %v2363 = vld [vmem:[%s1 + $0xe0] sm:$0xff]
  %v2364 = vld [vmem:[%s1 + $0xe8] sm:$0xff]
  %v2365 = vld [vmem:[%s1 + $0xf0] sm:$0xff]
  %v2366 = vld [vmem:[%s1 + $0xf8] sm:$0xff]
  %v2367 = vld [vmem:[%s1 + $0x100] sm:$0xff]
  %v2368 = vld [vmem:[%s1 + $0x108] sm:$0xff]
  %v2369 = vld [vmem:[%s1 + $0x110] sm:$0xff]
  %v2370 = vld [vmem:[%s1 + $0x118] sm:$0xff]
  %v2371 = vld [vmem:[%s1 + $0x120] sm:$0xff]
  %v2372 = vld [vmem:[%s1 + $0x128] sm:$0xff]
  %v2373 = vld [vmem:[%s1 + $0x130] sm:$0xff]
  %v2374 = vld [vmem:[%s1 + $0x138] sm:$0xff]
  %v2375 = vld [vmem:[%s1 + $0x140] sm:$0xff]
  %v2376 = vld [vmem:[%s1 + $0x148] sm:$0xff]
  %v2377 = vld [vmem:[%s1 + $0x150] sm:$0xff]
  %v2378 = vld [vmem:[%s1 + $0x158] sm:$0xff]
  %v2379 = vld [vmem:[%s1 + $0x160] sm:$0xff]
  %v2380 = vld [vmem:[%s1 + $0x168] sm:$0xff]
  %v2381 = vld [vmem:[%s1 + $0x170] sm:$0xff]
  %v2382 = vld [vmem:[%s1 + $0x178] sm:$0xff]
  %v2383 = vld [vmem:[%s1 + $0x180] sm:$0xff]
  %v2384 = vld [vmem:[%s1 + $0x188] sm:$0xff]
  %v2385 = vld [vmem:[%s1 + $0x190] sm:$0xff]
  %v2386 = vld [vmem:[%s1 + $0x198] sm:$0xff]
  %v2387 = vld [vmem:[%s1 + $0x1a0] sm:$0xff]
  %v2388 = vld [vmem:[%s1 + $0x1a8] sm:$0xff]
  %v2389 = vld [vmem:[%s1 + $0x1b0] sm:$0xff]
  %v2390 = vld [vmem:[%s1 + $0x1b8] sm:$0xff]
  %v2391 = vld [vmem:[%s1 + $0x1c0] sm:$0xff]
  %v2392 = vld [vmem:[%s1 + $0x1c8] sm:$0xff]
  %v2393 = vld [vmem:[%s1 + $0x1d0] sm:$0xff]
  %v2394 = vld [vmem:[%s1 + $0x1d8] sm:$0xff]
  %v2395 = vld [vmem:[%s1 + $0x1e0] sm:$0xff]
  %v2396 = vld [vmem:[%s1 + $0x1e8] sm:$0xff]
  %v2397 = vld [vmem:[%s1 + $0x1f0] sm:$0xff]
  %v2398 = vld [vmem:[%s1 + $0x1f8] sm:$0xff]
  %v2399 = vld [vmem:[%s1 + $0x200] sm:$0xff]
  %v2400 = vld [vmem:[%s1 + $0x208] sm:$0xff]
  %v2401 = vld [vmem:[%s1 + $0x210] sm:$0xff]
  %v2402 = vld [vmem:[%s1 + $0x218] sm:$0xff]
  %v2403 = vld [vmem:[%s1 + $0x220] sm:$0xff]
  %v2404 = vld [vmem:[%s1 + $0x228] sm:$0xff]
  %v2405 = vld [vmem:[%s1 + $0x230] sm:$0xff]
  %v2406 = vld [vmem:[%s1 + $0x238] sm:$0xff]
  %v2407 = vld [vmem:[%s1 + $0x240] sm:$0xff]
  %v2408 = vld [vmem:[%s1 + $0x248] sm:$0xff]
  %v2409 = vld [vmem:[%s1 + $0x250] sm:$0xff]
  %v2410 = vld [vmem:[%s1 + $0x258] sm:$0xff]
  %v2411 = vld [vmem:[%s1 + $0x260] sm:$0xff]
  %v2412 = vld [vmem:[%s1 + $0x268] sm:$0xff]
  %v2413 = vld [vmem:[%s1 + $0x270] sm:$0xff]
  %v2414 = vld [vmem:[%s1 + $0x278] sm:$0xff]
  %v2415 = vld [vmem:[%s1 + $0x280] sm:$0xff]
  %v2416 = vld [vmem:[%s1 + $0x288] sm:$0xff]
  %v2417 = vld [vmem:[%s1 + $0x290] sm:$0xff]
  %v2418 = vld [vmem:[%s1 + $0x298] sm:$0xff]
  %v2419 = vld [vmem:[%s1 + $0x2a0] sm:$0xff]
  %v2420 = vld [vmem:[%s1 + $0x2a8] sm:$0xff]
  %v2421 = vld [vmem:[%s1 + $0x2b0] sm:$0xff]
  %v2422 = vld [vmem:[%s1 + $0x2b8] sm:$0xff]
  %v2423 = vld [vmem:[%s1 + $0x2c0] sm:$0xff]
  %v2424 = vld [vmem:[%s1 + $0x2c8] sm:$0xff]
  %v2425 = vld [vmem:[%s1 + $0x2d0] sm:$0xff]
  %v2426 = vld [vmem:[%s1 + $0x2d8] sm:$0xff]
  %v2427 = vld [vmem:[%s1 + $0x2e0] sm:$0xff]
  %v2428 = vld [vmem:[%s1 + $0x2e8] sm:$0xff]
  %v2429 = vld [vmem:[%s1 + $0x2f0] sm:$0xff]
  %v2430 = vld [vmem:[%s1 + $0x2f8] sm:$0xff]
  %v2431 = vld [vmem:[%s1 + $0x300] sm:$0xff]
  %v2432 = vld [vmem:[%s1 + $0x308] sm:$0xff]
  %v2433 = vld [vmem:[%s1 + $0x310] sm:$0xff]
  %v2434 = vld [vmem:[%s1 + $0x318] sm:$0xff]
  %v2435 = vld [vmem:[%s1 + $0x320] sm:$0xff]
  %v2436 = vld [vmem:[%s1 + $0x328] sm:$0xff]
  %v2437 = vld [vmem:[%s1 + $0x330] sm:$0xff]
  %v2438 = vld [vmem:[%s1 + $0x338] sm:$0xff]
  %v2439 = vld [vmem:[%s1 + $0x340] sm:$0xff]
  %v2440 = vld [vmem:[%s1 + $0x348] sm:$0xff]
  %v2441 = vld [vmem:[%s1 + $0x350] sm:$0xff]
  %v2442 = vld [vmem:[%s1 + $0x358] sm:$0xff]
  %v2443 = vld [vmem:[%s1 + $0x360] sm:$0xff]
  %v2444 = vld [vmem:[%s1 + $0x368] sm:$0xff]
  %v2445 = vld [vmem:[%s1 + $0x370] sm:$0xff]
  %v2446 = vld [vmem:[%s1 + $0x378] sm:$0xff]
  %v2447 = vld [vmem:[%s1 + $0x380] sm:$0xff]
  %v2448 = vld [vmem:[%s1 + $0x388] sm:$0xff]
  %v2449 = vld [vmem:[%s1 + $0x390] sm:$0xff]
  %v2450 = vld [vmem:[%s1 + $0x398] sm:$0xff]
  %v2451 = vld [vmem:[%s1 + $0x3a0] sm:$0xff]
  %v2452 = vld [vmem:[%s1 + $0x3a8] sm:$0xff]
  %v2453 = vld [vmem:[%s1 + $0x3b0] sm:$0xff]
  %v2454 = vld [vmem:[%s1 + $0x3b8] sm:$0xff]
  %v2455 = vld [vmem:[%s1 + $0x3c0] sm:$0xff]
  %v2456 = vld [vmem:[%s1 + $0x3c8] sm:$0xff]
  %v2457 = vld [vmem:[%s1 + $0x3d0] sm:$0xff]
  %v2458 = vld [vmem:[%s1 + $0x3d8] sm:$0xff]
  %v2459 = vld [vmem:[%s1 + $0x3e0] sm:$0xff]
  %v2460 = vld [vmem:[%s1 + $0x3e8] sm:$0xff]
  %v2461 = vld [vmem:[%s1 + $0x3f0] sm:$0xff]
  %v2462 = vld [vmem:[%s1 + $0x3f8] sm:$0xff]
  %v2463 = vld [vmem:[%s1 + $0x400] sm:$0xff]
  %v2464 = vld [vmem:[%s1 + $0x408] sm:$0xff]
  %v2465 = vld [vmem:[%s1 + $0x410] sm:$0xff]
  %v2466 = vld [vmem:[%s1 + $0x418] sm:$0xff]
  %v2467 = vld [vmem:[%s1 + $0x420] sm:$0xff]
  %v2468 = vld [vmem:[%s1 + $0x428] sm:$0xff]
  %v2469 = vld [vmem:[%s1 + $0x430] sm:$0xff]
  %v2470 = vld [vmem:[%s1 + $0x438] sm:$0xff]
  %v2471 = vld [vmem:[%s1 + $0x440] sm:$0xff]
  %v2472 = vld [vmem:[%s1 + $0x448] sm:$0xff]
  %v2473 = vld [vmem:[%s1 + $0x450] sm:$0xff]
  %v2474 = vld [vmem:[%s1 + $0x458] sm:$0xff]
  %v2475 = vld [vmem:[%s1 + $0x460] sm:$0xff]
  %v2476 = vld [vmem:[%s1 + $0x468] sm:$0xff]
  %v2477 = vld [vmem:[%s1 + $0x470] sm:$0xff]
  %v2478 = vld [vmem:[%s1 + $0x478] sm:$0xff]
  %v2479 = vld [vmem:[%s1 + $0x480] sm:$0xff]
  %v2480 = vld [vmem:[%s1 + $0x488] sm:$0xff]
  %v2481 = vld [vmem:[%s1 + $0x490] sm:$0xff]
  %v2482 = vld [vmem:[%s1 + $0x498] sm:$0xff]
  %v2483 = vld [vmem:[%s1 + $0x4a0] sm:$0xff]
  %v2484 = vld [vmem:[%s1 + $0x4a8] sm:$0xff]
  %v2485 = vld [vmem:[%s1 + $0x4b0] sm:$0xff]
  %v2486 = vld [vmem:[%s1 + $0x4b8] sm:$0xff]
  %v2487 = vld [vmem:[%s1 + $0x4c0] sm:$0xff]
  %v2488 = vld [vmem:[%s1 + $0x4c8] sm:$0xff]
  %v2489 = vld [vmem:[%s1 + $0x4d0] sm:$0xff]
  %v2490 = vld [vmem:[%s1 + $0x4d8] sm:$0xff]
  %v2491 = vld [vmem:[%s1 + $0x4e0] sm:$0xff]
  %v2492 = vld [vmem:[%s1 + $0x4e8] sm:$0xff]
  %v2493 = vld [vmem:[%s1 + $0x4f0] sm:$0xff]
  %v2494 = vld [vmem:[%s1 + $0x4f8] sm:$0xff]
  %v2495 = vld [vmem:[#allocation4] sm:$0xff]
  %v2496 = vld [vmem:[#allocation4 + $0x8] sm:$0xff]
  %v2497 = vld [vmem:[#allocation4 + $0x10] sm:$0xff]
  %v2498 = vld [vmem:[#allocation4 + $0x18] sm:$0xff]
  %v2499 = vld [vmem:[#allocation4 + $0x20] sm:$0xff]
  %v2500 = vld [vmem:[#allocation4 + $0x28] sm:$0xff]
  %v2501 = vld [vmem:[#allocation4 + $0x30] sm:$0xff]
  %v2502 = vld [vmem:[#allocation4 + $0x38] sm:$0xff]
  %v2503 = vld [vmem:[#allocation4 + $0x40] sm:$0xff]
  %v2504 = vld [vmem:[#allocation4 + $0x48] sm:$0xff]
  %v2505 = vld [vmem:[#allocation4 + $0x50] sm:$0xff]
  %v2506 = vld [vmem:[#allocation4 + $0x58] sm:$0xff]
  %v2507 = vld [vmem:[#allocation4 + $0x60] sm:$0xff]
  %v2508 = vld [vmem:[#allocation4 + $0x68] sm:$0xff]
  %v2509 = vld [vmem:[#allocation4 + $0x70] sm:$0xff]
  %v2510 = vld [vmem:[#allocation4 + $0x78] sm:$0xff]
  %v2511 = vld [vmem:[#allocation4 + $0x80] sm:$0xff]
  %v2512 = vld [vmem:[#allocation4 + $0x88] sm:$0xff]
  %v2513 = vld [vmem:[#allocation4 + $0x90] sm:$0xff]
  %v2514 = vld [vmem:[#allocation4 + $0x98] sm:$0xff]
  %v2515 = vld [vmem:[#allocation4 + $0xa0] sm:$0xff]
  %v2516 = vld [vmem:[#allocation4 + $0xa8] sm:$0xff]
  %v2517 = vld [vmem:[#allocation4 + $0xb0] sm:$0xff]
  %v2518 = vld [vmem:[#allocation4 + $0xb8] sm:$0xff]
  %v2519 = vld [vmem:[#allocation4 + $0xc0] sm:$0xff]
  %v2520 = vld [vmem:[#allocation4 + $0xc8] sm:$0xff]
  %v2521 = vld [vmem:[#allocation4 + $0xd0] sm:$0xff]
  %v2522 = vld [vmem:[#allocation4 + $0xd8] sm:$0xff]
  %v2523 = vld [vmem:[#allocation4 + $0xe0] sm:$0xff]
  %v2524 = vld [vmem:[#allocation4 + $0xe8] sm:$0xff]
  %v2525 = vld [vmem:[#allocation4 + $0xf0] sm:$0xff]
  %v2526 = vld [vmem:[#allocation4 + $0xf8] sm:$0xff]
  %v2527 = vld [vmem:[#allocation4 + $0x100] sm:$0xff]
  %v2528 = vld [vmem:[#allocation4 + $0x108] sm:$0xff]
  %v2529 = vld [vmem:[#allocation4 + $0x110] sm:$0xff]
  %v2530 = vld [vmem:[#allocation4 + $0x118] sm:$0xff]
  %v2531 = vld [vmem:[#allocation4 + $0x120] sm:$0xff]
  %v2532 = vld [vmem:[#allocation4 + $0x128] sm:$0xff]
  %v2533 = vld [vmem:[#allocation4 + $0x130] sm:$0xff]
  %v2534 = vld [vmem:[#allocation4 + $0x138] sm:$0xff]
  %v2535 = vld [vmem:[#allocation4 + $0x140] sm:$0xff]
  %v2536 = vld [vmem:[#allocation4 + $0x148] sm:$0xff]
  %v2537 = vld [vmem:[#allocation4 + $0x150] sm:$0xff]
  %v2538 = vld [vmem:[#allocation4 + $0x158] sm:$0xff]
  %v2539 = vld [vmem:[#allocation4 + $0x160] sm:$0xff]
  %v2540 = vld [vmem:[#allocation4 + $0x168] sm:$0xff]
  %v2541 = vld [vmem:[#allocation4 + $0x170] sm:$0xff]
  %v2542 = vld [vmem:[#allocation4 + $0x178] sm:$0xff]
  %v2543 = vld [vmem:[#allocation4 + $0x180] sm:$0xff]
  %v2544 = vld [vmem:[#allocation4 + $0x188] sm:$0xff]
  %v2545 = vld [vmem:[#allocation4 + $0x190] sm:$0xff]
  %v2546 = vld [vmem:[#allocation4 + $0x198] sm:$0xff]
  %v2547 = vld [vmem:[#allocation4 + $0x1a0] sm:$0xff]
  %v2548 = vld [vmem:[#allocation4 + $0x1a8] sm:$0xff]
  %v2549 = vld [vmem:[#allocation4 + $0x1b0] sm:$0xff]
  %v2550 = vld [vmem:[#allocation4 + $0x1b8] sm:$0xff]
  %v2551 = vld [vmem:[#allocation4 + $0x1c0] sm:$0xff]
  %v2552 = vld [vmem:[#allocation4 + $0x1c8] sm:$0xff]
  %v2553 = vld [vmem:[#allocation4 + $0x1d0] sm:$0xff]
  %v2554 = vld [vmem:[#allocation4 + $0x1d8] sm:$0xff]
  %v2555 = vld [vmem:[#allocation4 + $0x1e0] sm:$0xff]
  %v2556 = vld [vmem:[#allocation4 + $0x1e8] sm:$0xff]
  %v2557 = vld [vmem:[#allocation4 + $0x1f0] sm:$0xff]
  %v2558 = vld [vmem:[#allocation4 + $0x1f8] sm:$0xff]
  %v2559 = vld [vmem:[#allocation4 + $0x200] sm:$0xff]
  %v2560 = vld [vmem:[#allocation4 + $0x208] sm:$0xff]
  %v2561 = vld [vmem:[#allocation4 + $0x210] sm:$0xff]
  %v2562 = vld [vmem:[#allocation4 + $0x218] sm:$0xff]
  %v2563 = vld [vmem:[#allocation4 + $0x220] sm:$0xff]
  %v2564 = vld [vmem:[#allocation4 + $0x228] sm:$0xff]
  %v2565 = vld [vmem:[#allocation4 + $0x230] sm:$0xff]
  %v2566 = vld [vmem:[#allocation4 + $0x238] sm:$0xff]
  %v2567 = vld [vmem:[#allocation4 + $0x240] sm:$0xff]
  %v2568 = vld [vmem:[#allocation4 + $0x248] sm:$0xff]
  %v2569 = vld [vmem:[#allocation4 + $0x250] sm:$0xff]
  %v2570 = vld [vmem:[#allocation4 + $0x258] sm:$0xff]
  %v2571 = vld [vmem:[#allocation4 + $0x260] sm:$0xff]
  %v2572 = vld [vmem:[#allocation4 + $0x268] sm:$0xff]
  %v2573 = vld [vmem:[#allocation4 + $0x270] sm:$0xff]
  %v2574 = vld [vmem:[#allocation4 + $0x278] sm:$0xff]
  %v2575 = vld [vmem:[#allocation4 + $0x280] sm:$0xff]
  %v2576 = vld [vmem:[#allocation4 + $0x288] sm:$0xff]
  %v2577 = vld [vmem:[#allocation4 + $0x290] sm:$0xff]
  %v2578 = vld [vmem:[#allocation4 + $0x298] sm:$0xff]
  %v2579 = vld [vmem:[#allocation4 + $0x2a0] sm:$0xff]
  %v2580 = vld [vmem:[#allocation4 + $0x2a8] sm:$0xff]
  %v2581 = vld [vmem:[#allocation4 + $0x2b0] sm:$0xff]
  %v2582 = vld [vmem:[#allocation4 + $0x2b8] sm:$0xff]
  %v2583 = vld [vmem:[#allocation4 + $0x2c0] sm:$0xff]
  %v2584 = vld [vmem:[#allocation4 + $0x2c8] sm:$0xff]
  %v2585 = vld [vmem:[#allocation4 + $0x2d0] sm:$0xff]
  %v2586 = vld [vmem:[#allocation4 + $0x2d8] sm:$0xff]
  %v2587 = vld [vmem:[#allocation4 + $0x2e0] sm:$0xff]
  %v2588 = vld [vmem:[#allocation4 + $0x2e8] sm:$0xff]
  %v2589 = vld [vmem:[#allocation4 + $0x2f0] sm:$0xff]
  %v2590 = vld [vmem:[#allocation4 + $0x2f8] sm:$0xff]
  %v2591 = vld [vmem:[#allocation4 + $0x300] sm:$0xff]
  %v2592 = vld [vmem:[#allocation4 + $0x308] sm:$0xff]
  %v2593 = vld [vmem:[#allocation4 + $0x310] sm:$0xff]
  %v2594 = vld [vmem:[#allocation4 + $0x318] sm:$0xff]
  %v2595 = vld [vmem:[#allocation4 + $0x320] sm:$0xff]
  %v2596 = vld [vmem:[#allocation4 + $0x328] sm:$0xff]
  %v2597 = vld [vmem:[#allocation4 + $0x330] sm:$0xff]
  %v2598 = vld [vmem:[#allocation4 + $0x338] sm:$0xff]
  %v2599 = vld [vmem:[#allocation4 + $0x340] sm:$0xff]
  %v2600 = vld [vmem:[#allocation4 + $0x348] sm:$0xff]
  %v2601 = vld [vmem:[#allocation4 + $0x350] sm:$0xff]
  %v2602 = vld [vmem:[#allocation4 + $0x358] sm:$0xff]
  %v2603 = vld [vmem:[#allocation4 + $0x360] sm:$0xff]
  %v2604 = vld [vmem:[#allocation4 + $0x368] sm:$0xff]
  %v2605 = vld [vmem:[#allocation4 + $0x370] sm:$0xff]
  %v2606 = vld [vmem:[#allocation4 + $0x378] sm:$0xff]
  %v2607 = vld [vmem:[#allocation4 + $0x380] sm:$0xff]
  %v2608 = vld [vmem:[#allocation4 + $0x388] sm:$0xff]
  %v2609 = vld [vmem:[#allocation4 + $0x390] sm:$0xff]
  %v2610 = vld [vmem:[#allocation4 + $0x398] sm:$0xff]
  %v2611 = vld [vmem:[#allocation4 + $0x3a0] sm:$0xff]
  %v2612 = vld [vmem:[#allocation4 + $0x3a8] sm:$0xff]
  %v2613 = vld [vmem:[#allocation4 + $0x3b0] sm:$0xff]
  %v2614 = vld [vmem:[#allocation4 + $0x3b8] sm:$0xff]
  %v2615 = vld [vmem:[#allocation4 + $0x3c0] sm:$0xff]
  %v2616 = vld [vmem:[#allocation4 + $0x3c8] sm:$0xff]
  %v2617 = vld [vmem:[#allocation4 + $0x3d0] sm:$0xff]
  %v2618 = vld [vmem:[#allocation4 + $0x3d8] sm:$0xff]
  %v2619 = vld [vmem:[#allocation4 + $0x3e0] sm:$0xff]
  %v2620 = vld [vmem:[#allocation4 + $0x3e8] sm:$0xff]
  %v2621 = vld [vmem:[#allocation4 + $0x3f0] sm:$0xff]
  %v2622 = vld [vmem:[#allocation4 + $0x3f8] sm:$0xff]
  %v2623 = vld [vmem:[#allocation4 + $0x400] sm:$0xff]
  %v2624 = vld [vmem:[#allocation4 + $0x408] sm:$0xff]
  %v2625 = vld [vmem:[#allocation4 + $0x410] sm:$0xff]
  %v2626 = vld [vmem:[#allocation4 + $0x418] sm:$0xff]
  %v2627 = vld [vmem:[#allocation4 + $0x420] sm:$0xff]
  %v2628 = vld [vmem:[#allocation4 + $0x428] sm:$0xff]
  %v2629 = vld [vmem:[#allocation4 + $0x430] sm:$0xff]
  %v2630 = vld [vmem:[#allocation4 + $0x438] sm:$0xff]
  %v2631 = vld [vmem:[#allocation4 + $0x440] sm:$0xff]
  %v2632 = vld [vmem:[#allocation4 + $0x448] sm:$0xff]
  %v2633 = vld [vmem:[#allocation4 + $0x450] sm:$0xff]
  %v2634 = vld [vmem:[#allocation4 + $0x458] sm:$0xff]
  %v2635 = vld [vmem:[#allocation4 + $0x460] sm:$0xff]
  %v2636 = vld [vmem:[#allocation4 + $0x468] sm:$0xff]
  %v2637 = vld [vmem:[#allocation4 + $0x470] sm:$0xff]
  %v2638 = vld [vmem:[#allocation4 + $0x478] sm:$0xff]
  %vm2639 = vcmask 523264
  %v2641 = vsel %vm2639, %v2339, 0
  %v2644 = vsel %vm2639, %v2344, 0
  %v2647 = vsel %vm2639, %v2349, 0
  %v2650 = vsel %vm2639, %v2354, 0
  %v2653 = vsel %vm2639, %v2359, 0
  %v2656 = vsel %vm2639, %v2364, 0
  %v2659 = vsel %vm2639, %v2369, 0
  %v2662 = vsel %vm2639, %v2374, 0
  %v2665 = vsel %vm2639, %v2379, 0
  %v2668 = vsel %vm2639, %v2384, 0
  %v2671 = vsel %vm2639, %v2389, 0
  %v2674 = vsel %vm2639, %v2394, 0
  %v2677 = vsel %vm2639, %v2399, 0
  %v2680 = vsel %vm2639, %v2404, 0
  %v2683 = vsel %vm2639, %v2409, 0
  %v2686 = vsel %vm2639, %v2414, 0
  %v2689 = vsel %vm2639, %v2419, 0
  %v2692 = vsel %vm2639, %v2424, 0
  %v2695 = vsel %vm2639, %v2429, 0
  %v2698 = vsel %vm2639, %v2434, 0
  %v2701 = vsel %vm2639, %v2439, 0
  %v2704 = vsel %vm2639, %v2444, 0
  %v2707 = vsel %vm2639, %v2449, 0
  %v2710 = vsel %vm2639, %v2454, 0
  %v2713 = vsel %vm2639, %v2459, 0
  %v2716 = vsel %vm2639, %v2464, 0
  %v2719 = vsel %vm2639, %v2469, 0
  %v2722 = vsel %vm2639, %v2474, 0
  %v2725 = vsel %vm2639, %v2479, 0
  %v2728 = vsel %vm2639, %v2484, 0
  %v2731 = vsel %vm2639, %v2489, 0
  %v2734 = vsel %vm2639, %v2494, 0
  %2736 = vmatprep.subr.mxu0 %v2496
  %2737 = vmatpush1.msra.mxu0 %v2495
  %2738 = vmatprep.subr.mxu0 %v2498
  %2739 = vmatpush1.msra.mxu0 %v2497
  %2740 = vmatprep.subr.mxu0 %v2500
  %2741 = vmatpush1.msra.mxu0 %v2499
  %2742 = vmatprep.subr.mxu0 %v2502
  %2743 = vmatpush1.msra.mxu0 %v2501
  %2744 = vmatprep.subr.mxu0 %v2504
  %2745 = vmatpush1.msra.mxu0 %v2503
  %2746 = vmatprep.subr.mxu0 %v2506
  %2747 = vmatpush1.msra.mxu0 %v2505
  %2748 = vmatprep.subr.mxu0 %v2508
  %2749 = vmatpush1.msra.mxu0 %v2507
  %2750 = vmatprep.subr.mxu0 %v2510
  %2751 = vmatpush1.msra.mxu0 %v2509
  %2752 = vmatprep.subr.mxu0 %v2512
  %2753 = vmatpush1.msra.mxu0 %v2511
  %2754 = vmatprep.subr.mxu0 %v2514
  %2755 = vmatpush1.msra.mxu0 %v2513
  %2756 = vmatprep.subr.mxu0 %v2516
  %2757 = vmatpush1.msra.mxu0 %v2515
  %2758 = vmatprep.subr.mxu0 %v2518
  %2759 = vmatpush1.msra.mxu0 %v2517
  %2760 = vmatprep.subr.mxu0 %v2520
  %2761 = vmatpush1.msra.mxu0 %v2519
  %2762 = vmatprep.subr.mxu0 %v2522
  %2763 = vmatpush1.msra.mxu0 %v2521
  %2764 = vmatprep.subr.mxu0 %v2524
  %2765 = vmatpush1.msra.mxu0 %v2523
  %2766 = vmatprep.subr.mxu0 %v2526
  %2767 = vmatpush1.msra.mxu0 %v2525
  %2768 = vmatprep.subr.mxu0 %v2528
  %2769 = vmatpush1.msra.mxu0 %v2527
  %2770 = vmatprep.subr.mxu0 %v2530
  %2771 = vmatpush1.msra.mxu0 %v2529
  %2772 = vmatprep.subr.mxu0 %v2532
  %2773 = vmatpush1.msra.mxu0 %v2531
  %2774 = vmatprep.subr.mxu0 %v2534
  %2775 = vmatpush1.msra.mxu0 %v2533
  %2776 = vmatprep.subr.mxu0 %v2536
  %2777 = vmatpush1.msra.mxu0 %v2535
  %2778 = vmatprep.subr.mxu0 %v2538
  %2779 = vmatpush1.msra.mxu0 %v2537
  %2780 = vmatprep.subr.mxu0 %v2540
  %2781 = vmatpush1.msra.mxu0 %v2539
  %2782 = vmatprep.subr.mxu0 %v2542
  %2783 = vmatpush1.msra.mxu0 %v2541
  %2784 = vmatprep.subr.mxu0 %v2544
  %2785 = vmatpush1.msra.mxu0 %v2543
  %2786 = vmatprep.subr.mxu0 %v2546
  %2787 = vmatpush1.msra.mxu0 %v2545
  %2788 = vmatprep.subr.mxu0 %v2548
  %2789 = vmatpush1.msra.mxu0 %v2547
  %2790 = vmatprep.subr.mxu0 %v2550
  %2791 = vmatpush1.msra.mxu0 %v2549
  %2792 = vmatprep.subr.mxu0 %v2552
  %2793 = vmatpush1.msra.mxu0 %v2551
  %2794 = vmatprep.subr.mxu0 %v2554
  %2795 = vmatpush1.msra.mxu0 %v2553
  %2796 = vmatprep.subr.mxu0 %v2556
  %2797 = vmatpush1.msra.mxu0 %v2555
  %2798 = vmatprep.subr.mxu0 %v2558
  %2799 = vmatpush1.msra.mxu0 %v2557
  %2800 = vmatprep.mubr.f32.mxu0 %v2336
  %2801 = vmatmul.mubr.f32.gmra.mrb[0].mxu0 %v2335
  %v2802 = vpop.f32.mrb[0].mxu0
  %v2803 = vadd.f32 0.0, %v2802
  %v2804 = vpop.f32.mrb[0].mxu0
  %v2805 = vadd.f32 0.0, %v2804
  %2806 = vmatprep.mubr.f32.mxu0 %v2341
  %2807 = vmatmul.mubr.f32.gmra.mrb[0].mxu0 %v2340
  %v2808 = vpop.f32.mrb[0].mxu0
  %v2809 = vadd.f32 0.0, %v2808
  %v2810 = vpop.f32.mrb[0].mxu0
  %v2811 = vadd.f32 0.0, %v2810
  %2812 = vmatprep.mubr.f32.mxu0 %v2346
  %2813 = vmatmul.mubr.f32.gmra.mrb[0].mxu0 %v2345
  %v2814 = vpop.f32.mrb[0].mxu0
  %v2815 = vadd.f32 0.0, %v2814
  %v2816 = vpop.f32.mrb[0].mxu0
  %v2817 = vadd.f32 0.0, %v2816
  %2818 = vmatprep.mubr.f32.mxu0 %v2351
  %2819 = vmatmul.mubr.f32.gmra.mrb[0].mxu0 %v2350
  %v2820 = vpop.f32.mrb[0].mxu0
  %v2821 = vadd.f32 0.0, %v2820
  %v2822 = vpop.f32.mrb[0].mxu0
  %v2823 = vadd.f32 0.0, %v2822
  %2824 = vmatprep.mubr.f32.mxu0 %v2356
  %2825 = vmatmul.mubr.f32.gmra.mrb[0].mxu0 %v2355
  %v2826 = vpop.f32.mrb[0].mxu0
  %v2827 = vadd.f32 0.0, %v2826
  %v2828 = vpop.f32.mrb[0].mxu0
  %v2829 = vadd.f32 0.0, %v2828
  %2830 = vmatprep.mubr.f32.mxu0 %v2361
  %2831 = vmatmul.mubr.f32.gmra.mrb[0].mxu0 %v2360
  %v2832 = vpop.f32.mrb[0].mxu0
  %v2833 = vadd.f32 0.0, %v2832
  %v2834 = vpop.f32.mrb[0].mxu0
  %v2835 = vadd.f32 0.0, %v2834
  %2836 = vmatprep.mubr.f32.mxu0 %v2366
  %2837 = vmatmul.mubr.f32.gmra.mrb[0].mxu0 %v2365
  %v2838 = vpop.f32.mrb[0].mxu0
  %v2839 = vadd.f32 0.0, %v2838
  %v2840 = vpop.f32.mrb[0].mxu0
  %v2841 = vadd.f32 0.0, %v2840
  %2842 = vmatprep.mubr.f32.mxu0 %v2371
  %2843 = vmatmul.mubr.f32.gmra.mrb[0].mxu0 %v2370
  %v2844 = vpop.f32.mrb[0].mxu0
  %v2845 = vadd.f32 0.0, %v2844
  %v2846 = vpop.f32.mrb[0].mxu0
  %v2847 = vadd.f32 0.0, %v2846
  %2848 = vmatprep.mubr.f32.mxu0 %v2376
  %2849 = vmatmul.mubr.f32.gmra.mrb[0].mxu0 %v2375
  %v2850 = vpop.f32.mrb[0].mxu0
  %v2851 = vadd.f32 0.0, %v2850
  %v2852 = vpop.f32.mrb[0].mxu0
  %v2853 = vadd.f32 0.0, %v2852
  %2854 = vmatprep.mubr.f32.mxu0 %v2381
  %2855 = vmatmul.mubr.f32.gmra.mrb[0].mxu0 %v2380
  %v2856 = vpop.f32.mrb[0].mxu0
  %v2857 = vadd.f32 0.0, %v2856
  %v2858 = vpop.f32.mrb[0].mxu0
  %v2859 = vadd.f32 0.0, %v2858
  %2860 = vmatprep.mubr.f32.mxu0 %v2386
  %2861 = vmatmul.mubr.f32.gmra.mrb[0].mxu0 %v2385
  %v2862 = vpop.f32.mrb[0].mxu0
  %v2863 = vadd.f32 0.0, %v2862
  %v2864 = vpop.f32.mrb[0].mxu0
  %v2865 = vadd.f32 0.0, %v2864
  %2866 = vmatprep.mubr.f32.mxu0 %v2391
  %2867 = vmatmul.mubr.f32.gmra.mrb[0].mxu0 %v2390
  %v2868 = vpop.f32.mrb[0].mxu0
  %v2869 = vadd.f32 0.0, %v2868
  %v2870 = vpop.f32.mrb[0].mxu0
  %v2871 = vadd.f32 0.0, %v2870
  %2872 = vmatprep.mubr.f32.mxu0 %v2396
  %2873 = vmatmul.mubr.f32.gmra.mrb[0].mxu0 %v2395
  %v2874 = vpop.f32.mrb[0].mxu0
  %v2875 = vadd.f32 0.0, %v2874
  %v2876 = vpop.f32.mrb[0].mxu0
  %v2877 = vadd.f32 0.0, %v2876
  %2878 = vmatprep.mubr.f32.mxu0 %v2401
  %2879 = vmatmul.mubr.f32.gmra.mrb[0].mxu0 %v2400
  %v2880 = vpop.f32.mrb[0].mxu0
  %v2881 = vadd.f32 0.0, %v2880
  %v2882 = vpop.f32.mrb[0].mxu0
  %v2883 = vadd.f32 0.0, %v2882
  %2884 = vmatprep.mubr.f32.mxu0 %v2406
  %2885 = vmatmul.mubr.f32.gmra.mrb[0].mxu0 %v2405
  %v2886 = vpop.f32.mrb[0].mxu0
  %v2887 = vadd.f32 0.0, %v2886
  %v2888 = vpop.f32.mrb[0].mxu0
  %v2889 = vadd.f32 0.0, %v2888
  %2890 = vmatprep.mubr.f32.mxu0 %v2411
  %2891 = vmatmul.mubr.f32.gmra.mrb[0].mxu0 %v2410
  %v2892 = vpop.f32.mrb[0].mxu0
  %v2893 = vadd.f32 0.0, %v2892
  %v2894 = vpop.f32.mrb[0].mxu0
  %v2895 = vadd.f32 0.0, %v2894
  %2896 = vmatprep.mubr.f32.mxu0 %v2416
  %2897 = vmatmul.mubr.f32.gmra.mrb[0].mxu0 %v2415
  %v2898 = vpop.f32.mrb[0].mxu0
  %v2899 = vadd.f32 0.0, %v2898
  %v2900 = vpop.f32.mrb[0].mxu0
  %v2901 = vadd.f32 0.0, %v2900
  %2902 = vmatprep.mubr.f32.mxu0 %v2421
  %2903 = vmatmul.mubr.f32.gmra.mrb[0].mxu0 %v2420
  %v2904 = vpop.f32.mrb[0].mxu0
  %v2905 = vadd.f32 0.0, %v2904
  %v2906 = vpop.f32.mrb[0].mxu0
  %v2907 = vadd.f32 0.0, %v2906
  %2908 = vmatprep.mubr.f32.mxu0 %v2426
  %2909 = vmatmul.mubr.f32.gmra.mrb[0].mxu0 %v2425
  %v2910 = vpop.f32.mrb[0].mxu0
  %v2911 = vadd.f32 0.0, %v2910
  %v2912 = vpop.f32.mrb[0].mxu0
  %v2913 = vadd.f32 0.0, %v2912
  %2914 = vmatprep.mubr.f32.mxu0 %v2431
  %2915 = vmatmul.mubr.f32.gmra.mrb[0].mxu0 %v2430
  %v2916 = vpop.f32.mrb[0].mxu0
  %v2917 = vadd.f32 0.0, %v2916
  %v2918 = vpop.f32.mrb[0].mxu0
  %v2919 = vadd.f32 0.0, %v2918
  %2920 = vmatprep.mubr.f32.mxu0 %v2436
  %2921 = vmatmul.mubr.f32.gmra.mrb[0].mxu0 %v2435
  %v2922 = vpop.f32.mrb[0].mxu0
  %v2923 = vadd.f32 0.0, %v2922
  %v2924 = vpop.f32.mrb[0].mxu0
  %v2925 = vadd.f32 0.0, %v2924
  %2926 = vmatprep.mubr.f32.mxu0 %v2441
  %2927 = vmatmul.mubr.f32.gmra.mrb[0].mxu0 %v2440
  %v2928 = vpop.f32.mrb[0].mxu0
  %v2929 = vadd.f32 0.0, %v2928
  %v2930 = vpop.f32.mrb[0].mxu0
  %v2931 = vadd.f32 0.0, %v2930
  %2932 = vmatprep.mubr.f32.mxu0 %v2446
  %2933 = vmatmul.mubr.f32.gmra.mrb[0].mxu0 %v2445
  %v2934 = vpop.f32.mrb[0].mxu0
  %v2935 = vadd.f32 0.0, %v2934
  %v2936 = vpop.f32.mrb[0].mxu0
  %v2937 = vadd.f32 0.0, %v2936
  %2938 = vmatprep.mubr.f32.mxu0 %v2451
  %2939 = vmatmul.mubr.f32.gmra.mrb[0].mxu0 %v2450
  %v2940 = vpop.f32.mrb[0].mxu0
  %v2941 = vadd.f32 0.0, %v2940
  %v2942 = vpop.f32.mrb[0].mxu0
  %v2943 = vadd.f32 0.0, %v2942
  %2944 = vmatprep.mubr.f32.mxu0 %v2456
  %2945 = vmatmul.mubr.f32.gmra.mrb[0].mxu0 %v2455
  %v2946 = vpop.f32.mrb[0].mxu0
  %v2947 = vadd.f32 0.0, %v2946
  %v2948 = vpop.f32.mrb[0].mxu0
  %v2949 = vadd.f32 0.0, %v2948
  %2950 = vmatprep.mubr.f32.mxu0 %v2461
  %2951 = vmatmul.mubr.f32.gmra.mrb[0].mxu0 %v2460
  %v2952 = vpop.f32.mrb[0].mxu0
  %v2953 = vadd.f32 0.0, %v2952
  %v2954 = vpop.f32.mrb[0].mxu0
  %v2955 = vadd.f32 0.0, %v2954
  %2956 = vmatprep.mubr.f32.mxu0 %v2466
  %2957 = vmatmul.mubr.f32.gmra.mrb[0].mxu0 %v2465
  %v2958 = vpop.f32.mrb[0].mxu0
  %v2959 = vadd.f32 0.0, %v2958
  %v2960 = vpop.f32.mrb[0].mxu0
  %v2961 = vadd.f32 0.0, %v2960
  %2962 = vmatprep.mubr.f32.mxu0 %v2471
  %2963 = vmatmul.mubr.f32.gmra.mrb[0].mxu0 %v2470
  %v2964 = vpop.f32.mrb[0].mxu0
  %v2965 = vadd.f32 0.0, %v2964
  %v2966 = vpop.f32.mrb[0].mxu0
  %v2967 = vadd.f32 0.0, %v2966
  %2968 = vmatprep.mubr.f32.mxu0 %v2476
  %2969 = vmatmul.mubr.f32.gmra.mrb[0].mxu0 %v2475
  %v2970 = vpop.f32.mrb[0].mxu0
  %v2971 = vadd.f32 0.0, %v2970
  %v2972 = vpop.f32.mrb[0].mxu0
  %v2973 = vadd.f32 0.0, %v2972
  %2974 = vmatprep.mubr.f32.mxu0 %v2481
  %2975 = vmatmul.mubr.f32.gmra.mrb[0].mxu0 %v2480
  %v2976 = vpop.f32.mrb[0].mxu0
  %v2977 = vadd.f32 0.0, %v2976
  %v2978 = vpop.f32.mrb[0].mxu0
  %v2979 = vadd.f32 0.0, %v2978
  %2980 = vmatprep.mubr.f32.mxu0 %v2486
  %2981 = vmatmul.mubr.f32.gmra.mrb[0].mxu0 %v2485
  %v2982 = vpop.f32.mrb[0].mxu0
  %v2983 = vadd.f32 0.0, %v2982
  %v2984 = vpop.f32.mrb[0].mxu0
  %v2985 = vadd.f32 0.0, %v2984
  %2986 = vmatprep.mubr.f32.mxu0 %v2491
  %2987 = vmatmul.mubr.f32.gmra.mrb[0].mxu0 %v2490
  %v2988 = vpop.f32.mrb[0].mxu0
  %v2989 = vadd.f32 0.0, %v2988
  %v2990 = vpop.f32.mrb[0].mxu0
  %v2991 = vadd.f32 0.0, %v2990
  %2992 = vdwg.mxu0
  %2993 = vmatprep.subr.mxu0 %v2560
  %2994 = vmatpush1.msra.mxu0 %v2559
  %2995 = vmatprep.subr.mxu0 %v2562
  %2996 = vmatpush1.msra.mxu0 %v2561
  %2997 = vmatprep.subr.mxu0 %v2564
  %2998 = vmatpush1.msra.mxu0 %v2563
  %2999 = vmatprep.subr.mxu0 %v2566
  %3000 = vmatpush1.msra.mxu0 %v2565
  %3001 = vmatprep.subr.mxu0 %v2568
  %3002 = vmatpush1.msra.mxu0 %v2567
  %3003 = vmatprep.subr.mxu0 %v2570
  %3004 = vmatpush1.msra.mxu0 %v2569
  %3005 = vmatprep.subr.mxu0 %v2572
  %3006 = vmatpush1.msra.mxu0 %v2571
  %3007 = vmatprep.subr.mxu0 %v2574
  %3008 = vmatpush1.msra.mxu0 %v2573
  %3009 = vmatprep.subr.mxu0 %v2576
  %3010 = vmatpush1.msra.mxu0 %v2575
  %3011 = vmatprep.subr.mxu0 %v2578
  %3012 = vmatpush1.msra.mxu0 %v2577
  %3013 = vmatprep.subr.mxu0 %v2580
  %3014 = vmatpush1.msra.mxu0 %v2579
  %3015 = vmatprep.subr.mxu0 %v2582
  %3016 = vmatpush1.msra.mxu0 %v2581
  %3017 = vmatprep.subr.mxu0 %v2584
  %3018 = vmatpush1.msra.mxu0 %v2583
  %3019 = vmatprep.subr.mxu0 %v2586
  %3020 = vmatpush1.msra.mxu0 %v2585
  %3021 = vmatprep.subr.mxu0 %v2588
  %3022 = vmatpush1.msra.mxu0 %v2587
  %3023 = vmatprep.subr.mxu0 %v2590
  %3024 = vmatpush1.msra.mxu0 %v2589
  %3025 = vmatprep.subr.mxu0 %v2592
  %3026 = vmatpush1.msra.mxu0 %v2591
  %3027 = vmatprep.subr.mxu0 %v2594
  %3028 = vmatpush1.msra.mxu0 %v2593
  %3029 = vmatprep.subr.mxu0 %v2596
  %3030 = vmatpush1.msra.mxu0 %v2595
  %3031 = vmatprep.subr.mxu0 %v2598
  %3032 = vmatpush1.msra.mxu0 %v2597
  %3033 = vmatprep.subr.mxu0 %v2600
  %3034 = vmatpush1.msra.mxu0 %v2599
  %3035 = vmatprep.subr.mxu0 %v2602
  %3036 = vmatpush1.msra.mxu0 %v2601
  %3037 = vmatprep.subr.mxu0 %v2604
  %3038 = vmatpush1.msra.mxu0 %v2603
  %3039 = vmatprep.subr.mxu0 %v2606
  %3040 = vmatpush1.msra.mxu0 %v2605
  %3041 = vmatprep.subr.mxu0 %v2608
  %3042 = vmatpush1.msra.mxu0 %v2607
  %3043 = vmatprep.subr.mxu0 %v2610
  %3044 = vmatpush1.msra.mxu0 %v2609
  %3045 = vmatprep.subr.mxu0 %v2612
  %3046 = vmatpush1.msra.mxu0 %v2611
  %3047 = vmatprep.subr.mxu0 %v2614
  %3048 = vmatpush1.msra.mxu0 %v2613
  %3049 = vmatprep.subr.mxu0 %v2616
  %3050 = vmatpush1.msra.mxu0 %v2615
  %3051 = vmatprep.subr.mxu0 %v2618
  %3052 = vmatpush1.msra.mxu0 %v2617
  %3053 = vmatprep.subr.mxu0 %v2620
  %3054 = vmatpush1.msra.mxu0 %v2619
  %3055 = vmatprep.subr.mxu0 %v2622
  %3056 = vmatpush1.msra.mxu0 %v2621
  %3057 = vmatprep.mubr.f32.mxu0 %v2338
  %3058 = vmatmul.mubr.f32.gmra.mrb[0].mxu0 %v2337
  %v3059 = vpop.f32.mrb[0].mxu0
  %v3060 = vadd.f32 %v2803, %v3059
  %v3061 = vpop.f32.mrb[0].mxu0
  %v3062 = vadd.f32 %v2805, %v3061
  %3063 = vmatprep.mubr.f32.mxu0 %v2343
  %3064 = vmatmul.mubr.f32.gmra.mrb[0].mxu0 %v2342
  %v3065 = vpop.f32.mrb[0].mxu0
  %v3066 = vadd.f32 %v2809, %v3065
  %v3067 = vpop.f32.mrb[0].mxu0
  %v3068 = vadd.f32 %v2811, %v3067
  %3069 = vmatprep.mubr.f32.mxu0 %v2348
  %3070 = vmatmul.mubr.f32.gmra.mrb[0].mxu0 %v2347
  %v3071 = vpop.f32.mrb[0].mxu0
  %v3072 = vadd.f32 %v2815, %v3071
  %v3073 = vpop.f32.mrb[0].mxu0
  %v3074 = vadd.f32 %v2817, %v3073
  %3075 = vmatprep.mubr.f32.mxu0 %v2353
  %3076 = vmatmul.mubr.f32.gmra.mrb[0].mxu0 %v2352
  %v3077 = vpop.f32.mrb[0].mxu0
  %v3078 = vadd.f32 %v2821, %v3077
  %v3079 = vpop.f32.mrb[0].mxu0
  %v3080 = vadd.f32 %v2823, %v3079
  %3081 = vmatprep.mubr.f32.mxu0 %v2358
  %3082 = vmatmul.mubr.f32.gmra.mrb[0].mxu0 %v2357
  %v3083 = vpop.f32.mrb[0].mxu0
  %v3084 = vadd.f32 %v2827, %v3083
  %v3085 = vpop.f32.mrb[0].mxu0
  %v3086 = vadd.f32 %v2829, %v3085
  %3087 = vmatprep.mubr.f32.mxu0 %v2363
  %3088 = vmatmul.mubr.f32.gmra.mrb[0].mxu0 %v2362
  %v3089 = vpop.f32.mrb[0].mxu0
  %v3090 = vadd.f32 %v2833, %v3089
  %v3091 = vpop.f32.mrb[0].mxu0
  %v3092 = vadd.f32 %v2835, %v3091
  %3093 = vmatprep.mubr.f32.mxu0 %v2368
  %3094 = vmatmul.mubr.f32.gmra.mrb[0].mxu0 %v2367
  %v3095 = vpop.f32.mrb[0].mxu0
  %v3096 = vadd.f32 %v2839, %v3095
  %v3097 = vpop.f32.mrb[0].mxu0
  %v3098 = vadd.f32 %v2841, %v3097
  %3099 = vmatprep.mubr.f32.mxu0 %v2373
  %3100 = vmatmul.mubr.f32.gmra.mrb[0].mxu0 %v2372
  %v3101 = vpop.f32.mrb[0].mxu0
  %v3102 = vadd.f32 %v2845, %v3101
  %v3103 = vpop.f32.mrb[0].mxu0
  %v3104 = vadd.f32 %v2847, %v3103
  %3105 = vmatprep.mubr.f32.mxu0 %v2378
  %3106 = vmatmul.mubr.f32.gmra.mrb[0].mxu0 %v2377
  %v3107 = vpop.f32.mrb[0].mxu0
  %v3108 = vadd.f32 %v2851, %v3107
  %v3109 = vpop.f32.mrb[0].mxu0
  %v3110 = vadd.f32 %v2853, %v3109
  %3111 = vmatprep.mubr.f32.mxu0 %v2383
  %3112 = vmatmul.mubr.f32.gmra.mrb[0].mxu0 %v2382
  %v3113 = vpop.f32.mrb[0].mxu0
  %v3114 = vadd.f32 %v2857, %v3113
  %v3115 = vpop.f32.mrb[0].mxu0
  %v3116 = vadd.f32 %v2859, %v3115
  %3117 = vmatprep.mubr.f32.mxu0 %v2388
  %3118 = vmatmul.mubr.f32.gmra.mrb[0].mxu0 %v2387
  %v3119 = vpop.f32.mrb[0].mxu0
  %v3120 = vadd.f32 %v2863, %v3119
  %v3121 = vpop.f32.mrb[0].mxu0
  %v3122 = vadd.f32 %v2865, %v3121
  %3123 = vmatprep.mubr.f32.mxu0 %v2393
  %3124 = vmatmul.mubr.f32.gmra.mrb[0].mxu0 %v2392
  %v3125 = vpop.f32.mrb[0].mxu0
  %v3126 = vadd.f32 %v2869, %v3125
  %v3127 = vpop.f32.mrb[0].mxu0
  %v3128 = vadd.f32 %v2871, %v3127
  %3129 = vmatprep.mubr.f32.mxu0 %v2398
  %3130 = vmatmul.mubr.f32.gmra.mrb[0].mxu0 %v2397
  %v3131 = vpop.f32.mrb[0].mxu0
  %v3132 = vadd.f32 %v2875, %v3131
  %v3133 = vpop.f32.mrb[0].mxu0
  %v3134 = vadd.f32 %v2877, %v3133
  %3135 = vmatprep.mubr.f32.mxu0 %v2403
  %3136 = vmatmul.mubr.f32.gmra.mrb[0].mxu0 %v2402
  %v3137 = vpop.f32.mrb[0].mxu0
  %v3138 = vadd.f32 %v2881, %v3137
  %v3139 = vpop.f32.mrb[0].mxu0
  %v3140 = vadd.f32 %v2883, %v3139
  %3141 = vmatprep.mubr.f32.mxu0 %v2408
  %3142 = vmatmul.mubr.f32.gmra.mrb[0].mxu0 %v2407
  %v3143 = vpop.f32.mrb[0].mxu0
  %v3144 = vadd.f32 %v2887, %v3143
  %v3145 = vpop.f32.mrb[0].mxu0
  %v3146 = vadd.f32 %v2889, %v3145
  %3147 = vmatprep.mubr.f32.mxu0 %v2413
  %3148 = vmatmul.mubr.f32.gmra.mrb[0].mxu0 %v2412
  %v3149 = vpop.f32.mrb[0].mxu0
  %v3150 = vadd.f32 %v2893, %v3149
  %v3151 = vpop.f32.mrb[0].mxu0
  %v3152 = vadd.f32 %v2895, %v3151
  %3153 = vmatprep.mubr.f32.mxu0 %v2418
  %3154 = vmatmul.mubr.f32.gmra.mrb[0].mxu0 %v2417
  %v3155 = vpop.f32.mrb[0].mxu0
  %v3156 = vadd.f32 %v2899, %v3155
  %v3157 = vpop.f32.mrb[0].mxu0
  %v3158 = vadd.f32 %v2901, %v3157
  %3159 = vmatprep.mubr.f32.mxu0 %v2423
  %3160 = vmatmul.mubr.f32.gmra.mrb[0].mxu0 %v2422
  %v3161 = vpop.f32.mrb[0].mxu0
  %v3162 = vadd.f32 %v2905, %v3161
  %v3163 = vpop.f32.mrb[0].mxu0
  %v3164 = vadd.f32 %v2907, %v3163
  %3165 = vmatprep.mubr.f32.mxu0 %v2428
  %3166 = vmatmul.mubr.f32.gmra.mrb[0].mxu0 %v2427
  %v3167 = vpop.f32.mrb[0].mxu0
  %v3168 = vadd.f32 %v2911, %v3167
  %v3169 = vpop.f32.mrb[0].mxu0
  %v3170 = vadd.f32 %v2913, %v3169
  %3171 = vmatprep.mubr.f32.mxu0 %v2433
  %3172 = vmatmul.mubr.f32.gmra.mrb[0].mxu0 %v2432
  %v3173 = vpop.f32.mrb[0].mxu0
  %v3174 = vadd.f32 %v2917, %v3173
  %v3175 = vpop.f32.mrb[0].mxu0
  %v3176 = vadd.f32 %v2919, %v3175
  %3177 = vmatprep.mubr.f32.mxu0 %v2438
  %3178 = vmatmul.mubr.f32.gmra.mrb[0].mxu0 %v2437
  %v3179 = vpop.f32.mrb[0].mxu0
  %v3180 = vadd.f32 %v2923, %v3179
  %v3181 = vpop.f32.mrb[0].mxu0
  %v3182 = vadd.f32 %v2925, %v3181
  %3183 = vmatprep.mubr.f32.mxu0 %v2443
  %3184 = vmatmul.mubr.f32.gmra.mrb[0].mxu0 %v2442
  %v3185 = vpop.f32.mrb[0].mxu0
  %v3186 = vadd.f32 %v2929, %v3185
  %v3187 = vpop.f32.mrb[0].mxu0
  %v3188 = vadd.f32 %v2931, %v3187
  %3189 = vmatprep.mubr.f32.mxu0 %v2448
  %3190 = vmatmul.mubr.f32.gmra.mrb[0].mxu0 %v2447
  %v3191 = vpop.f32.mrb[0].mxu0
  %v3192 = vadd.f32 %v2935, %v3191
  %v3193 = vpop.f32.mrb[0].mxu0
  %v3194 = vadd.f32 %v2937, %v3193
  %3195 = vmatprep.mubr.f32.mxu0 %v2453
  %3196 = vmatmul.mubr.f32.gmra.mrb[0].mxu0 %v2452
  %v3197 = vpop.f32.mrb[0].mxu0
  %v3198 = vadd.f32 %v2941, %v3197
  %v3199 = vpop.f32.mrb[0].mxu0
  %v3200 = vadd.f32 %v2943, %v3199
  %3201 = vmatprep.mubr.f32.mxu0 %v2458
  %3202 = vmatmul.mubr.f32.gmra.mrb[0].mxu0 %v2457
  %v3203 = vpop.f32.mrb[0].mxu0
  %v3204 = vadd.f32 %v2947, %v3203
  %v3205 = vpop.f32.mrb[0].mxu0
  %v3206 = vadd.f32 %v2949, %v3205
  %3207 = vmatprep.mubr.f32.mxu0 %v2463
  %3208 = vmatmul.mubr.f32.gmra.mrb[0].mxu0 %v2462
  %v3209 = vpop.f32.mrb[0].mxu0
  %v3210 = vadd.f32 %v2953, %v3209
  %v3211 = vpop.f32.mrb[0].mxu0
  %v3212 = vadd.f32 %v2955, %v3211
  %3213 = vmatprep.mubr.f32.mxu0 %v2468
  %3214 = vmatmul.mubr.f32.gmra.mrb[0].mxu0 %v2467
  %v3215 = vpop.f32.mrb[0].mxu0
  %v3216 = vadd.f32 %v2959, %v3215
  %v3217 = vpop.f32.mrb[0].mxu0
  %v3218 = vadd.f32 %v2961, %v3217
  %3219 = vmatprep.mubr.f32.mxu0 %v2473
  %3220 = vmatmul.mubr.f32.gmra.mrb[0].mxu0 %v2472
  %v3221 = vpop.f32.mrb[0].mxu0
  %v3222 = vadd.f32 %v2965, %v3221
  %v3223 = vpop.f32.mrb[0].mxu0
  %v3224 = vadd.f32 %v2967, %v3223
  %3225 = vmatprep.mubr.f32.mxu0 %v2478
  %3226 = vmatmul.mubr.f32.gmra.mrb[0].mxu0 %v2477
  %v3227 = vpop.f32.mrb[0].mxu0
  %v3228 = vadd.f32 %v2971, %v3227
  %v3229 = vpop.f32.mrb[0].mxu0
  %v3230 = vadd.f32 %v2973, %v3229
  %3231 = vmatprep.mubr.f32.mxu0 %v2483
  %3232 = vmatmul.mubr.f32.gmra.mrb[0].mxu0 %v2482
  %v3233 = vpop.f32.mrb[0].mxu0
  %v3234 = vadd.f32 %v2977, %v3233
  %v3235 = vpop.f32.mrb[0].mxu0
  %v3236 = vadd.f32 %v2979, %v3235
  %3237 = vmatprep.mubr.f32.mxu0 %v2488
  %3238 = vmatmul.mubr.f32.gmra.mrb[0].mxu0 %v2487
  %v3239 = vpop.f32.mrb[0].mxu0
  %v3240 = vadd.f32 %v2983, %v3239
  %v3241 = vpop.f32.mrb[0].mxu0
  %v3242 = vadd.f32 %v2985, %v3241
  %3243 = vmatprep.mubr.f32.mxu0 %v2493
  %3244 = vmatmul.mubr.f32.gmra.mrb[0].mxu0 %v2492
  %v3245 = vpop.f32.mrb[0].mxu0
  %v3246 = vadd.f32 %v2989, %v3245
  %v3247 = vpop.f32.mrb[0].mxu0
  %v3248 = vadd.f32 %v2991, %v3247
  %3249 = vdwg.mxu0
  %3250 = vmatprep.subr.mxu0 %v2624
  %3251 = vmatpush1.msra.mxu0 %v2623
  %3252 = vmatprep.subr.mxu0 %v2626
  %3253 = vmatpush1.msra.mxu0 %v2625
  %3254 = vmatprep.subr.mxu0 %v2628
  %3255 = vmatpush1.msra.mxu0 %v2627
  %3256 = vmatprep.subr.mxu0 %v2630
  %3257 = vmatpush1.msra.mxu0 %v2629
  %3258 = vmatprep.subr.mxu0 %v2632
  %3259 = vmatpush1.msra.mxu0 %v2631
  %3260 = vmatprep.subr.mxu0 %v2634
  %3261 = vmatpush1.msra.mxu0 %v2633
  %3262 = vmatprep.subr.mxu0 %v2636
  %3263 = vmatpush1.msra.mxu0 %v2635
  %3264 = vmatprep.subr.mxu0 %v2638
  %3265 = vmatpush1.msra.mxu0 %v2637
  %3266 = vmatprep.subr.mxu0 0.0
  %3267 = vmatpush1.msra.mxu0 0.0
  %3268 = vmatprep.subr.mxu0 0.0
  %3269 = vmatpush1.msra.mxu0 0.0
  %3270 = vmatprep.subr.mxu0 0.0
  %3271 = vmatpush1.msra.mxu0 0.0
  %3272 = vmatprep.subr.mxu0 0.0
  %3273 = vmatpush1.msra.mxu0 0.0
  %3274 = vmatprep.subr.mxu0 0.0
  %3275 = vmatpush1.msra.mxu0 0.0
  %3276 = vmatprep.subr.mxu0 0.0
  %3277 = vmatpush1.msra.mxu0 0.0
  %3278 = vmatprep.subr.mxu0 0.0
  %3279 = vmatpush1.msra.mxu0 0.0
  %3280 = vmatprep.subr.mxu0 0.0
  %3281 = vmatpush1.msra.mxu0 0.0
  %3282 = vmatprep.subr.mxu0 0.0
  %3283 = vmatpush1.msra.mxu0 0.0
  %3284 = vmatprep.subr.mxu0 0.0
  %3285 = vmatpush1.msra.mxu0 0.0
  %3286 = vmatprep.subr.mxu0 0.0
  %3287 = vmatpush1.msra.mxu0 0.0
  %3288 = vmatprep.subr.mxu0 0.0
  %3289 = vmatpush1.msra.mxu0 0.0
  %3290 = vmatprep.subr.mxu0 0.0
  %3291 = vmatpush1.msra.mxu0 0.0
  %3292 = vmatprep.subr.mxu0 0.0
  %3293 = vmatpush1.msra.mxu0 0.0
  %3294 = vmatprep.subr.mxu0 0.0
  %3295 = vmatpush1.msra.mxu0 0.0
  %3296 = vmatprep.subr.mxu0 0.0
  %3297 = vmatpush1.msra.mxu0 0.0
  %3298 = vmatprep.subr.mxu0 0.0
  %3299 = vmatpush1.msra.mxu0 0.0
  %3300 = vmatprep.subr.mxu0 0.0
  %3301 = vmatpush1.msra.mxu0 0.0
  %3302 = vmatprep.subr.mxu0 0.0
  %3303 = vmatpush1.msra.mxu0 0.0
  %3304 = vmatprep.subr.mxu0 0.0
  %3305 = vmatpush1.msra.mxu0 0.0
  %3306 = vmatprep.subr.mxu0 0.0
  %3307 = vmatpush1.msra.mxu0 0.0
  %3308 = vmatprep.subr.mxu0 0.0
  %3309 = vmatpush1.msra.mxu0 0.0
  %3310 = vmatprep.subr.mxu0 0.0
  %3311 = vmatpush1.msra.mxu0 0.0
  %3312 = vmatprep.subr.mxu0 0.0
  %3313 = vmatpush1.msra.mxu0 0.0
  %3314 = vmatprep.mubr.f32.mxu0 0.0
  %3315 = vmatmul.mubr.f32.gmra.mrb[0].mxu0 %v2641
  %v3316 = vpop.f32.mrb[0].mxu0
  %v3317 = vadd.f32 %v3060, %v3316
  %v3318 = vpop.f32.mrb[0].mxu0
  %v3319 = vadd.f32 %v3062, %v3318
  %3320 = vmatprep.mubr.f32.mxu0 0.0
  %3321 = vmatmul.mubr.f32.gmra.mrb[0].mxu0 %v2644
  %v3322 = vpop.f32.mrb[0].mxu0
  %v3323 = vadd.f32 %v3066, %v3322
  %v3324 = vpop.f32.mrb[0].mxu0
  %v3325 = vadd.f32 %v3068, %v3324
  %3326 = vmatprep.mubr.f32.mxu0 0.0
  %3327 = vmatmul.mubr.f32.gmra.mrb[0].mxu0 %v2647
  %v3328 = vpop.f32.mrb[0].mxu0
  %v3329 = vadd.f32 %v3072, %v3328
  %v3330 = vpop.f32.mrb[0].mxu0
  %v3331 = vadd.f32 %v3074, %v3330
  %3332 = vmatprep.mubr.f32.mxu0 0.0
  %3333 = vmatmul.mubr.f32.gmra.mrb[0].mxu0 %v2650
  %v3334 = vpop.f32.mrb[0].mxu0
  %v3335 = vadd.f32 %v3078, %v3334
  %v3336 = vpop.f32.mrb[0].mxu0
  %v3337 = vadd.f32 %v3080, %v3336
  %3338 = vmatprep.mubr.f32.mxu0 0.0
  %3339 = vmatmul.mubr.f32.gmra.mrb[0].mxu0 %v2653
  %v3340 = vpop.f32.mrb[0].mxu0
  %v3341 = vadd.f32 %v3084, %v3340
  %v3342 = vpop.f32.mrb[0].mxu0
  %v3343 = vadd.f32 %v3086, %v3342
  %3344 = vmatprep.mubr.f32.mxu0 0.0
  %3345 = vmatmul.mubr.f32.gmra.mrb[0].mxu0 %v2656
  %v3346 = vpop.f32.mrb[0].mxu0
  %v3347 = vadd.f32 %v3090, %v3346
  %v3348 = vpop.f32.mrb[0].mxu0
  %v3349 = vadd.f32 %v3092, %v3348
  %3350 = vmatprep.mubr.f32.mxu0 0.0
  %3351 = vmatmul.mubr.f32.gmra.mrb[0].mxu0 %v2659
  %v3352 = vpop.f32.mrb[0].mxu0
  %v3353 = vadd.f32 %v3096, %v3352
  %v3354 = vpop.f32.mrb[0].mxu0
  %v3355 = vadd.f32 %v3098, %v3354
  %3356 = vmatprep.mubr.f32.mxu0 0.0
  %3357 = vmatmul.mubr.f32.gmra.mrb[0].mxu0 %v2662
  %v3358 = vpop.f32.mrb[0].mxu0
  %v3359 = vadd.f32 %v3102, %v3358
  %v3360 = vpop.f32.mrb[0].mxu0
  %v3361 = vadd.f32 %v3104, %v3360
  %3362 = vmatprep.mubr.f32.mxu0 0.0
  %3363 = vmatmul.mubr.f32.gmra.mrb[0].mxu0 %v2665
  %v3364 = vpop.f32.mrb[0].mxu0
  %v3365 = vadd.f32 %v3108, %v3364
  %v3366 = vpop.f32.mrb[0].mxu0
  %v3367 = vadd.f32 %v3110, %v3366
  %3368 = vmatprep.mubr.f32.mxu0 0.0
  %3369 = vmatmul.mubr.f32.gmra.mrb[0].mxu0 %v2668
  %v3370 = vpop.f32.mrb[0].mxu0
  %v3371 = vadd.f32 %v3114, %v3370
  %v3372 = vpop.f32.mrb[0].mxu0
  %v3373 = vadd.f32 %v3116, %v3372
  %3374 = vmatprep.mubr.f32.mxu0 0.0
  %3375 = vmatmul.mubr.f32.gmra.mrb[0].mxu0 %v2671
  %v3376 = vpop.f32.mrb[0].mxu0
  %v3377 = vadd.f32 %v3120, %v3376
  %v3378 = vpop.f32.mrb[0].mxu0
  %v3379 = vadd.f32 %v3122, %v3378
  %3380 = vmatprep.mubr.f32.mxu0 0.0
  %3381 = vmatmul.mubr.f32.gmra.mrb[0].mxu0 %v2674
  %v3382 = vpop.f32.mrb[0].mxu0
  %v3383 = vadd.f32 %v3126, %v3382
  %v3384 = vpop.f32.mrb[0].mxu0
  %v3385 = vadd.f32 %v3128, %v3384
  %3386 = vmatprep.mubr.f32.mxu0 0.0
  %3387 = vmatmul.mubr.f32.gmra.mrb[0].mxu0 %v2677
  %v3388 = vpop.f32.mrb[0].mxu0
  %v3389 = vadd.f32 %v3132, %v3388
  %v3390 = vpop.f32.mrb[0].mxu0
  %v3391 = vadd.f32 %v3134, %v3390
  %3392 = vmatprep.mubr.f32.mxu0 0.0
  %3393 = vmatmul.mubr.f32.gmra.mrb[0].mxu0 %v2680
  %v3394 = vpop.f32.mrb[0].mxu0
  %v3395 = vadd.f32 %v3138, %v3394
  %v3396 = vpop.f32.mrb[0].mxu0
  %v3397 = vadd.f32 %v3140, %v3396
  %3398 = vmatprep.mubr.f32.mxu0 0.0
  %3399 = vmatmul.mubr.f32.gmra.mrb[0].mxu0 %v2683
  %v3400 = vpop.f32.mrb[0].mxu0
  %v3401 = vadd.f32 %v3144, %v3400
  %v3402 = vpop.f32.mrb[0].mxu0
  %v3403 = vadd.f32 %v3146, %v3402
  %3404 = vmatprep.mubr.f32.mxu0 0.0
  %3405 = vmatmul.mubr.f32.gmra.mrb[0].mxu0 %v2686
  %v3406 = vpop.f32.mrb[0].mxu0
  %v3407 = vadd.f32 %v3150, %v3406
  %v3408 = vpop.f32.mrb[0].mxu0
  %v3409 = vadd.f32 %v3152, %v3408
  %3410 = vmatprep.mubr.f32.mxu0 0.0
  %3411 = vmatmul.mubr.f32.gmra.mrb[0].mxu0 %v2689
  %v3412 = vpop.f32.mrb[0].mxu0
  %v3413 = vadd.f32 %v3156, %v3412
  %v3414 = vpop.f32.mrb[0].mxu0
  %v3415 = vadd.f32 %v3158, %v3414
  %3416 = vmatprep.mubr.f32.mxu0 0.0
  %3417 = vmatmul.mubr.f32.gmra.mrb[0].mxu0 %v2692
  %v3418 = vpop.f32.mrb[0].mxu0
  %v3419 = vadd.f32 %v3162, %v3418
  %v3420 = vpop.f32.mrb[0].mxu0
  %v3421 = vadd.f32 %v3164, %v3420
  %3422 = vmatprep.mubr.f32.mxu0 0.0
  %3423 = vmatmul.mubr.f32.gmra.mrb[0].mxu0 %v2695
  %v3424 = vpop.f32.mrb[0].mxu0
  %v3425 = vadd.f32 %v3168, %v3424
  %v3426 = vpop.f32.mrb[0].mxu0
  %v3427 = vadd.f32 %v3170, %v3426
  %3428 = vmatprep.mubr.f32.mxu0 0.0
  %3429 = vmatmul.mubr.f32.gmra.mrb[0].mxu0 %v2698
  %v3430 = vpop.f32.mrb[0].mxu0
  %v3431 = vadd.f32 %v3174, %v3430
  %v3432 = vpop.f32.mrb[0].mxu0
  %v3433 = vadd.f32 %v3176, %v3432
  %3434 = vmatprep.mubr.f32.mxu0 0.0
  %3435 = vmatmul.mubr.f32.gmra.mrb[0].mxu0 %v2701
  %v3436 = vpop.f32.mrb[0].mxu0
  %v3437 = vadd.f32 %v3180, %v3436
  %v3438 = vpop.f32.mrb[0].mxu0
  %v3439 = vadd.f32 %v3182, %v3438
  %3440 = vmatprep.mubr.f32.mxu0 0.0
  %3441 = vmatmul.mubr.f32.gmra.mrb[0].mxu0 %v2704
  %v3442 = vpop.f32.mrb[0].mxu0
  %v3443 = vadd.f32 %v3186, %v3442
  %v3444 = vpop.f32.mrb[0].mxu0
  %v3445 = vadd.f32 %v3188, %v3444
  %3446 = vmatprep.mubr.f32.mxu0 0.0
  %3447 = vmatmul.mubr.f32.gmra.mrb[0].mxu0 %v2707
  %v3448 = vpop.f32.mrb[0].mxu0
  %v3449 = vadd.f32 %v3192, %v3448
  %v3450 = vpop.f32.mrb[0].mxu0
  %v3451 = vadd.f32 %v3194, %v3450
  %3452 = vmatprep.mubr.f32.mxu0 0.0
  %3453 = vmatmul.mubr.f32.gmra.mrb[0].mxu0 %v2710
  %v3454 = vpop.f32.mrb[0].mxu0
  %v3455 = vadd.f32 %v3198, %v3454
  %v3456 = vpop.f32.mrb[0].mxu0
  %v3457 = vadd.f32 %v3200, %v3456
  %3458 = vmatprep.mubr.f32.mxu0 0.0
  %3459 = vmatmul.mubr.f32.gmra.mrb[0].mxu0 %v2713
  %v3460 = vpop.f32.mrb[0].mxu0
  %v3461 = vadd.f32 %v3204, %v3460
  %v3462 = vpop.f32.mrb[0].mxu0
  %v3463 = vadd.f32 %v3206, %v3462
  %3464 = vmatprep.mubr.f32.mxu0 0.0
  %3465 = vmatmul.mubr.f32.gmra.mrb[0].mxu0 %v2716
  %v3466 = vpop.f32.mrb[0].mxu0
  %v3467 = vadd.f32 %v3210, %v3466
  %v3468 = vpop.f32.mrb[0].mxu0
  %v3469 = vadd.f32 %v3212, %v3468
  %3470 = vmatprep.mubr.f32.mxu0 0.0
  %3471 = vmatmul.mubr.f32.gmra.mrb[0].mxu0 %v2719
  %v3472 = vpop.f32.mrb[0].mxu0
  %v3473 = vadd.f32 %v3216, %v3472
  %v3474 = vpop.f32.mrb[0].mxu0
  %v3475 = vadd.f32 %v3218, %v3474
  %3476 = vmatprep.mubr.f32.mxu0 0.0
  %3477 = vmatmul.mubr.f32.gmra.mrb[0].mxu0 %v2722
  %v3478 = vpop.f32.mrb[0].mxu0
  %v3479 = vadd.f32 %v3222, %v3478
  %v3480 = vpop.f32.mrb[0].mxu0
  %v3481 = vadd.f32 %v3224, %v3480
  %3482 = vmatprep.mubr.f32.mxu0 0.0
  %3483 = vmatmul.mubr.f32.gmra.mrb[0].mxu0 %v2725
  %v3484 = vpop.f32.mrb[0].mxu0
  %v3485 = vadd.f32 %v3228, %v3484
  %v3486 = vpop.f32.mrb[0].mxu0
  %v3487 = vadd.f32 %v3230, %v3486
  %3488 = vmatprep.mubr.f32.mxu0 0.0
  %3489 = vmatmul.mubr.f32.gmra.mrb[0].mxu0 %v2728
  %v3490 = vpop.f32.mrb[0].mxu0
  %v3491 = vadd.f32 %v3234, %v3490
  %v3492 = vpop.f32.mrb[0].mxu0
  %v3493 = vadd.f32 %v3236, %v3492
  %3494 = vmatprep.mubr.f32.mxu0 0.0
  %3495 = vmatmul.mubr.f32.gmra.mrb[0].mxu0 %v2731
  %v3496 = vpop.f32.mrb[0].mxu0
  %v3497 = vadd.f32 %v3240, %v3496
  %v3498 = vpop.f32.mrb[0].mxu0
  %v3499 = vadd.f32 %v3242, %v3498
  %3500 = vmatprep.mubr.f32.mxu0 0.0
  %3501 = vmatmul.mubr.f32.gmra.mrb[0].mxu0 %v2734
  %v3502 = vpop.f32.mrb[0].mxu0
  %v3503 = vadd.f32 %v3246, %v3502
  %v3504 = vpop.f32.mrb[0].mxu0
  %v3505 = vadd.f32 %v3248, %v3504
  %3506 = vdwg.mxu0
  %3507 = vst [vmem:[%s3] sm:$0xff] %v3317
  %3508 = vst.msk [vmem:[%s3 + $0x8] sm:$0xff] %vm183, %v3319
  %3509 = vst [vmem:[%s3 + $0x10] sm:$0xff] %v3323
  %3510 = vst.msk [vmem:[%s3 + $0x18] sm:$0xff] %vm183, %v3325
  %3511 = vst [vmem:[%s3 + $0x20] sm:$0xff] %v3329
  %3512 = vst.msk [vmem:[%s3 + $0x28] sm:$0xff] %vm183, %v3331
  %3513 = vst [vmem:[%s3 + $0x30] sm:$0xff] %v3335
  %3514 = vst.msk [vmem:[%s3 + $0x38] sm:$0xff] %vm183, %v3337
  %3515 = vst [vmem:[%s3 + $0x40] sm:$0xff] %v3341
  %3516 = vst.msk [vmem:[%s3 + $0x48] sm:$0xff] %vm183, %v3343
  %3517 = vst [vmem:[%s3 + $0x50] sm:$0xff] %v3347
  %3518 = vst.msk [vmem:[%s3 + $0x58] sm:$0xff] %vm183, %v3349
  %3519 = vst [vmem:[%s3 + $0x60] sm:$0xff] %v3353
  %3520 = vst.msk [vmem:[%s3 + $0x68] sm:$0xff] %vm183, %v3355
  %3521 = vst [vmem:[%s3 + $0x70] sm:$0xff] %v3359
  %3522 = vst.msk [vmem:[%s3 + $0x78] sm:$0xff] %vm183, %v3361
  %3523 = vst [vmem:[%s3 + $0x80] sm:$0xff] %v3365
  %3524 = vst.msk [vmem:[%s3 + $0x88] sm:$0xff] %vm183, %v3367
  %3525 = vst [vmem:[%s3 + $0x90] sm:$0xff] %v3371
  %3526 = vst.msk [vmem:[%s3 + $0x98] sm:$0xff] %vm183, %v3373
  %3527 = vst [vmem:[%s3 + $0xa0] sm:$0xff] %v3377
  %3528 = vst.msk [vmem:[%s3 + $0xa8] sm:$0xff] %vm183, %v3379
  %3529 = vst [vmem:[%s3 + $0xb0] sm:$0xff] %v3383
  %3530 = vst.msk [vmem:[%s3 + $0xb8] sm:$0xff] %vm183, %v3385
  %3531 = vst [vmem:[%s3 + $0xc0] sm:$0xff] %v3389
  %3532 = vst.msk [vmem:[%s3 + $0xc8] sm:$0xff] %vm183, %v3391
  %3533 = vst [vmem:[%s3 + $0xd0] sm:$0xff] %v3395
  %3534 = vst.msk [vmem:[%s3 + $0xd8] sm:$0xff] %vm183, %v3397
  %3535 = vst [vmem:[%s3 + $0xe0] sm:$0xff] %v3401
  %3536 = vst.msk [vmem:[%s3 + $0xe8] sm:$0xff] %vm183, %v3403
  %3537 = vst [vmem:[%s3 + $0xf0] sm:$0xff] %v3407
  %3538 = vst.msk [vmem:[%s3 + $0xf8] sm:$0xff] %vm183, %v3409
  %3539 = vst [vmem:[%s3 + $0x100] sm:$0xff] %v3413
  %3540 = vst.msk [vmem:[%s3 + $0x108] sm:$0xff] %vm183, %v3415
  %3541 = vst [vmem:[%s3 + $0x110] sm:$0xff] %v3419
  %3542 = vst.msk [vmem:[%s3 + $0x118] sm:$0xff] %vm183, %v3421
  %3543 = vst [vmem:[%s3 + $0x120] sm:$0xff] %v3425
  %3544 = vst.msk [vmem:[%s3 + $0x128] sm:$0xff] %vm183, %v3427
  %3545 = vst [vmem:[%s3 + $0x130] sm:$0xff] %v3431
  %3546 = vst.msk [vmem:[%s3 + $0x138] sm:$0xff] %vm183, %v3433
  %3547 = vst [vmem:[%s3 + $0x140] sm:$0xff] %v3437
  %3548 = vst.msk [vmem:[%s3 + $0x148] sm:$0xff] %vm183, %v3439
  %3549 = vst [vmem:[%s3 + $0x150] sm:$0xff] %v3443
  %3550 = vst.msk [vmem:[%s3 + $0x158] sm:$0xff] %vm183, %v3445
  %3551 = vst [vmem:[%s3 + $0x160] sm:$0xff] %v3449
  %3552 = vst.msk [vmem:[%s3 + $0x168] sm:$0xff] %vm183, %v3451
  %3553 = vst [vmem:[%s3 + $0x170] sm:$0xff] %v3455
  %3554 = vst.msk [vmem:[%s3 + $0x178] sm:$0xff] %vm183, %v3457
  %3555 = vst [vmem:[%s3 + $0x180] sm:$0xff] %v3461
  %3556 = vst.msk [vmem:[%s3 + $0x188] sm:$0xff] %vm183, %v3463
  %3557 = vst [vmem:[%s3 + $0x190] sm:$0xff] %v3467
  %3558 = vst.msk [vmem:[%s3 + $0x198] sm:$0xff] %vm183, %v3469
  %3559 = vst [vmem:[%s3 + $0x1a0] sm:$0xff] %v3473
  %3560 = vst.msk [vmem:[%s3 + $0x1a8] sm:$0xff] %vm183, %v3475
  %3561 = vst [vmem:[%s3 + $0x1b0] sm:$0xff] %v3479
  %3562 = vst.msk [vmem:[%s3 + $0x1b8] sm:$0xff] %vm183, %v3481
  %3563 = vst [vmem:[%s3 + $0x1c0] sm:$0xff] %v3485
  %3564 = vst.msk [vmem:[%s3 + $0x1c8] sm:$0xff] %vm183, %v3487
  %3565 = vst [vmem:[%s3 + $0x1d0] sm:$0xff] %v3491
  %3566 = vst.msk [vmem:[%s3 + $0x1d8] sm:$0xff] %vm183, %v3493
  %3567 = vst [vmem:[%s3 + $0x1e0] sm:$0xff] %v3497
  %3568 = vst.msk [vmem:[%s3 + $0x1e8] sm:$0xff] %vm183, %v3499
  %3569 = vst [vmem:[%s3 + $0x1f0] sm:$0xff] %v3503
  %3570 = vst.msk [vmem:[%s3 + $0x1f8] sm:$0xff] %vm183, %v3505
  // Predicated region
  $region14: #{kernel_generated_3_forward.1} parent=0 // pred_check
    _
  $region15: #{kernel_generated_3_forward.1} parent=0 // pred_check_branch
    %3572 = sbr.rel (0) target = $region17
  $region16: #{kernel_generated_3_forward.1} parent=0 // pred_region
    _
  $region17: #{kernel_generated_3_forward.1} parent=0 // pred_fallthru
    _
  // Predicated region
  $region18: #{kernel_generated_3_forward.1} parent=0 // pred_check
    _
  $region19: #{kernel_generated_3_forward.1} parent=0 // pred_check_branch
    %3574 = sbr.rel (0) target = $region21
  $region20: #{kernel_generated_3_forward.1} parent=0 // pred_region
    _
  $region21: #{kernel_generated_3_forward.1} parent=0 // pred_fallthru
    _

</llo_original>
